<compile_context>
chip_gen: v7x
topology: tpu7x:2x2x1
jax: 0.10.0
libtpu: 0.0.40
codegen_flags: <defaults>
</compile_context>

<pallas_src>
import numpy as np

import jax
import jax.numpy as jnp
from jax.experimental import pallas as pl
from jax.experimental.pallas import tpu as pltpu


# ---------------------------------------------------------------------------
# Fused Pallas kernel: whole autoencoder forward for one batch-row tile.
# ---------------------------------------------------------------------------
def _autoencoder_kernel(x_ref, e1_ref, b1_ref, e2_ref, b2_ref,
                        d1_ref, c1_ref, d2_ref, c2_ref, d3_ref, c3_ref,
                        o_ref):
    f32 = jnp.float32
    x = x_ref[...]                                        # (BN, Cin*H*W)

    def conv_relu_pool(inp, mats_ref, bias_row):
        # MaxPool folded into the conv matrix: one column-gathered matrix per
        # pooling-window offset.  ReLU / bias commute with column selection,
        # so  maxpool(relu(conv(x)))  ==  max_k relu(x @ M_k + b_pool).
        acc = None
        for k in range(mats_ref.shape[0]):                # unrolled (k*k = 4)
            y = jnp.dot(inp, mats_ref[k], preferred_element_type=f32)
            y = jnp.maximum(y + bias_row, 0.0)
            acc = y if acc is None else jnp.maximum(acc, y)
        return acc

    # encoder: Conv(1,4,3,s3,p1)+ReLU+MaxPool(2,2) ; Conv(4,2,3,s2,p1)+ReLU+MaxPool(2,1)
    h = conv_relu_pool(x, e1_ref, b1_ref[...])            # (BN, 4*5*5)
    h = conv_relu_pool(h, e2_ref, b2_ref[...])            # (BN, 2*2*2)

    # decoder: ConvT(2,4,3,s2)+ReLU ; ConvT(4,2,5,s3)+ReLU ; ConvT(2,1,2,s2,p1)+Tanh
    h = jnp.maximum(
        jnp.dot(h, d1_ref[...], preferred_element_type=f32) + c1_ref[...], 0.0)
    h = jnp.maximum(
        jnp.dot(h, d2_ref[...], preferred_element_type=f32) + c2_ref[...], 0.0)
    h = jnp.tanh(
        jnp.dot(h, d3_ref[...], preferred_element_type=f32) + c3_ref[...])
    o_ref[...] = h.astype(o_ref.dtype)                    # (BN, 1*32*32) lane-dense


# ---------------------------------------------------------------------------
# One-time (host-side, outside the jitted forward) weight preprocessing:
# fold conv / conv-transpose / maxpool structure into dense matrices.
# Flattened feature layout everywhere is row-major (C, H, W).
# ---------------------------------------------------------------------------
def _conv_matrix(w, H, W, stride, pad):
    """PyTorch Conv2d weight (Co,Ci,kH,kW) -> dense (Ci*H*W, Co*OH*OW)."""
    Co, Ci, kH, kW = w.shape
    OH = (H + 2 * pad - kH) // stride + 1
    OW = (W + 2 * pad - kW) // stride + 1
    kh = np.arange(H)[:, None] - np.arange(OH)[None, :] * stride + pad   # (H, OH)
    kw = np.arange(W)[:, None] - np.arange(OW)[None, :] * stride + pad   # (W, OW)
    vh = (kh >= 0) & (kh < kH)
    vw = (kw >= 0) & (kw < kW)
    khc = np.clip(kh, 0, kH - 1)
    kwc = np.clip(kw, 0, kW - 1)
    g = w[:, :, khc, :][:, :, :, :, kwc]                  # (Co,Ci,H,OH,W,OW)
    g = g * vh[None, None, :, :, None, None] * vw[None, None, None, None, :, :]
    m = g.transpose(1, 2, 4, 0, 3, 5).reshape(Ci * H * W, Co * OH * OW)
    return m.astype(np.float32), (Co, OH, OW)


def _convT_matrix(w, H, W, stride, pad):
    """PyTorch ConvTranspose2d weight (Ci,Co,kH,kW) -> dense (Ci*H*W, Co*OH*OW)."""
    Ci, Co, kH, kW = w.shape
    OH = (H - 1) * stride - 2 * pad + kH
    OW = (W - 1) * stride - 2 * pad + kW
    kh = np.arange(OH)[None, :] - np.arange(H)[:, None] * stride + pad   # (H, OH)
    kw = np.arange(OW)[None, :] - np.arange(W)[:, None] * stride + pad   # (W, OW)
    vh = (kh >= 0) & (kh < kH)
    vw = (kw >= 0) & (kw < kW)
    khc = np.clip(kh, 0, kH - 1)
    kwc = np.clip(kw, 0, kW - 1)
    g = w[:, :, khc, :][:, :, :, :, kwc]                  # (Ci,Co,H,OH,W,OW)
    g = g * vh[None, None, :, :, None, None] * vw[None, None, None, None, :, :]
    m = g.transpose(0, 2, 4, 1, 3, 5).reshape(Ci * H * W, Co * OH * OW)
    return m.astype(np.float32), (Co, OH, OW)


def _fold_maxpool(m, C, OH, OW, k, s):
    """Fold MaxPool(k, stride=s) into conv matrix m (K, C*OH*OW):
    one column-gathered matrix per window offset, stacked -> (k*k, K, C*PH*PW)."""
    PH = (OH - k) // s + 1
    PW = (OW - k) // s + 1
    m4 = m.reshape(m.shape[0], C, OH, OW)
    mats = []
    for di in range(k):
        for dj in range(k):
            sel = m4[:, :, di:di + s * PH:s, dj:dj + s * PW:s]
            mats.append(sel.reshape(m.shape[0], C * PH * PW))
    return np.stack(mats, 0).astype(np.float32), (PH, PW)


def prepare_params(params, in_hw=(28, 28)):
    """Precompute (once, host side) all dense matrices + pooled biases."""
    H, W = in_hw
    p = {k: np.asarray(v, np.float32) for k, v in params.items()}

    # encoder stage 1: Conv2d(1,4,3,s=3,p=1) + ReLU + MaxPool(2, s=2)
    m1, (C1, OH1, OW1) = _conv_matrix(p["enc_w1"], H, W, stride=3, pad=1)
    e1, (PH1, PW1) = _fold_maxpool(m1, C1, OH1, OW1, 2, 2)
    b1 = np.repeat(p["enc_b1"], PH1 * PW1)[None, :].astype(np.float32)

    # encoder stage 2: Conv2d(4,2,3,s=2,p=1) + ReLU + MaxPool(2, s=1)
    m2, (C2, OH2, OW2) = _conv_matrix(p["enc_w2"], PH1, PW1, stride=2, pad=1)
    e2, (PH2, PW2) = _fold_maxpool(m2, C2, OH2, OW2, 2, 1)
    b2 = np.repeat(p["enc_b2"], PH2 * PW2)[None, :].astype(np.float32)

    # decoder
    d1, (C3, H3, W3) = _convT_matrix(p["dec_w1"], PH2, PW2, stride=2, pad=0)
    c1 = np.repeat(p["dec_b1"], H3 * W3)[None, :].astype(np.float32)
    d2, (C4, H4, W4) = _convT_matrix(p["dec_w2"], H3, W3, stride=3, pad=0)
    c2 = np.repeat(p["dec_b2"], H4 * W4)[None, :].astype(np.float32)
    d3, (C5, H5, W5) = _convT_matrix(p["dec_w3"], H4, W4, stride=2, pad=1)
    c3 = np.repeat(p["dec_b3"], H5 * W5)[None, :].astype(np.float32)

    prep = {name: jnp.asarray(v) for name, v in
            dict(e1=e1, b1=b1, e2=e2, b2=b2,
                 d1=d1, c1=c1, d2=d2, c2=c2, d3=d3, c3=c3).items()}
    meta = {"in_chw": (p["enc_w1"].shape[1], H, W), "out_chw": (C5, H5, W5)}
    return prep, meta


# ---------------------------------------------------------------------------
# Jitted forward: flatten -> single fused pallas_call -> reshape.
# ---------------------------------------------------------------------------
def make_forward(meta, batch_tile=8):
    out_c, out_h, out_w = meta["out_chw"]
    BN = batch_tile                            # sublane-full batch-row tile

    @jax.jit
    def forward(x, prep):
        N = x.shape[0]
        in_flat = prep["e1"].shape[1]
        out_flat = prep["d3"].shape[1]
        x2 = x.reshape(N, -1)
        assert x2.shape[1] == in_flat, (x2.shape, in_flat)

        Np = ((N + BN - 1) // BN) * BN
        if Np != N:
            x2 = jnp.pad(x2, ((0, Np - N), (0, 0)))

        y = pl.pallas_call(
            _autoencoder_kernel,
            out_shape=jax.ShapeDtypeStruct((Np, out_flat), jnp.float32),
            grid=(Np // BN,),
            in_specs=[
                pl.BlockSpec((BN, in_flat), lambda i: (i, 0)),
                pl.BlockSpec(prep["e1"].shape, lambda i: (0, 0, 0)),
                pl.BlockSpec(prep["b1"].shape, lambda i: (0, 0)),
                pl.BlockSpec(prep["e2"].shape, lambda i: (0, 0, 0)),
                pl.BlockSpec(prep["b2"].shape, lambda i: (0, 0)),
                pl.BlockSpec(prep["d1"].shape, lambda i: (0, 0)),
                pl.BlockSpec(prep["c1"].shape, lambda i: (0, 0)),
                pl.BlockSpec(prep["d2"].shape, lambda i: (0, 0)),
                pl.BlockSpec(prep["c2"].shape, lambda i: (0, 0)),
                pl.BlockSpec(prep["d3"].shape, lambda i: (0, 0)),
                pl.BlockSpec(prep["c3"].shape, lambda i: (0, 0)),
            ],
            out_specs=pl.BlockSpec((BN, out_flat), lambda i: (i, 0)),
            compiler_params=pltpu.CompilerParams(
                dimension_semantics=("parallel",),   # shard batch tiles on v7x's 2 TCs
                vmem_limit_bytes=32 * 1024 * 1024),
        )(x2, prep["e1"], prep["b1"], prep["e2"], prep["b2"],
          prep["d1"], prep["c1"], prep["d2"], prep["c2"],
          prep["d3"], prep["c3"])

        return y[:N].reshape(N, out_c, out_h, out_w)

    return forward


# ---------------------------------------------------------------------------
# Plain-JAX reference (PyTorch semantics) for in-script verification.
# ---------------------------------------------------------------------------
def reference_forward(x, p):
    hi = jax.lax.Precision.HIGHEST

    def conv(x, w, b, s, pad):
        y = jax.lax.conv_general_dilated(
            x, w, window_strides=(s, s), padding=[(pad, pad), (pad, pad)],
            dimension_numbers=("NCHW", "OIHW", "NCHW"), precision=hi)
        return y + b.reshape(1, -1, 1, 1)

    def convT(x, w, b, s, pad):
        kH, kW = w.shape[2], w.shape[3]
        wf = jnp.flip(w, (2, 3)).transpose(1, 0, 2, 3)   # (Co, Ci, kH, kW)
        y = jax.lax.conv_general_dilated(
            x, wf, window_strides=(1, 1),
            padding=[(kH - 1 - pad, kH - 1 - pad), (kW - 1 - pad, kW - 1 - pad)],
            lhs_dilation=(s, s),
            dimension_numbers=("NCHW", "OIHW", "NCHW"), precision=hi)
        return y + b.reshape(1, -1, 1, 1)

    def maxpool(x, k, s):
        return jax.lax.reduce_window(
            x, -jnp.inf, jax.lax.max,
            window_dimensions=(1, 1, k, k), window_strides=(1, 1, s, s),
            padding="VALID")

    y = jax.nn.relu(conv(x, p["enc_w1"], p["enc_b1"], 3, 1))
    y = maxpool(y, 2, 2)
    y = jax.nn.relu(conv(y, p["enc_w2"], p["enc_b2"], 2, 1))
    y = maxpool(y, 2, 1)
    y = jax.nn.relu(convT(y, p["dec_w1"], p["dec_b1"], 2, 0))
    y = jax.nn.relu(convT(y, p["dec_w2"], p["dec_b2"], 3, 0))
    y = jnp.tanh(convT(y, p["dec_w3"], p["dec_b3"], 2, 1))
    return y


# ---------------------------------------------------------------------------
# Parameter init (PyTorch default-style uniform) and driver.
# ---------------------------------------------------------------------------
def init_params(key):
    def u(k, shape, fan_in):
        bound = 1.0 / np.sqrt(float(fan_in))
        return jax.random.uniform(k, shape, jnp.float32, -bound, bound)

    ks = jax.random.split(key, 10)
    return {
        # encoder: Conv2d(1,4,3,s=3,p=1), Conv2d(4,2,3,s=2,p=1)
        "enc_w1": u(ks[0], (4, 1, 3, 3), 1 * 3 * 3),
        "enc_b1": u(ks[1], (4,), 1 * 3 * 3),
        "enc_w2": u(ks[2], (2, 4, 3, 3), 4 * 3 * 3),
        "enc_b2": u(ks[3], (2,), 4 * 3 * 3),
        # decoder: ConvT(2,4,3,s=2), ConvT(4,2,5,s=3), ConvT(2,1,2,s=2,p=1)
        "dec_w1": u(ks[4], (2, 4, 3, 3), 4 * 3 * 3),
        "dec_b1": u(ks[5], (4,), 4 * 3 * 3),
        "dec_w2": u(ks[6], (4, 2, 5, 5), 2 * 5 * 5),
        "dec_b2": u(ks[7], (2,), 2 * 5 * 5),
        "dec_w3": u(ks[8], (2, 1, 2, 2), 1 * 2 * 2),
        "dec_b3": u(ks[9], (1,), 1 * 2 * 2),
    }


if __name__ == "__main__":
    key = jax.random.PRNGKey(0)
    kx, kp = jax.random.split(key)
    # MNIST-like input: (batch=2, channels=1, 28, 28) -> output (2, 1, 32, 32)
    x = jax.random.normal(kx, (2, 1, 28, 28), jnp.float32)
    params = init_params(kp)

    prep, meta = prepare_params(params, in_hw=(28, 28))   # one-time, host side
    forward = make_forward(meta)

    out = forward(x, prep)
    out = jax.block_until_ready(out)

    assert out.shape == (2, 1, 32, 32), out.shape
    assert bool(jnp.all(jnp.isfinite(out)))

    ref = reference_forward(x, params)
    max_err = float(jnp.max(jnp.abs(out - ref)))
    assert max_err < 1e-3, f"mismatch vs reference: {max_err}"

    print("KERNEL_OK")
</pallas_src>

<mosaic_0001>
module attributes {stable_mosaic.version = 11 : i64} {
  func.func @_autoencoder_kernel(%arg0: i32, %arg1: memref<8x784xf32, #tpu.memory_space<vmem>>, %arg2: memref<4x784x100xf32, #tpu.memory_space<vmem>>, %arg3: memref<1x100xf32, #tpu.memory_space<vmem>>, %arg4: memref<4x100x8xf32, #tpu.memory_space<vmem>>, %arg5: memref<1x8xf32, #tpu.memory_space<vmem>>, %arg6: memref<8x100xf32, #tpu.memory_space<vmem>>, %arg7: memref<1x100xf32, #tpu.memory_space<vmem>>, %arg8: memref<100x578xf32, #tpu.memory_space<vmem>>, %arg9: memref<1x578xf32, #tpu.memory_space<vmem>>, %arg10: memref<578x1024xf32, #tpu.memory_space<vmem>>, %arg11: memref<1x1024xf32, #tpu.memory_space<vmem>>, %arg12: memref<8x1024xf32, #tpu.memory_space<vmem>>) attributes {dimension_semantics = [#tpu.dimension_semantics<parallel>], iteration_bounds = array<i64: 1>, scalar_prefetch = 0 : i64, scratch_operands = 0 : i64, tpu.core_type = #tpu.core_type<tc>, window_params = [{transform_indices = @transform_0, window_bounds = array<i64: 8, 784>}, {pipeline_mode = #tpu.pipeline_mode<synchronous>, transform_indices = @transform_1, window_bounds = array<i64: 4, 784, 100>}, {pipeline_mode = #tpu.pipeline_mode<synchronous>, transform_indices = @transform_2, window_bounds = array<i64: 1, 100>}, {pipeline_mode = #tpu.pipeline_mode<synchronous>, transform_indices = @transform_3, window_bounds = array<i64: 4, 100, 8>}, {pipeline_mode = #tpu.pipeline_mode<synchronous>, transform_indices = @transform_4, window_bounds = array<i64: 1, 8>}, {pipeline_mode = #tpu.pipeline_mode<synchronous>, transform_indices = @transform_5, window_bounds = array<i64: 8, 100>}, {pipeline_mode = #tpu.pipeline_mode<synchronous>, transform_indices = @transform_6, window_bounds = array<i64: 1, 100>}, {pipeline_mode = #tpu.pipeline_mode<synchronous>, transform_indices = @transform_7, window_bounds = array<i64: 100, 578>}, {pipeline_mode = #tpu.pipeline_mode<synchronous>, transform_indices = @transform_8, window_bounds = array<i64: 1, 578>}, {pipeline_mode = #tpu.pipeline_mode<synchronous>, transform_indices = @transform_9, window_bounds = array<i64: 578, 1024>}, {pipeline_mode = #tpu.pipeline_mode<synchronous>, transform_indices = @transform_10, window_bounds = array<i64: 1, 1024>}, {transform_indices = @transform_11, window_bounds = array<i64: 8, 1024>}]} {
    %c0 = arith.constant 0 : index
    %c0_0 = arith.constant 0 : index
    %0 = vector.load %arg1[%c0, %c0_0] : memref<8x784xf32, #tpu.memory_space<vmem>>, vector<8x784xf32>
    %c0_1 = arith.constant 0 : index
    %c0_2 = arith.constant 0 : index
    %1 = vector.load %arg3[%c0_1, %c0_2] : memref<1x100xf32, #tpu.memory_space<vmem>>, vector<1x100xf32>
    %c0_3 = arith.constant 0 : index
    %c0_4 = arith.constant 0 : index
    %c0_5 = arith.constant 0 : index
    %2 = vector.load %arg2[%c0_3, %c0_4, %c0_5] : memref<4x784x100xf32, #tpu.memory_space<vmem>>, vector<1x784x100xf32>
    %3 = vector.shape_cast %2 : vector<1x784x100xf32> to vector<784x100xf32>
    %cst = arith.constant dense<0.000000e+00> : vector<8x100xf32>
    %4 = tpu.matmul %0, %3, %cst {dimension_numbers = #tpu.dot_dimension_numbers<[1], [0], [0], [1], [0, 0, 1, 1], [], []>} : vector<8x784xf32>, vector<784x100xf32>, vector<8x100xf32> -> vector<8x100xf32>
    %5 = vector.broadcast %1 : vector<1x100xf32> to vector<8x100xf32>
    %6 = arith.addf %4, %5 : vector<8x100xf32>
    %cst_6 = arith.constant 0.000000e+00 : f32
    %7 = vector.broadcast %cst_6 : f32 to vector<8x100xf32>
    %8 = arith.maximumf %6, %7 : vector<8x100xf32>
    %c1 = arith.constant 1 : index
    %c0_7 = arith.constant 0 : index
    %c0_8 = arith.constant 0 : index
    %9 = vector.load %arg2[%c1, %c0_7, %c0_8] : memref<4x784x100xf32, #tpu.memory_space<vmem>>, vector<1x784x100xf32>
    %10 = vector.shape_cast %9 : vector<1x784x100xf32> to vector<784x100xf32>
    %cst_9 = arith.constant dense<0.000000e+00> : vector<8x100xf32>
    %11 = tpu.matmul %0, %10, %cst_9 {dimension_numbers = #tpu.dot_dimension_numbers<[1], [0], [0], [1], [0, 0, 1, 1], [], []>} : vector<8x784xf32>, vector<784x100xf32>, vector<8x100xf32> -> vector<8x100xf32>
    %12 = vector.broadcast %1 : vector<1x100xf32> to vector<8x100xf32>
    %13 = arith.addf %11, %12 : vector<8x100xf32>
    %cst_10 = arith.constant 0.000000e+00 : f32
    %14 = vector.broadcast %cst_10 : f32 to vector<8x100xf32>
    %15 = arith.maximumf %13, %14 : vector<8x100xf32>
    %16 = arith.maximumf %8, %15 : vector<8x100xf32>
    %c2 = arith.constant 2 : index
    %c0_11 = arith.constant 0 : index
    %c0_12 = arith.constant 0 : index
    %17 = vector.load %arg2[%c2, %c0_11, %c0_12] : memref<4x784x100xf32, #tpu.memory_space<vmem>>, vector<1x784x100xf32>
    %18 = vector.shape_cast %17 : vector<1x784x100xf32> to vector<784x100xf32>
    %cst_13 = arith.constant dense<0.000000e+00> : vector<8x100xf32>
    %19 = tpu.matmul %0, %18, %cst_13 {dimension_numbers = #tpu.dot_dimension_numbers<[1], [0], [0], [1], [0, 0, 1, 1], [], []>} : vector<8x784xf32>, vector<784x100xf32>, vector<8x100xf32> -> vector<8x100xf32>
    %20 = vector.broadcast %1 : vector<1x100xf32> to vector<8x100xf32>
    %21 = arith.addf %19, %20 : vector<8x100xf32>
    %cst_14 = arith.constant 0.000000e+00 : f32
    %22 = vector.broadcast %cst_14 : f32 to vector<8x100xf32>
    %23 = arith.maximumf %21, %22 : vector<8x100xf32>
    %24 = arith.maximumf %16, %23 : vector<8x100xf32>
    %c3 = arith.constant 3 : index
    %c0_15 = arith.constant 0 : index
    %c0_16 = arith.constant 0 : index
    %25 = vector.load %arg2[%c3, %c0_15, %c0_16] : memref<4x784x100xf32, #tpu.memory_space<vmem>>, vector<1x784x100xf32>
    %26 = vector.shape_cast %25 : vector<1x784x100xf32> to vector<784x100xf32>
    %cst_17 = arith.constant dense<0.000000e+00> : vector<8x100xf32>
    %27 = tpu.matmul %0, %26, %cst_17 {dimension_numbers = #tpu.dot_dimension_numbers<[1], [0], [0], [1], [0, 0, 1, 1], [], []>} : vector<8x784xf32>, vector<784x100xf32>, vector<8x100xf32> -> vector<8x100xf32>
    %28 = vector.broadcast %1 : vector<1x100xf32> to vector<8x100xf32>
    %29 = arith.addf %27, %28 : vector<8x100xf32>
    %cst_18 = arith.constant 0.000000e+00 : f32
    %30 = vector.broadcast %cst_18 : f32 to vector<8x100xf32>
    %31 = arith.maximumf %29, %30 : vector<8x100xf32>
    %32 = arith.maximumf %24, %31 : vector<8x100xf32>
    %c0_19 = arith.constant 0 : index
    %c0_20 = arith.constant 0 : index
    %33 = vector.load %arg5[%c0_19, %c0_20] : memref<1x8xf32, #tpu.memory_space<vmem>>, vector<1x8xf32>
    %c0_21 = arith.constant 0 : index
    %c0_22 = arith.constant 0 : index
    %c0_23 = arith.constant 0 : index
    %34 = vector.load %arg4[%c0_21, %c0_22, %c0_23] : memref<4x100x8xf32, #tpu.memory_space<vmem>>, vector<1x100x8xf32>
    %35 = vector.shape_cast %34 : vector<1x100x8xf32> to vector<100x8xf32>
    %cst_24 = arith.constant dense<0.000000e+00> : vector<8x8xf32>
    %36 = tpu.matmul %32, %35, %cst_24 {dimension_numbers = #tpu.dot_dimension_numbers<[1], [0], [0], [1], [0, 0, 1, 1], [], []>} : vector<8x100xf32>, vector<100x8xf32>, vector<8x8xf32> -> vector<8x8xf32>
    %37 = vector.broadcast %33 : vector<1x8xf32> to vector<8x8xf32>
    %38 = arith.addf %36, %37 : vector<8x8xf32>
    %cst_25 = arith.constant 0.000000e+00 : f32
    %39 = vector.broadcast %cst_25 : f32 to vector<8x8xf32>
    %40 = arith.maximumf %38, %39 : vector<8x8xf32>
    %c1_26 = arith.constant 1 : index
    %c0_27 = arith.constant 0 : index
    %c0_28 = arith.constant 0 : index
    %41 = vector.load %arg4[%c1_26, %c0_27, %c0_28] : memref<4x100x8xf32, #tpu.memory_space<vmem>>, vector<1x100x8xf32>
    %42 = vector.shape_cast %41 : vector<1x100x8xf32> to vector<100x8xf32>
    %cst_29 = arith.constant dense<0.000000e+00> : vector<8x8xf32>
    %43 = tpu.matmul %32, %42, %cst_29 {dimension_numbers = #tpu.dot_dimension_numbers<[1], [0], [0], [1], [0, 0, 1, 1], [], []>} : vector<8x100xf32>, vector<100x8xf32>, vector<8x8xf32> -> vector<8x8xf32>
    %44 = vector.broadcast %33 : vector<1x8xf32> to vector<8x8xf32>
    %45 = arith.addf %43, %44 : vector<8x8xf32>
    %cst_30 = arith.constant 0.000000e+00 : f32
    %46 = vector.broadcast %cst_30 : f32 to vector<8x8xf32>
    %47 = arith.maximumf %45, %46 : vector<8x8xf32>
    %48 = arith.maximumf %40, %47 : vector<8x8xf32>
    %c2_31 = arith.constant 2 : index
    %c0_32 = arith.constant 0 : index
    %c0_33 = arith.constant 0 : index
    %49 = vector.load %arg4[%c2_31, %c0_32, %c0_33] : memref<4x100x8xf32, #tpu.memory_space<vmem>>, vector<1x100x8xf32>
    %50 = vector.shape_cast %49 : vector<1x100x8xf32> to vector<100x8xf32>
    %cst_34 = arith.constant dense<0.000000e+00> : vector<8x8xf32>
    %51 = tpu.matmul %32, %50, %cst_34 {dimension_numbers = #tpu.dot_dimension_numbers<[1], [0], [0], [1], [0, 0, 1, 1], [], []>} : vector<8x100xf32>, vector<100x8xf32>, vector<8x8xf32> -> vector<8x8xf32>
    %52 = vector.broadcast %33 : vector<1x8xf32> to vector<8x8xf32>
    %53 = arith.addf %51, %52 : vector<8x8xf32>
    %cst_35 = arith.constant 0.000000e+00 : f32
    %54 = vector.broadcast %cst_35 : f32 to vector<8x8xf32>
    %55 = arith.maximumf %53, %54 : vector<8x8xf32>
    %56 = arith.maximumf %48, %55 : vector<8x8xf32>
    %c3_36 = arith.constant 3 : index
    %c0_37 = arith.constant 0 : index
    %c0_38 = arith.constant 0 : index
    %57 = vector.load %arg4[%c3_36, %c0_37, %c0_38] : memref<4x100x8xf32, #tpu.memory_space<vmem>>, vector<1x100x8xf32>
    %58 = vector.shape_cast %57 : vector<1x100x8xf32> to vector<100x8xf32>
    %cst_39 = arith.constant dense<0.000000e+00> : vector<8x8xf32>
    %59 = tpu.matmul %32, %58, %cst_39 {dimension_numbers = #tpu.dot_dimension_numbers<[1], [0], [0], [1], [0, 0, 1, 1], [], []>} : vector<8x100xf32>, vector<100x8xf32>, vector<8x8xf32> -> vector<8x8xf32>
    %60 = vector.broadcast %33 : vector<1x8xf32> to vector<8x8xf32>
    %61 = arith.addf %59, %60 : vector<8x8xf32>
    %cst_40 = arith.constant 0.000000e+00 : f32
    %62 = vector.broadcast %cst_40 : f32 to vector<8x8xf32>
    %63 = arith.maximumf %61, %62 : vector<8x8xf32>
    %64 = arith.maximumf %56, %63 : vector<8x8xf32>
    %c0_41 = arith.constant 0 : index
    %c0_42 = arith.constant 0 : index
    %65 = vector.load %arg6[%c0_41, %c0_42] : memref<8x100xf32, #tpu.memory_space<vmem>>, vector<8x100xf32>
    %cst_43 = arith.constant dense<0.000000e+00> : vector<8x100xf32>
    %66 = tpu.matmul %64, %65, %cst_43 {dimension_numbers = #tpu.dot_dimension_numbers<[1], [0], [0], [1], [0, 0, 1, 1], [], []>} : vector<8x8xf32>, vector<8x100xf32>, vector<8x100xf32> -> vector<8x100xf32>
    %c0_44 = arith.constant 0 : index
    %c0_45 = arith.constant 0 : index
    %67 = vector.load %arg7[%c0_44, %c0_45] : memref<1x100xf32, #tpu.memory_space<vmem>>, vector<1x100xf32>
    %68 = vector.broadcast %67 : vector<1x100xf32> to vector<8x100xf32>
    %69 = arith.addf %66, %68 : vector<8x100xf32>
    %cst_46 = arith.constant 0.000000e+00 : f32
    %70 = vector.broadcast %cst_46 : f32 to vector<8x100xf32>
    %71 = arith.maximumf %69, %70 : vector<8x100xf32>
    %c0_47 = arith.constant 0 : index
    %c0_48 = arith.constant 0 : index
    %72 = vector.load %arg8[%c0_47, %c0_48] : memref<100x578xf32, #tpu.memory_space<vmem>>, vector<100x578xf32>
    %cst_49 = arith.constant dense<0.000000e+00> : vector<8x578xf32>
    %73 = tpu.matmul %71, %72, %cst_49 {dimension_numbers = #tpu.dot_dimension_numbers<[1], [0], [0], [1], [0, 0, 1, 1], [], []>} : vector<8x100xf32>, vector<100x578xf32>, vector<8x578xf32> -> vector<8x578xf32>
    %c0_50 = arith.constant 0 : index
    %c0_51 = arith.constant 0 : index
    %74 = vector.load %arg9[%c0_50, %c0_51] : memref<1x578xf32, #tpu.memory_space<vmem>>, vector<1x578xf32>
    %75 = vector.broadcast %74 : vector<1x578xf32> to vector<8x578xf32>
    %76 = arith.addf %73, %75 : vector<8x578xf32>
    %cst_52 = arith.constant 0.000000e+00 : f32
    %77 = vector.broadcast %cst_52 : f32 to vector<8x578xf32>
    %78 = arith.maximumf %76, %77 : vector<8x578xf32>
    %c0_53 = arith.constant 0 : index
    %c0_54 = arith.constant 0 : index
    %79 = vector.load %arg10[%c0_53, %c0_54] : memref<578x1024xf32, #tpu.memory_space<vmem>>, vector<578x1024xf32>
    %cst_55 = arith.constant dense<0.000000e+00> : vector<8x1024xf32>
    %80 = tpu.matmul %78, %79, %cst_55 {dimension_numbers = #tpu.dot_dimension_numbers<[1], [0], [0], [1], [0, 0, 1, 1], [], []>} : vector<8x578xf32>, vector<578x1024xf32>, vector<8x1024xf32> -> vector<8x1024xf32>
    %c0_56 = arith.constant 0 : index
    %c0_57 = arith.constant 0 : index
    %81 = vector.load %arg11[%c0_56, %c0_57] : memref<1x1024xf32, #tpu.memory_space<vmem>>, vector<1x1024xf32>
    %82 = vector.broadcast %81 : vector<1x1024xf32> to vector<8x1024xf32>
    %83 = arith.addf %80, %82 : vector<8x1024xf32>
    %84 = math.tanh %83 : vector<8x1024xf32>
    %c0_58 = arith.constant 0 : index
    %c0_59 = arith.constant 0 : index
    %85 = vector.load %arg12[%c0_58, %c0_59] : memref<8x1024xf32, #tpu.memory_space<vmem>>, vector<8x1024xf32>
    tpu.vector_store %arg12[%c0_58, %c0_59], %84 {strides = array<i32>} : memref<8x1024xf32, #tpu.memory_space<vmem>>, vector<8x1024xf32>,
    return
  }
  func.func @transform_0(%arg0: i32) -> (i32, i32) {
    %c0_i32 = arith.constant 0 : i32
    %c0_i32_0 = arith.constant 0 : i32
    return %arg0, %c0_i32 : i32, i32
  }
  func.func @transform_1(%arg0: i32) -> (i32, i32, i32) {
    %c0_i32 = arith.constant 0 : i32
    %c0_i32_0 = arith.constant 0 : i32
    %c0_i32_1 = arith.constant 0 : i32
    %c0_i32_2 = arith.constant 0 : i32
    return %c0_i32, %c0_i32_0, %c0_i32_1 : i32, i32, i32
  }
  func.func @transform_2(%arg0: i32) -> (i32, i32) {
    %c0_i32 = arith.constant 0 : i32
    %c0_i32_0 = arith.constant 0 : i32
    %c0_i32_1 = arith.constant 0 : i32
    return %c0_i32, %c0_i32_0 : i32, i32
  }
  func.func @transform_3(%arg0: i32) -> (i32, i32, i32) {
    %c0_i32 = arith.constant 0 : i32
    %c0_i32_0 = arith.constant 0 : i32
    %c0_i32_1 = arith.constant 0 : i32
    %c0_i32_2 = arith.constant 0 : i32
    return %c0_i32, %c0_i32_0, %c0_i32_1 : i32, i32, i32
  }
  func.func @transform_4(%arg0: i32) -> (i32, i32) {
    %c0_i32 = arith.constant 0 : i32
    %c0_i32_0 = arith.constant 0 : i32
    %c0_i32_1 = arith.constant 0 : i32
    return %c0_i32, %c0_i32_0 : i32, i32
  }
  func.func @transform_5(%arg0: i32) -> (i32, i32) {
    %c0_i32 = arith.constant 0 : i32
    %c0_i32_0 = arith.constant 0 : i32
    %c0_i32_1 = arith.constant 0 : i32
    return %c0_i32, %c0_i32_0 : i32, i32
  }
  func.func @transform_6(%arg0: i32) -> (i32, i32) {
    %c0_i32 = arith.constant 0 : i32
    %c0_i32_0 = arith.constant 0 : i32
    %c0_i32_1 = arith.constant 0 : i32
    return %c0_i32, %c0_i32_0 : i32, i32
  }
  func.func @transform_7(%arg0: i32) -> (i32, i32) {
    %c0_i32 = arith.constant 0 : i32
    %c0_i32_0 = arith.constant 0 : i32
    %c0_i32_1 = arith.constant 0 : i32
    return %c0_i32, %c0_i32_0 : i32, i32
  }
  func.func @transform_8(%arg0: i32) -> (i32, i32) {
    %c0_i32 = arith.constant 0 : i32
    %c0_i32_0 = arith.constant 0 : i32
    %c0_i32_1 = arith.constant 0 : i32
    return %c0_i32, %c0_i32_0 : i32, i32
  }
  func.func @transform_9(%arg0: i32) -> (i32, i32) {
    %c0_i32 = arith.constant 0 : i32
    %c0_i32_0 = arith.constant 0 : i32
    %c0_i32_1 = arith.constant 0 : i32
    return %c0_i32, %c0_i32_0 : i32, i32
  }
  func.func @transform_10(%arg0: i32) -> (i32, i32) {
    %c0_i32 = arith.constant 0 : i32
    %c0_i32_0 = arith.constant 0 : i32
    %c0_i32_1 = arith.constant 0 : i32
    return %c0_i32, %c0_i32_0 : i32, i32
  }
  func.func @transform_11(%arg0: i32) -> (i32, i32) {
    %c0_i32 = arith.constant 0 : i32
    %c0_i32_0 = arith.constant 0 : i32
    return %arg0, %c0_i32 : i32, i32
  }
}

</mosaic_0001>

<llo_original>
// kernel: forward.1
$region0: #{forward.1}
  #allocation0 [shape = 'u32[]', space=smem, size = 0x4, offset = 0x4, fixed_abs, tag = 'smem constant byte address 0x4 - core index']
  #allocation1 [shape = 'u32[144,128]{1,0:T(1,128)}', space=vmem, size = 0x12000, scoped, tag = 'internal scratch']
  %s0 = inlined_call_operand.vmem [shape: f32[8,784], index: 0, kind: input, shape index: {}]
  %s1 = inlined_call_operand.vmem [shape: f32[4,784,100], index: 1, kind: input, shape index: {}]
  %s2 = inlined_call_operand.vmem [shape: f32[1,100], index: 2, kind: input, shape index: {}]
  %s3 = inlined_call_operand.vmem [shape: f32[4,100,8], index: 3, kind: input, shape index: {}]
  %s4 = inlined_call_operand.vmem [shape: f32[1,8], index: 4, kind: input, shape index: {}]
  %s5 = inlined_call_operand.vmem [shape: f32[8,100], index: 5, kind: input, shape index: {}]
  %s6 = inlined_call_operand.vmem [shape: f32[1,100], index: 6, kind: input, shape index: {}]
  %s7 = inlined_call_operand.vmem [shape: f32[100,578], index: 7, kind: input, shape index: {}]
  %s8 = inlined_call_operand.vmem [shape: f32[1,578], index: 8, kind: input, shape index: {}]
  %s9 = inlined_call_operand.vmem [shape: f32[578,1024], index: 9, kind: input, shape index: {}]
  %s10 = inlined_call_operand.vmem [shape: f32[1,1024], index: 10, kind: input, shape index: {}]
  %s11 = inlined_call_operand.vmem [shape: f32[8,1024], index: 11, kind: output, shape index: {}]
  %s12 = sld [smem:[#allocation0]]
  $region54: #{forward.1} parent=0
    _
  %s14 = ssub.s32 1, %s12
  %s15 = scalar_select 0, %s14, %s12
  // Predicated region
  $region2: #{forward.1} parent=0 // pred_check
    _
  $region3: #{forward.1} parent=0 // pred_check_branch
    %17 = sbr.rel (0) target = $region5
  $region4: #{forward.1} parent=0 // pred_region
    _
  $region5: #{forward.1} parent=0 // pred_fallthru
    _
  // Predicated region
  $region6: #{forward.1} parent=0 // pred_check
    _
  $region7: #{forward.1} parent=0 // pred_check_branch
    %19 = sbr.rel (0) target = $region9
  $region8: #{forward.1} parent=0 // pred_region
    _
  $region9: #{forward.1} parent=0 // pred_fallthru
    _
  // Predicated region
  $region10: #{forward.1} parent=0 // pred_check
    _
  $region11: #{forward.1} parent=0 // pred_check_branch
    %21 = sbr.rel (0) target = $region13
  $region12: #{forward.1} parent=0 // pred_region
    _
  $region13: #{forward.1} parent=0 // pred_fallthru
    _
  // Predicated region
  $region14: #{forward.1} parent=0 // pred_check
    _
  $region15: #{forward.1} parent=0 // pred_check_branch
    %23 = sbr.rel (0) target = $region17
  $region16: #{forward.1} parent=0 // pred_region
    _
  $region17: #{forward.1} parent=0 // pred_fallthru
    _
  // Predicated region
  $region18: #{forward.1} parent=0 // pred_check
    _
  $region19: #{forward.1} parent=0 // pred_check_branch
    %25 = sbr.rel (0) target = $region21
  $region20: #{forward.1} parent=0 // pred_region
    _
  $region21: #{forward.1} parent=0 // pred_fallthru
    _
  // Predicated region
  $region22: #{forward.1} parent=0 // pred_check
    _
  $region23: #{forward.1} parent=0 // pred_check_branch
    %27 = sbr.rel (0) target = $region25
  $region24: #{forward.1} parent=0 // pred_region
    _
  $region25: #{forward.1} parent=0 // pred_fallthru
    _
  // Predicated region
  $region26: #{forward.1} parent=0 // pred_check
    _
  $region27: #{forward.1} parent=0 // pred_check_branch
    %29 = sbr.rel (0) target = $region29
  $region28: #{forward.1} parent=0 // pred_region
    _
  $region29: #{forward.1} parent=0 // pred_fallthru
    _
  // Predicated region
  $region30: #{forward.1} parent=0 // pred_check
    _
  $region31: #{forward.1} parent=0 // pred_check_branch
    %31 = sbr.rel (0) target = $region33
  $region32: #{forward.1} parent=0 // pred_region
    _
  $region33: #{forward.1} parent=0 // pred_fallthru
    _
  // Predicated region
  $region34: #{forward.1} parent=0 // pred_check
    _
  $region35: #{forward.1} parent=0 // pred_check_branch
    %33 = sbr.rel (0) target = $region37
  $region36: #{forward.1} parent=0 // pred_region
    _
  $region37: #{forward.1} parent=0 // pred_fallthru
    _
  // Predicated region
  $region38: #{forward.1} parent=0 // pred_check
    _
  $region39: #{forward.1} parent=0 // pred_check_branch
    %35 = sbr.rel (0) target = $region41
  $region40: #{forward.1} parent=0 // pred_region
    _
  $region41: #{forward.1} parent=0 // pred_fallthru
    _
  // Predicated region
  $region42: #{forward.1} parent=0 // pred_check
    _
  $region43: #{forward.1} parent=0 // pred_check_branch
    %37 = sbr.rel (0) target = $region45
  $region44: #{forward.1} parent=0 // pred_region
    _
  $region45: #{forward.1} parent=0 // pred_fallthru
    _
  %v38 = vld [vmem:[%s0] sm:$0xff]
  %v39 = vld [vmem:[%s0 + $0x8] sm:$0xff]
  %v40 = vld [vmem:[%s0 + $0x10] sm:$0xff]
  %v41 = vld [vmem:[%s0 + $0x18] sm:$0xff]
  %v42 = vld [vmem:[%s0 + $0x20] sm:$0xff]
  %v43 = vld [vmem:[%s0 + $0x28] sm:$0xff]
  %v44 = vld [vmem:[%s0 + $0x30] sm:$0xff]
  %v45 = vld [vmem:[%s2] sm:$0x1]
  %v46 = vld [vmem:[%s1] sm:$0xff]
  %v47 = vld [vmem:[%s1 + $0x8] sm:$0xff]
  %v48 = vld [vmem:[%s1 + $0x10] sm:$0xff]
  %v49 = vld [vmem:[%s1 + $0x18] sm:$0xff]
  %v50 = vld [vmem:[%s1 + $0x20] sm:$0xff]
  %v51 = vld [vmem:[%s1 + $0x28] sm:$0xff]
  %v52 = vld [vmem:[%s1 + $0x30] sm:$0xff]
  %v53 = vld [vmem:[%s1 + $0x38] sm:$0xff]
  %v54 = vld [vmem:[%s1 + $0x40] sm:$0xff]
  %v55 = vld [vmem:[%s1 + $0x48] sm:$0xff]
  %v56 = vld [vmem:[%s1 + $0x50] sm:$0xff]
  %v57 = vld [vmem:[%s1 + $0x58] sm:$0xff]
  %v58 = vld [vmem:[%s1 + $0x60] sm:$0xff]
  %v59 = vld [vmem:[%s1 + $0x68] sm:$0xff]
  %v60 = vld [vmem:[%s1 + $0x70] sm:$0xff]
  %v61 = vld [vmem:[%s1 + $0x78] sm:$0xff]
  %v62 = vld [vmem:[%s1 + $0x80] sm:$0xff]
  %v63 = vld [vmem:[%s1 + $0x88] sm:$0xff]
  %v64 = vld [vmem:[%s1 + $0x90] sm:$0xff]
  %v65 = vld [vmem:[%s1 + $0x98] sm:$0xff]
  %v66 = vld [vmem:[%s1 + $0xa0] sm:$0xff]
  %v67 = vld [vmem:[%s1 + $0xa8] sm:$0xff]
  %v68 = vld [vmem:[%s1 + $0xb0] sm:$0xff]
  %v69 = vld [vmem:[%s1 + $0xb8] sm:$0xff]
  %v70 = vld [vmem:[%s1 + $0xc0] sm:$0xff]
  %v71 = vld [vmem:[%s1 + $0xc8] sm:$0xff]
  %v72 = vld [vmem:[%s1 + $0xd0] sm:$0xff]
  %v73 = vld [vmem:[%s1 + $0xd8] sm:$0xff]
  %v74 = vld [vmem:[%s1 + $0xe0] sm:$0xff]
  %v75 = vld [vmem:[%s1 + $0xe8] sm:$0xff]
  %v76 = vld [vmem:[%s1 + $0xf0] sm:$0xff]
  %v77 = vld [vmem:[%s1 + $0xf8] sm:$0xff]
  %v78 = vld [vmem:[%s1 + $0x100] sm:$0xff]
  %v79 = vld [vmem:[%s1 + $0x108] sm:$0xff]
  %v80 = vld [vmem:[%s1 + $0x110] sm:$0xff]
  %v81 = vld [vmem:[%s1 + $0x118] sm:$0xff]
  %v82 = vld [vmem:[%s1 + $0x120] sm:$0xff]
  %v83 = vld [vmem:[%s1 + $0x128] sm:$0xff]
  %v84 = vld [vmem:[%s1 + $0x130] sm:$0xff]
  %v85 = vld [vmem:[%s1 + $0x138] sm:$0xff]
  %v86 = vld [vmem:[%s1 + $0x140] sm:$0xff]
  %v87 = vld [vmem:[%s1 + $0x148] sm:$0xff]
  %v88 = vld [vmem:[%s1 + $0x150] sm:$0xff]
  %v89 = vld [vmem:[%s1 + $0x158] sm:$0xff]
  %v90 = vld [vmem:[%s1 + $0x160] sm:$0xff]
  %v91 = vld [vmem:[%s1 + $0x168] sm:$0xff]
  %v92 = vld [vmem:[%s1 + $0x170] sm:$0xff]
  %v93 = vld [vmem:[%s1 + $0x178] sm:$0xff]
  %v94 = vld [vmem:[%s1 + $0x180] sm:$0xff]
  %v95 = vld [vmem:[%s1 + $0x188] sm:$0xff]
  %v96 = vld [vmem:[%s1 + $0x190] sm:$0xff]
  %v97 = vld [vmem:[%s1 + $0x198] sm:$0xff]
  %v98 = vld [vmem:[%s1 + $0x1a0] sm:$0xff]
  %v99 = vld [vmem:[%s1 + $0x1a8] sm:$0xff]
  %v100 = vld [vmem:[%s1 + $0x1b0] sm:$0xff]
  %v101 = vld [vmem:[%s1 + $0x1b8] sm:$0xff]
  %v102 = vld [vmem:[%s1 + $0x1c0] sm:$0xff]
  %v103 = vld [vmem:[%s1 + $0x1c8] sm:$0xff]
  %v104 = vld [vmem:[%s1 + $0x1d0] sm:$0xff]
  %v105 = vld [vmem:[%s1 + $0x1d8] sm:$0xff]
  %v106 = vld [vmem:[%s1 + $0x1e0] sm:$0xff]
  %v107 = vld [vmem:[%s1 + $0x1e8] sm:$0xff]
  %v108 = vld [vmem:[%s1 + $0x1f0] sm:$0xff]
  %v109 = vld [vmem:[%s1 + $0x1f8] sm:$0xff]
  %v110 = vld [vmem:[%s1 + $0x200] sm:$0xff]
  %v111 = vld [vmem:[%s1 + $0x208] sm:$0xff]
  %v112 = vld [vmem:[%s1 + $0x210] sm:$0xff]
  %v113 = vld [vmem:[%s1 + $0x218] sm:$0xff]
  %v114 = vld [vmem:[%s1 + $0x220] sm:$0xff]
  %v115 = vld [vmem:[%s1 + $0x228] sm:$0xff]
  %v116 = vld [vmem:[%s1 + $0x230] sm:$0xff]
  %v117 = vld [vmem:[%s1 + $0x238] sm:$0xff]
  %v118 = vld [vmem:[%s1 + $0x240] sm:$0xff]
  %v119 = vld [vmem:[%s1 + $0x248] sm:$0xff]
  %v120 = vld [vmem:[%s1 + $0x250] sm:$0xff]
  %v121 = vld [vmem:[%s1 + $0x258] sm:$0xff]
  %v122 = vld [vmem:[%s1 + $0x260] sm:$0xff]
  %v123 = vld [vmem:[%s1 + $0x268] sm:$0xff]
  %v124 = vld [vmem:[%s1 + $0x270] sm:$0xff]
  %v125 = vld [vmem:[%s1 + $0x278] sm:$0xff]
  %v126 = vld [vmem:[%s1 + $0x280] sm:$0xff]
  %v127 = vld [vmem:[%s1 + $0x288] sm:$0xff]
  %v128 = vld [vmem:[%s1 + $0x290] sm:$0xff]
  %v129 = vld [vmem:[%s1 + $0x298] sm:$0xff]
  %v130 = vld [vmem:[%s1 + $0x2a0] sm:$0xff]
  %v131 = vld [vmem:[%s1 + $0x2a8] sm:$0xff]
  %v132 = vld [vmem:[%s1 + $0x2b0] sm:$0xff]
  %v133 = vld [vmem:[%s1 + $0x2b8] sm:$0xff]
  %v134 = vld [vmem:[%s1 + $0x2c0] sm:$0xff]
  %v135 = vld [vmem:[%s1 + $0x2c8] sm:$0xff]
  %v136 = vld [vmem:[%s1 + $0x2d0] sm:$0xff]
  %v137 = vld [vmem:[%s1 + $0x2d8] sm:$0xff]
  %v138 = vld [vmem:[%s1 + $0x2e0] sm:$0xff]
  %v139 = vld [vmem:[%s1 + $0x2e8] sm:$0xff]
  %v140 = vld [vmem:[%s1 + $0x2f0] sm:$0xff]
  %v141 = vld [vmem:[%s1 + $0x2f8] sm:$0xff]
  %v142 = vld [vmem:[%s1 + $0x300] sm:$0xff]
  %v143 = vld [vmem:[%s1 + $0x308] sm:$0xff]
  %v145 = vlaneseq
  %v146 = vshrl.u32 %v145, 7
  %v147 = vsub.s32 0, %v146
  %v148 = vrot.slane %v45, %v147
  %vm150 = vcmask 130048
  %v152 = vsel %vm150, %v44, 0
  %154 = vmatprep.subr.mxu0 0.0
  %155 = vmatpush1.msra.mxu0 %v46
  %156 = vmatprep.subr.mxu0 0.0
  %157 = vmatpush1.msra.mxu0 %v47
  %158 = vmatprep.subr.mxu0 0.0
  %159 = vmatpush1.msra.mxu0 %v48
  %160 = vmatprep.subr.mxu0 0.0
  %161 = vmatpush1.msra.mxu0 %v49
  %162 = vmatprep.subr.mxu0 0.0
  %163 = vmatpush1.msra.mxu0 %v50
  %164 = vmatprep.subr.mxu0 0.0
  %165 = vmatpush1.msra.mxu0 %v51
  %166 = vmatprep.subr.mxu0 0.0
  %167 = vmatpush1.msra.mxu0 %v52
  %168 = vmatprep.subr.mxu0 0.0
  %169 = vmatpush1.msra.mxu0 %v53
  %170 = vmatprep.subr.mxu0 0.0
  %171 = vmatpush1.msra.mxu0 %v54
  %172 = vmatprep.subr.mxu0 0.0
  %173 = vmatpush1.msra.mxu0 %v55
  %174 = vmatprep.subr.mxu0 0.0
  %175 = vmatpush1.msra.mxu0 %v56
  %176 = vmatprep.subr.mxu0 0.0
  %177 = vmatpush1.msra.mxu0 %v57
  %178 = vmatprep.subr.mxu0 0.0
  %179 = vmatpush1.msra.mxu0 %v58
  %180 = vmatprep.subr.mxu0 0.0
  %181 = vmatpush1.msra.mxu0 %v59
  %182 = vmatprep.subr.mxu0 0.0
  %183 = vmatpush1.msra.mxu0 %v60
  %184 = vmatprep.subr.mxu0 0.0
  %185 = vmatpush1.msra.mxu0 %v61
  %186 = vmatprep.subr.mxu0 0.0
  %187 = vmatpush1.msra.mxu0 %v62
  %188 = vmatprep.subr.mxu0 0.0
  %189 = vmatpush1.msra.mxu0 %v63
  %190 = vmatprep.subr.mxu0 0.0
  %191 = vmatpush1.msra.mxu0 %v64
  %192 = vmatprep.subr.mxu0 0.0
  %193 = vmatpush1.msra.mxu0 %v65
  %194 = vmatprep.subr.mxu0 0.0
  %195 = vmatpush1.msra.mxu0 %v66
  %196 = vmatprep.subr.mxu0 0.0
  %197 = vmatpush1.msra.mxu0 %v67
  %198 = vmatprep.subr.mxu0 0.0
  %199 = vmatpush1.msra.mxu0 %v68
  %200 = vmatprep.subr.mxu0 0.0
  %201 = vmatpush1.msra.mxu0 %v69
  %202 = vmatprep.subr.mxu0 0.0
  %203 = vmatpush1.msra.mxu0 %v70
  %204 = vmatprep.subr.mxu0 0.0
  %205 = vmatpush1.msra.mxu0 %v71
  %206 = vmatprep.subr.mxu0 0.0
  %207 = vmatpush1.msra.mxu0 %v72
  %208 = vmatprep.subr.mxu0 0.0
  %209 = vmatpush1.msra.mxu0 %v73
  %210 = vmatprep.subr.mxu0 0.0
  %211 = vmatpush1.msra.mxu0 %v74
  %212 = vmatprep.subr.mxu0 0.0
  %213 = vmatpush1.msra.mxu0 %v75
  %214 = vmatprep.subr.mxu0 0.0
  %215 = vmatpush1.msra.mxu0 %v76
  %216 = vmatprep.subr.mxu0 0.0
  %217 = vmatpush1.msra.mxu0 %v77
  %218 = vmatprep.mubr.f32.mxu0 %v39
  %219 = vmatmul.mubr.f32.gmra.mrb[0].mxu0 %v38
  %v220 = vpop.f32.mrb[0].mxu0
  %v221 = vadd.f32 %v148, %v220
  %v222 = vpop.f32.mrb[0].mxu0
  %223 = vdwg.mxu0
  %224 = vmatprep.subr.mxu0 0.0
  %225 = vmatpush1.msra.mxu0 %v78
  %226 = vmatprep.subr.mxu0 0.0
  %227 = vmatpush1.msra.mxu0 %v79
  %228 = vmatprep.subr.mxu0 0.0
  %229 = vmatpush1.msra.mxu0 %v80
  %230 = vmatprep.subr.mxu0 0.0
  %231 = vmatpush1.msra.mxu0 %v81
  %232 = vmatprep.subr.mxu0 0.0
  %233 = vmatpush1.msra.mxu0 %v82
  %234 = vmatprep.subr.mxu0 0.0
  %235 = vmatpush1.msra.mxu0 %v83
  %236 = vmatprep.subr.mxu0 0.0
  %237 = vmatpush1.msra.mxu0 %v84
  %238 = vmatprep.subr.mxu0 0.0
  %239 = vmatpush1.msra.mxu0 %v85
  %240 = vmatprep.subr.mxu0 0.0
  %241 = vmatpush1.msra.mxu0 %v86
  %242 = vmatprep.subr.mxu0 0.0
  %243 = vmatpush1.msra.mxu0 %v87
  %244 = vmatprep.subr.mxu0 0.0
  %245 = vmatpush1.msra.mxu0 %v88
  %246 = vmatprep.subr.mxu0 0.0
  %247 = vmatpush1.msra.mxu0 %v89
  %248 = vmatprep.subr.mxu0 0.0
  %249 = vmatpush1.msra.mxu0 %v90
  %250 = vmatprep.subr.mxu0 0.0
  %251 = vmatpush1.msra.mxu0 %v91
  %252 = vmatprep.subr.mxu0 0.0
  %253 = vmatpush1.msra.mxu0 %v92
  %254 = vmatprep.subr.mxu0 0.0
  %255 = vmatpush1.msra.mxu0 %v93
  %256 = vmatprep.subr.mxu0 0.0
  %257 = vmatpush1.msra.mxu0 %v94
  %258 = vmatprep.subr.mxu0 0.0
  %259 = vmatpush1.msra.mxu0 %v95
  %260 = vmatprep.subr.mxu0 0.0
  %261 = vmatpush1.msra.mxu0 %v96
  %262 = vmatprep.subr.mxu0 0.0
  %263 = vmatpush1.msra.mxu0 %v97
  %264 = vmatprep.subr.mxu0 0.0
  %265 = vmatpush1.msra.mxu0 %v98
  %266 = vmatprep.subr.mxu0 0.0
  %267 = vmatpush1.msra.mxu0 %v99
  %268 = vmatprep.subr.mxu0 0.0
  %269 = vmatpush1.msra.mxu0 %v100
  %270 = vmatprep.subr.mxu0 0.0
  %271 = vmatpush1.msra.mxu0 %v101
  %272 = vmatprep.subr.mxu0 0.0
  %273 = vmatpush1.msra.mxu0 %v102
  %274 = vmatprep.subr.mxu0 0.0
  %275 = vmatpush1.msra.mxu0 %v103
  %276 = vmatprep.subr.mxu0 0.0
  %277 = vmatpush1.msra.mxu0 %v104
  %278 = vmatprep.subr.mxu0 0.0
  %279 = vmatpush1.msra.mxu0 %v105
  %280 = vmatprep.subr.mxu0 0.0
  %281 = vmatpush1.msra.mxu0 %v106
  %282 = vmatprep.subr.mxu0 0.0
  %283 = vmatpush1.msra.mxu0 %v107
  %284 = vmatprep.subr.mxu0 0.0
  %285 = vmatpush1.msra.mxu0 %v108
  %286 = vmatprep.subr.mxu0 0.0
  %287 = vmatpush1.msra.mxu0 %v109
  %288 = vmatprep.mubr.f32.mxu0 %v41
  %289 = vmatmul.mubr.f32.gmra.mrb[0].mxu0 %v40
  %v290 = vpop.f32.mrb[0].mxu0
  %v291 = vadd.f32 %v221, %v290
  %v292 = vpop.f32.mrb[0].mxu0
  %293 = vdwg.mxu0
  %294 = vmatprep.subr.mxu0 0.0
  %295 = vmatpush1.msra.mxu0 %v110
  %296 = vmatprep.subr.mxu0 0.0
  %297 = vmatpush1.msra.mxu0 %v111
  %298 = vmatprep.subr.mxu0 0.0
  %299 = vmatpush1.msra.mxu0 %v112
  %300 = vmatprep.subr.mxu0 0.0
  %301 = vmatpush1.msra.mxu0 %v113
  %302 = vmatprep.subr.mxu0 0.0
  %303 = vmatpush1.msra.mxu0 %v114
  %304 = vmatprep.subr.mxu0 0.0
  %305 = vmatpush1.msra.mxu0 %v115
  %306 = vmatprep.subr.mxu0 0.0
  %307 = vmatpush1.msra.mxu0 %v116
  %308 = vmatprep.subr.mxu0 0.0
  %309 = vmatpush1.msra.mxu0 %v117
  %310 = vmatprep.subr.mxu0 0.0
  %311 = vmatpush1.msra.mxu0 %v118
  %312 = vmatprep.subr.mxu0 0.0
  %313 = vmatpush1.msra.mxu0 %v119
  %314 = vmatprep.subr.mxu0 0.0
  %315 = vmatpush1.msra.mxu0 %v120
  %316 = vmatprep.subr.mxu0 0.0
  %317 = vmatpush1.msra.mxu0 %v121
  %318 = vmatprep.subr.mxu0 0.0
  %319 = vmatpush1.msra.mxu0 %v122
  %320 = vmatprep.subr.mxu0 0.0
  %321 = vmatpush1.msra.mxu0 %v123
  %322 = vmatprep.subr.mxu0 0.0
  %323 = vmatpush1.msra.mxu0 %v124
  %324 = vmatprep.subr.mxu0 0.0
  %325 = vmatpush1.msra.mxu0 %v125
  %326 = vmatprep.subr.mxu0 0.0
  %327 = vmatpush1.msra.mxu0 %v126
  %328 = vmatprep.subr.mxu0 0.0
  %329 = vmatpush1.msra.mxu0 %v127
  %330 = vmatprep.subr.mxu0 0.0
  %331 = vmatpush1.msra.mxu0 %v128
  %332 = vmatprep.subr.mxu0 0.0
  %333 = vmatpush1.msra.mxu0 %v129
  %334 = vmatprep.subr.mxu0 0.0
  %335 = vmatpush1.msra.mxu0 %v130
  %336 = vmatprep.subr.mxu0 0.0
  %337 = vmatpush1.msra.mxu0 %v131
  %338 = vmatprep.subr.mxu0 0.0
  %339 = vmatpush1.msra.mxu0 %v132
  %340 = vmatprep.subr.mxu0 0.0
  %341 = vmatpush1.msra.mxu0 %v133
  %342 = vmatprep.subr.mxu0 0.0
  %343 = vmatpush1.msra.mxu0 %v134
  %344 = vmatprep.subr.mxu0 0.0
  %345 = vmatpush1.msra.mxu0 %v135
  %346 = vmatprep.subr.mxu0 0.0
  %347 = vmatpush1.msra.mxu0 %v136
  %348 = vmatprep.subr.mxu0 0.0
  %349 = vmatpush1.msra.mxu0 %v137
  %350 = vmatprep.subr.mxu0 0.0
  %351 = vmatpush1.msra.mxu0 %v138
  %352 = vmatprep.subr.mxu0 0.0
  %353 = vmatpush1.msra.mxu0 %v139
  %354 = vmatprep.subr.mxu0 0.0
  %355 = vmatpush1.msra.mxu0 %v140
  %356 = vmatprep.subr.mxu0 0.0
  %357 = vmatpush1.msra.mxu0 %v141
  %358 = vmatprep.mubr.f32.mxu0 %v43
  %359 = vmatmul.mubr.f32.gmra.mrb[0].mxu0 %v42
  %v360 = vpop.f32.mrb[0].mxu0
  %v361 = vadd.f32 %v291, %v360
  %v362 = vpop.f32.mrb[0].mxu0
  %363 = vdwg.mxu0
  %364 = vmatprep.subr.mxu0 0.0
  %365 = vmatpush1.msra.mxu0 %v142
  %366 = vmatprep.subr.mxu0 0.0
  %367 = vmatpush1.msra.mxu0 %v143
  %368 = vmatprep.subr.mxu0 0.0
  %369 = vmatpush1.msra.mxu0 0.0
  %370 = vmatprep.subr.mxu0 0.0
  %371 = vmatpush1.msra.mxu0 0.0
  %372 = vmatprep.subr.mxu0 0.0
  %373 = vmatpush1.msra.mxu0 0.0
  %374 = vmatprep.subr.mxu0 0.0
  %375 = vmatpush1.msra.mxu0 0.0
  %376 = vmatprep.subr.mxu0 0.0
  %377 = vmatpush1.msra.mxu0 0.0
  %378 = vmatprep.subr.mxu0 0.0
  %379 = vmatpush1.msra.mxu0 0.0
  %380 = vmatprep.subr.mxu0 0.0
  %381 = vmatpush1.msra.mxu0 0.0
  %382 = vmatprep.subr.mxu0 0.0
  %383 = vmatpush1.msra.mxu0 0.0
  %384 = vmatprep.subr.mxu0 0.0
  %385 = vmatpush1.msra.mxu0 0.0
  %386 = vmatprep.subr.mxu0 0.0
  %387 = vmatpush1.msra.mxu0 0.0
  %388 = vmatprep.subr.mxu0 0.0
  %389 = vmatpush1.msra.mxu0 0.0
  %390 = vmatprep.subr.mxu0 0.0
  %391 = vmatpush1.msra.mxu0 0.0
  %392 = vmatprep.subr.mxu0 0.0
  %393 = vmatpush1.msra.mxu0 0.0
  %394 = vmatprep.subr.mxu0 0.0
  %395 = vmatpush1.msra.mxu0 0.0
  %396 = vmatprep.subr.mxu0 0.0
  %397 = vmatpush1.msra.mxu0 0.0
  %398 = vmatprep.subr.mxu0 0.0
  %399 = vmatpush1.msra.mxu0 0.0
  %400 = vmatprep.subr.mxu0 0.0
  %401 = vmatpush1.msra.mxu0 0.0
  %402 = vmatprep.subr.mxu0 0.0
  %403 = vmatpush1.msra.mxu0 0.0
  %404 = vmatprep.subr.mxu0 0.0
  %405 = vmatpush1.msra.mxu0 0.0
  %406 = vmatprep.subr.mxu0 0.0
  %407 = vmatpush1.msra.mxu0 0.0
  %408 = vmatprep.subr.mxu0 0.0
  %409 = vmatpush1.msra.mxu0 0.0
  %410 = vmatprep.subr.mxu0 0.0
  %411 = vmatpush1.msra.mxu0 0.0
  %412 = vmatprep.subr.mxu0 0.0
  %413 = vmatpush1.msra.mxu0 0.0
  %414 = vmatprep.subr.mxu0 0.0
  %415 = vmatpush1.msra.mxu0 0.0
  %416 = vmatprep.subr.mxu0 0.0
  %417 = vmatpush1.msra.mxu0 0.0
  %418 = vmatprep.subr.mxu0 0.0
  %419 = vmatpush1.msra.mxu0 0.0
  %420 = vmatprep.subr.mxu0 0.0
  %421 = vmatpush1.msra.mxu0 0.0
  %422 = vmatprep.subr.mxu0 0.0
  %423 = vmatpush1.msra.mxu0 0.0
  %424 = vmatprep.subr.mxu0 0.0
  %425 = vmatpush1.msra.mxu0 0.0
  %426 = vmatprep.subr.mxu0 0.0
  %427 = vmatpush1.msra.mxu0 0.0
  %428 = vmatprep.mubr.f32.mxu0 0.0
  %429 = vmatmul.mubr.f32.gmra.mrb[0].mxu0 %v152
  %v430 = vpop.f32.mrb[0].mxu0
  %v431 = vadd.f32 %v361, %v430
  %v432 = vpop.f32.mrb[0].mxu0
  %433 = vdwg.mxu0
  %v434 = vmax.f32 %v431, 0.0
  %s435 = scalar_lea.vmem %s1, 784
  %v436 = vld [vmem:[%s435] sm:$0xff]
  %v437 = vld [vmem:[%s435 + $0x8] sm:$0xff]
  %v438 = vld [vmem:[%s435 + $0x10] sm:$0xff]
  %v439 = vld [vmem:[%s435 + $0x18] sm:$0xff]
  %v440 = vld [vmem:[%s435 + $0x20] sm:$0xff]
  %v441 = vld [vmem:[%s435 + $0x28] sm:$0xff]
  %v442 = vld [vmem:[%s435 + $0x30] sm:$0xff]
  %v443 = vld [vmem:[%s435 + $0x38] sm:$0xff]
  %v444 = vld [vmem:[%s435 + $0x40] sm:$0xff]
  %v445 = vld [vmem:[%s435 + $0x48] sm:$0xff]
  %v446 = vld [vmem:[%s435 + $0x50] sm:$0xff]
  %v447 = vld [vmem:[%s435 + $0x58] sm:$0xff]
  %v448 = vld [vmem:[%s435 + $0x60] sm:$0xff]
  %v449 = vld [vmem:[%s435 + $0x68] sm:$0xff]
  %v450 = vld [vmem:[%s435 + $0x70] sm:$0xff]
  %v451 = vld [vmem:[%s435 + $0x78] sm:$0xff]
  %v452 = vld [vmem:[%s435 + $0x80] sm:$0xff]
  %v453 = vld [vmem:[%s435 + $0x88] sm:$0xff]
  %v454 = vld [vmem:[%s435 + $0x90] sm:$0xff]
  %v455 = vld [vmem:[%s435 + $0x98] sm:$0xff]
  %v456 = vld [vmem:[%s435 + $0xa0] sm:$0xff]
  %v457 = vld [vmem:[%s435 + $0xa8] sm:$0xff]
  %v458 = vld [vmem:[%s435 + $0xb0] sm:$0xff]
  %v459 = vld [vmem:[%s435 + $0xb8] sm:$0xff]
  %v460 = vld [vmem:[%s435 + $0xc0] sm:$0xff]
  %v461 = vld [vmem:[%s435 + $0xc8] sm:$0xff]
  %v462 = vld [vmem:[%s435 + $0xd0] sm:$0xff]
  %v463 = vld [vmem:[%s435 + $0xd8] sm:$0xff]
  %v464 = vld [vmem:[%s435 + $0xe0] sm:$0xff]
  %v465 = vld [vmem:[%s435 + $0xe8] sm:$0xff]
  %v466 = vld [vmem:[%s435 + $0xf0] sm:$0xff]
  %v467 = vld [vmem:[%s435 + $0xf8] sm:$0xff]
  %v468 = vld [vmem:[%s435 + $0x100] sm:$0xff]
  %v469 = vld [vmem:[%s435 + $0x108] sm:$0xff]
  %v470 = vld [vmem:[%s435 + $0x110] sm:$0xff]
  %v471 = vld [vmem:[%s435 + $0x118] sm:$0xff]
  %v472 = vld [vmem:[%s435 + $0x120] sm:$0xff]
  %v473 = vld [vmem:[%s435 + $0x128] sm:$0xff]
  %v474 = vld [vmem:[%s435 + $0x130] sm:$0xff]
  %v475 = vld [vmem:[%s435 + $0x138] sm:$0xff]
  %v476 = vld [vmem:[%s435 + $0x140] sm:$0xff]
  %v477 = vld [vmem:[%s435 + $0x148] sm:$0xff]
  %v478 = vld [vmem:[%s435 + $0x150] sm:$0xff]
  %v479 = vld [vmem:[%s435 + $0x158] sm:$0xff]
  %v480 = vld [vmem:[%s435 + $0x160] sm:$0xff]
  %v481 = vld [vmem:[%s435 + $0x168] sm:$0xff]
  %v482 = vld [vmem:[%s435 + $0x170] sm:$0xff]
  %v483 = vld [vmem:[%s435 + $0x178] sm:$0xff]
  %v484 = vld [vmem:[%s435 + $0x180] sm:$0xff]
  %v485 = vld [vmem:[%s435 + $0x188] sm:$0xff]
  %v486 = vld [vmem:[%s435 + $0x190] sm:$0xff]
  %v487 = vld [vmem:[%s435 + $0x198] sm:$0xff]
  %v488 = vld [vmem:[%s435 + $0x1a0] sm:$0xff]
  %v489 = vld [vmem:[%s435 + $0x1a8] sm:$0xff]
  %v490 = vld [vmem:[%s435 + $0x1b0] sm:$0xff]
  %v491 = vld [vmem:[%s435 + $0x1b8] sm:$0xff]
  %v492 = vld [vmem:[%s435 + $0x1c0] sm:$0xff]
  %v493 = vld [vmem:[%s435 + $0x1c8] sm:$0xff]
  %v494 = vld [vmem:[%s435 + $0x1d0] sm:$0xff]
  %v495 = vld [vmem:[%s435 + $0x1d8] sm:$0xff]
  %v496 = vld [vmem:[%s435 + $0x1e0] sm:$0xff]
  %v497 = vld [vmem:[%s435 + $0x1e8] sm:$0xff]
  %v498 = vld [vmem:[%s435 + $0x1f0] sm:$0xff]
  %v499 = vld [vmem:[%s435 + $0x1f8] sm:$0xff]
  %v500 = vld [vmem:[%s435 + $0x200] sm:$0xff]
  %v501 = vld [vmem:[%s435 + $0x208] sm:$0xff]
  %v502 = vld [vmem:[%s435 + $0x210] sm:$0xff]
  %v503 = vld [vmem:[%s435 + $0x218] sm:$0xff]
  %v504 = vld [vmem:[%s435 + $0x220] sm:$0xff]
  %v505 = vld [vmem:[%s435 + $0x228] sm:$0xff]
  %v506 = vld [vmem:[%s435 + $0x230] sm:$0xff]
  %v507 = vld [vmem:[%s435 + $0x238] sm:$0xff]
  %v508 = vld [vmem:[%s435 + $0x240] sm:$0xff]
  %v509 = vld [vmem:[%s435 + $0x248] sm:$0xff]
  %v510 = vld [vmem:[%s435 + $0x250] sm:$0xff]
  %v511 = vld [vmem:[%s435 + $0x258] sm:$0xff]
  %v512 = vld [vmem:[%s435 + $0x260] sm:$0xff]
  %v513 = vld [vmem:[%s435 + $0x268] sm:$0xff]
  %v514 = vld [vmem:[%s435 + $0x270] sm:$0xff]
  %v515 = vld [vmem:[%s435 + $0x278] sm:$0xff]
  %v516 = vld [vmem:[%s435 + $0x280] sm:$0xff]
  %v517 = vld [vmem:[%s435 + $0x288] sm:$0xff]
  %v518 = vld [vmem:[%s435 + $0x290] sm:$0xff]
  %v519 = vld [vmem:[%s435 + $0x298] sm:$0xff]
  %v520 = vld [vmem:[%s435 + $0x2a0] sm:$0xff]
  %v521 = vld [vmem:[%s435 + $0x2a8] sm:$0xff]
  %v522 = vld [vmem:[%s435 + $0x2b0] sm:$0xff]
  %v523 = vld [vmem:[%s435 + $0x2b8] sm:$0xff]
  %v524 = vld [vmem:[%s435 + $0x2c0] sm:$0xff]
  %v525 = vld [vmem:[%s435 + $0x2c8] sm:$0xff]
  %v526 = vld [vmem:[%s435 + $0x2d0] sm:$0xff]
  %v527 = vld [vmem:[%s435 + $0x2d8] sm:$0xff]
  %v528 = vld [vmem:[%s435 + $0x2e0] sm:$0xff]
  %v529 = vld [vmem:[%s435 + $0x2e8] sm:$0xff]
  %v530 = vld [vmem:[%s435 + $0x2f0] sm:$0xff]
  %v531 = vld [vmem:[%s435 + $0x2f8] sm:$0xff]
  %v532 = vld [vmem:[%s435 + $0x300] sm:$0xff]
  %v533 = vld [vmem:[%s435 + $0x308] sm:$0xff]
  %534 = vmatprep.subr.mxu0 0.0
  %535 = vmatpush1.msra.mxu0 %v436
  %536 = vmatprep.subr.mxu0 0.0
  %537 = vmatpush1.msra.mxu0 %v437
  %538 = vmatprep.subr.mxu0 0.0
  %539 = vmatpush1.msra.mxu0 %v438
  %540 = vmatprep.subr.mxu0 0.0
  %541 = vmatpush1.msra.mxu0 %v439
  %542 = vmatprep.subr.mxu0 0.0
  %543 = vmatpush1.msra.mxu0 %v440
  %544 = vmatprep.subr.mxu0 0.0
  %545 = vmatpush1.msra.mxu0 %v441
  %546 = vmatprep.subr.mxu0 0.0
  %547 = vmatpush1.msra.mxu0 %v442
  %548 = vmatprep.subr.mxu0 0.0
  %549 = vmatpush1.msra.mxu0 %v443
  %550 = vmatprep.subr.mxu0 0.0
  %551 = vmatpush1.msra.mxu0 %v444
  %552 = vmatprep.subr.mxu0 0.0
  %553 = vmatpush1.msra.mxu0 %v445
  %554 = vmatprep.subr.mxu0 0.0
  %555 = vmatpush1.msra.mxu0 %v446
  %556 = vmatprep.subr.mxu0 0.0
  %557 = vmatpush1.msra.mxu0 %v447
  %558 = vmatprep.subr.mxu0 0.0
  %559 = vmatpush1.msra.mxu0 %v448
  %560 = vmatprep.subr.mxu0 0.0
  %561 = vmatpush1.msra.mxu0 %v449
  %562 = vmatprep.subr.mxu0 0.0
  %563 = vmatpush1.msra.mxu0 %v450
  %564 = vmatprep.subr.mxu0 0.0
  %565 = vmatpush1.msra.mxu0 %v451
  %566 = vmatprep.subr.mxu0 0.0
  %567 = vmatpush1.msra.mxu0 %v452
  %568 = vmatprep.subr.mxu0 0.0
  %569 = vmatpush1.msra.mxu0 %v453
  %570 = vmatprep.subr.mxu0 0.0
  %571 = vmatpush1.msra.mxu0 %v454
  %572 = vmatprep.subr.mxu0 0.0
  %573 = vmatpush1.msra.mxu0 %v455
  %574 = vmatprep.subr.mxu0 0.0
  %575 = vmatpush1.msra.mxu0 %v456
  %576 = vmatprep.subr.mxu0 0.0
  %577 = vmatpush1.msra.mxu0 %v457
  %578 = vmatprep.subr.mxu0 0.0
  %579 = vmatpush1.msra.mxu0 %v458
  %580 = vmatprep.subr.mxu0 0.0
  %581 = vmatpush1.msra.mxu0 %v459
  %582 = vmatprep.subr.mxu0 0.0
  %583 = vmatpush1.msra.mxu0 %v460
  %584 = vmatprep.subr.mxu0 0.0
  %585 = vmatpush1.msra.mxu0 %v461
  %586 = vmatprep.subr.mxu0 0.0
  %587 = vmatpush1.msra.mxu0 %v462
  %588 = vmatprep.subr.mxu0 0.0
  %589 = vmatpush1.msra.mxu0 %v463
  %590 = vmatprep.subr.mxu0 0.0
  %591 = vmatpush1.msra.mxu0 %v464
  %592 = vmatprep.subr.mxu0 0.0
  %593 = vmatpush1.msra.mxu0 %v465
  %594 = vmatprep.subr.mxu0 0.0
  %595 = vmatpush1.msra.mxu0 %v466
  %596 = vmatprep.subr.mxu0 0.0
  %597 = vmatpush1.msra.mxu0 %v467
  %598 = vmatprep.mubr.f32.mxu0 %v39
  %599 = vmatmul.mubr.f32.gmra.mrb[0].mxu0 %v38
  %v600 = vpop.f32.mrb[0].mxu0
  %v601 = vadd.f32 %v148, %v600
  %v602 = vpop.f32.mrb[0].mxu0
  %603 = vdwg.mxu0
  %604 = vmatprep.subr.mxu0 0.0
  %605 = vmatpush1.msra.mxu0 %v468
  %606 = vmatprep.subr.mxu0 0.0
  %607 = vmatpush1.msra.mxu0 %v469
  %608 = vmatprep.subr.mxu0 0.0
  %609 = vmatpush1.msra.mxu0 %v470
  %610 = vmatprep.subr.mxu0 0.0
  %611 = vmatpush1.msra.mxu0 %v471
  %612 = vmatprep.subr.mxu0 0.0
  %613 = vmatpush1.msra.mxu0 %v472
  %614 = vmatprep.subr.mxu0 0.0
  %615 = vmatpush1.msra.mxu0 %v473
  %616 = vmatprep.subr.mxu0 0.0
  %617 = vmatpush1.msra.mxu0 %v474
  %618 = vmatprep.subr.mxu0 0.0
  %619 = vmatpush1.msra.mxu0 %v475
  %620 = vmatprep.subr.mxu0 0.0
  %621 = vmatpush1.msra.mxu0 %v476
  %622 = vmatprep.subr.mxu0 0.0
  %623 = vmatpush1.msra.mxu0 %v477
  %624 = vmatprep.subr.mxu0 0.0
  %625 = vmatpush1.msra.mxu0 %v478
  %626 = vmatprep.subr.mxu0 0.0
  %627 = vmatpush1.msra.mxu0 %v479
  %628 = vmatprep.subr.mxu0 0.0
  %629 = vmatpush1.msra.mxu0 %v480
  %630 = vmatprep.subr.mxu0 0.0
  %631 = vmatpush1.msra.mxu0 %v481
  %632 = vmatprep.subr.mxu0 0.0
  %633 = vmatpush1.msra.mxu0 %v482
  %634 = vmatprep.subr.mxu0 0.0
  %635 = vmatpush1.msra.mxu0 %v483
  %636 = vmatprep.subr.mxu0 0.0
  %637 = vmatpush1.msra.mxu0 %v484
  %638 = vmatprep.subr.mxu0 0.0
  %639 = vmatpush1.msra.mxu0 %v485
  %640 = vmatprep.subr.mxu0 0.0
  %641 = vmatpush1.msra.mxu0 %v486
  %642 = vmatprep.subr.mxu0 0.0
  %643 = vmatpush1.msra.mxu0 %v487
  %644 = vmatprep.subr.mxu0 0.0
  %645 = vmatpush1.msra.mxu0 %v488
  %646 = vmatprep.subr.mxu0 0.0
  %647 = vmatpush1.msra.mxu0 %v489
  %648 = vmatprep.subr.mxu0 0.0
  %649 = vmatpush1.msra.mxu0 %v490
  %650 = vmatprep.subr.mxu0 0.0
  %651 = vmatpush1.msra.mxu0 %v491
  %652 = vmatprep.subr.mxu0 0.0
  %653 = vmatpush1.msra.mxu0 %v492
  %654 = vmatprep.subr.mxu0 0.0
  %655 = vmatpush1.msra.mxu0 %v493
  %656 = vmatprep.subr.mxu0 0.0
  %657 = vmatpush1.msra.mxu0 %v494
  %658 = vmatprep.subr.mxu0 0.0
  %659 = vmatpush1.msra.mxu0 %v495
  %660 = vmatprep.subr.mxu0 0.0
  %661 = vmatpush1.msra.mxu0 %v496
  %662 = vmatprep.subr.mxu0 0.0
  %663 = vmatpush1.msra.mxu0 %v497
  %664 = vmatprep.subr.mxu0 0.0
  %665 = vmatpush1.msra.mxu0 %v498
  %666 = vmatprep.subr.mxu0 0.0
  %667 = vmatpush1.msra.mxu0 %v499
  %668 = vmatprep.mubr.f32.mxu0 %v41
  %669 = vmatmul.mubr.f32.gmra.mrb[0].mxu0 %v40
  %v670 = vpop.f32.mrb[0].mxu0
  %v671 = vadd.f32 %v601, %v670
  %v672 = vpop.f32.mrb[0].mxu0
  %673 = vdwg.mxu0
  %674 = vmatprep.subr.mxu0 0.0
  %675 = vmatpush1.msra.mxu0 %v500
  %676 = vmatprep.subr.mxu0 0.0
  %677 = vmatpush1.msra.mxu0 %v501
  %678 = vmatprep.subr.mxu0 0.0
  %679 = vmatpush1.msra.mxu0 %v502
  %680 = vmatprep.subr.mxu0 0.0
  %681 = vmatpush1.msra.mxu0 %v503
  %682 = vmatprep.subr.mxu0 0.0
  %683 = vmatpush1.msra.mxu0 %v504
  %684 = vmatprep.subr.mxu0 0.0
  %685 = vmatpush1.msra.mxu0 %v505
  %686 = vmatprep.subr.mxu0 0.0
  %687 = vmatpush1.msra.mxu0 %v506
  %688 = vmatprep.subr.mxu0 0.0
  %689 = vmatpush1.msra.mxu0 %v507
  %690 = vmatprep.subr.mxu0 0.0
  %691 = vmatpush1.msra.mxu0 %v508
  %692 = vmatprep.subr.mxu0 0.0
  %693 = vmatpush1.msra.mxu0 %v509
  %694 = vmatprep.subr.mxu0 0.0
  %695 = vmatpush1.msra.mxu0 %v510
  %696 = vmatprep.subr.mxu0 0.0
  %697 = vmatpush1.msra.mxu0 %v511
  %698 = vmatprep.subr.mxu0 0.0
  %699 = vmatpush1.msra.mxu0 %v512
  %700 = vmatprep.subr.mxu0 0.0
  %701 = vmatpush1.msra.mxu0 %v513
  %702 = vmatprep.subr.mxu0 0.0
  %703 = vmatpush1.msra.mxu0 %v514
  %704 = vmatprep.subr.mxu0 0.0
  %705 = vmatpush1.msra.mxu0 %v515
  %706 = vmatprep.subr.mxu0 0.0
  %707 = vmatpush1.msra.mxu0 %v516
  %708 = vmatprep.subr.mxu0 0.0
  %709 = vmatpush1.msra.mxu0 %v517
  %710 = vmatprep.subr.mxu0 0.0
  %711 = vmatpush1.msra.mxu0 %v518
  %712 = vmatprep.subr.mxu0 0.0
  %713 = vmatpush1.msra.mxu0 %v519
  %714 = vmatprep.subr.mxu0 0.0
  %715 = vmatpush1.msra.mxu0 %v520
  %716 = vmatprep.subr.mxu0 0.0
  %717 = vmatpush1.msra.mxu0 %v521
  %718 = vmatprep.subr.mxu0 0.0
  %719 = vmatpush1.msra.mxu0 %v522
  %720 = vmatprep.subr.mxu0 0.0
  %721 = vmatpush1.msra.mxu0 %v523
  %722 = vmatprep.subr.mxu0 0.0
  %723 = vmatpush1.msra.mxu0 %v524
  %724 = vmatprep.subr.mxu0 0.0
  %725 = vmatpush1.msra.mxu0 %v525
  %726 = vmatprep.subr.mxu0 0.0
  %727 = vmatpush1.msra.mxu0 %v526
  %728 = vmatprep.subr.mxu0 0.0
  %729 = vmatpush1.msra.mxu0 %v527
  %730 = vmatprep.subr.mxu0 0.0
  %731 = vmatpush1.msra.mxu0 %v528
  %732 = vmatprep.subr.mxu0 0.0
  %733 = vmatpush1.msra.mxu0 %v529
  %734 = vmatprep.subr.mxu0 0.0
  %735 = vmatpush1.msra.mxu0 %v530
  %736 = vmatprep.subr.mxu0 0.0
  %737 = vmatpush1.msra.mxu0 %v531
  %738 = vmatprep.mubr.f32.mxu0 %v43
  %739 = vmatmul.mubr.f32.gmra.mrb[0].mxu0 %v42
  %v740 = vpop.f32.mrb[0].mxu0
  %v741 = vadd.f32 %v671, %v740
  %v742 = vpop.f32.mrb[0].mxu0
  %743 = vdwg.mxu0
  %744 = vmatprep.subr.mxu0 0.0
  %745 = vmatpush1.msra.mxu0 %v532
  %746 = vmatprep.subr.mxu0 0.0
  %747 = vmatpush1.msra.mxu0 %v533
  %748 = vmatprep.subr.mxu0 0.0
  %749 = vmatpush1.msra.mxu0 0.0
  %750 = vmatprep.subr.mxu0 0.0
  %751 = vmatpush1.msra.mxu0 0.0
  %752 = vmatprep.subr.mxu0 0.0
  %753 = vmatpush1.msra.mxu0 0.0
  %754 = vmatprep.subr.mxu0 0.0
  %755 = vmatpush1.msra.mxu0 0.0
  %756 = vmatprep.subr.mxu0 0.0
  %757 = vmatpush1.msra.mxu0 0.0
  %758 = vmatprep.subr.mxu0 0.0
  %759 = vmatpush1.msra.mxu0 0.0
  %760 = vmatprep.subr.mxu0 0.0
  %761 = vmatpush1.msra.mxu0 0.0
  %762 = vmatprep.subr.mxu0 0.0
  %763 = vmatpush1.msra.mxu0 0.0
  %764 = vmatprep.subr.mxu0 0.0
  %765 = vmatpush1.msra.mxu0 0.0
  %766 = vmatprep.subr.mxu0 0.0
  %767 = vmatpush1.msra.mxu0 0.0
  %768 = vmatprep.subr.mxu0 0.0
  %769 = vmatpush1.msra.mxu0 0.0
  %770 = vmatprep.subr.mxu0 0.0
  %771 = vmatpush1.msra.mxu0 0.0
  %772 = vmatprep.subr.mxu0 0.0
  %773 = vmatpush1.msra.mxu0 0.0
  %774 = vmatprep.subr.mxu0 0.0
  %775 = vmatpush1.msra.mxu0 0.0
  %776 = vmatprep.subr.mxu0 0.0
  %777 = vmatpush1.msra.mxu0 0.0
  %778 = vmatprep.subr.mxu0 0.0
  %779 = vmatpush1.msra.mxu0 0.0
  %780 = vmatprep.subr.mxu0 0.0
  %781 = vmatpush1.msra.mxu0 0.0
  %782 = vmatprep.subr.mxu0 0.0
  %783 = vmatpush1.msra.mxu0 0.0
  %784 = vmatprep.subr.mxu0 0.0
  %785 = vmatpush1.msra.mxu0 0.0
  %786 = vmatprep.subr.mxu0 0.0
  %787 = vmatpush1.msra.mxu0 0.0
  %788 = vmatprep.subr.mxu0 0.0
  %789 = vmatpush1.msra.mxu0 0.0
  %790 = vmatprep.subr.mxu0 0.0
  %791 = vmatpush1.msra.mxu0 0.0
  %792 = vmatprep.subr.mxu0 0.0
  %793 = vmatpush1.msra.mxu0 0.0
  %794 = vmatprep.subr.mxu0 0.0
  %795 = vmatpush1.msra.mxu0 0.0
  %796 = vmatprep.subr.mxu0 0.0
  %797 = vmatpush1.msra.mxu0 0.0
  %798 = vmatprep.subr.mxu0 0.0
  %799 = vmatpush1.msra.mxu0 0.0
  %800 = vmatprep.subr.mxu0 0.0
  %801 = vmatpush1.msra.mxu0 0.0
  %802 = vmatprep.subr.mxu0 0.0
  %803 = vmatpush1.msra.mxu0 0.0
  %804 = vmatprep.subr.mxu0 0.0
  %805 = vmatpush1.msra.mxu0 0.0
  %806 = vmatprep.subr.mxu0 0.0
  %807 = vmatpush1.msra.mxu0 0.0
  %808 = vmatprep.mubr.f32.mxu0 0.0
  %809 = vmatmul.mubr.f32.gmra.mrb[0].mxu0 %v152
  %v810 = vpop.f32.mrb[0].mxu0
  %v811 = vadd.f32 %v741, %v810
  %v812 = vpop.f32.mrb[0].mxu0
  %813 = vdwg.mxu0
  %v814 = vmax.f32 %v811, 0.0
  %v815 = vmax.f32 %v434, %v814
  %s816 = scalar_lea.vmem %s1, 1568
  %v817 = vld [vmem:[%s816] sm:$0xff]
  %v818 = vld [vmem:[%s816 + $0x8] sm:$0xff]
  %v819 = vld [vmem:[%s816 + $0x10] sm:$0xff]
  %v820 = vld [vmem:[%s816 + $0x18] sm:$0xff]
  %v821 = vld [vmem:[%s816 + $0x20] sm:$0xff]
  %v822 = vld [vmem:[%s816 + $0x28] sm:$0xff]
  %v823 = vld [vmem:[%s816 + $0x30] sm:$0xff]
  %v824 = vld [vmem:[%s816 + $0x38] sm:$0xff]
  %v825 = vld [vmem:[%s816 + $0x40] sm:$0xff]
  %v826 = vld [vmem:[%s816 + $0x48] sm:$0xff]
  %v827 = vld [vmem:[%s816 + $0x50] sm:$0xff]
  %v828 = vld [vmem:[%s816 + $0x58] sm:$0xff]
  %v829 = vld [vmem:[%s816 + $0x60] sm:$0xff]
  %v830 = vld [vmem:[%s816 + $0x68] sm:$0xff]
  %v831 = vld [vmem:[%s816 + $0x70] sm:$0xff]
  %v832 = vld [vmem:[%s816 + $0x78] sm:$0xff]
  %v833 = vld [vmem:[%s816 + $0x80] sm:$0xff]
  %v834 = vld [vmem:[%s816 + $0x88] sm:$0xff]
  %v835 = vld [vmem:[%s816 + $0x90] sm:$0xff]
  %v836 = vld [vmem:[%s816 + $0x98] sm:$0xff]
  %v837 = vld [vmem:[%s816 + $0xa0] sm:$0xff]
  %v838 = vld [vmem:[%s816 + $0xa8] sm:$0xff]
  %v839 = vld [vmem:[%s816 + $0xb0] sm:$0xff]
  %v840 = vld [vmem:[%s816 + $0xb8] sm:$0xff]
  %v841 = vld [vmem:[%s816 + $0xc0] sm:$0xff]
  %v842 = vld [vmem:[%s816 + $0xc8] sm:$0xff]
  %v843 = vld [vmem:[%s816 + $0xd0] sm:$0xff]
  %v844 = vld [vmem:[%s816 + $0xd8] sm:$0xff]
  %v845 = vld [vmem:[%s816 + $0xe0] sm:$0xff]
  %v846 = vld [vmem:[%s816 + $0xe8] sm:$0xff]
  %v847 = vld [vmem:[%s816 + $0xf0] sm:$0xff]
  %v848 = vld [vmem:[%s816 + $0xf8] sm:$0xff]
  %v849 = vld [vmem:[%s816 + $0x100] sm:$0xff]
  %v850 = vld [vmem:[%s816 + $0x108] sm:$0xff]
  %v851 = vld [vmem:[%s816 + $0x110] sm:$0xff]
  %v852 = vld [vmem:[%s816 + $0x118] sm:$0xff]
  %v853 = vld [vmem:[%s816 + $0x120] sm:$0xff]
  %v854 = vld [vmem:[%s816 + $0x128] sm:$0xff]
  %v855 = vld [vmem:[%s816 + $0x130] sm:$0xff]
  %v856 = vld [vmem:[%s816 + $0x138] sm:$0xff]
  %v857 = vld [vmem:[%s816 + $0x140] sm:$0xff]
  %v858 = vld [vmem:[%s816 + $0x148] sm:$0xff]
  %v859 = vld [vmem:[%s816 + $0x150] sm:$0xff]
  %v860 = vld [vmem:[%s816 + $0x158] sm:$0xff]
  %v861 = vld [vmem:[%s816 + $0x160] sm:$0xff]
  %v862 = vld [vmem:[%s816 + $0x168] sm:$0xff]
  %v863 = vld [vmem:[%s816 + $0x170] sm:$0xff]
  %v864 = vld [vmem:[%s816 + $0x178] sm:$0xff]
  %v865 = vld [vmem:[%s816 + $0x180] sm:$0xff]
  %v866 = vld [vmem:[%s816 + $0x188] sm:$0xff]
  %v867 = vld [vmem:[%s816 + $0x190] sm:$0xff]
  %v868 = vld [vmem:[%s816 + $0x198] sm:$0xff]
  %v869 = vld [vmem:[%s816 + $0x1a0] sm:$0xff]
  %v870 = vld [vmem:[%s816 + $0x1a8] sm:$0xff]
  %v871 = vld [vmem:[%s816 + $0x1b0] sm:$0xff]
  %v872 = vld [vmem:[%s816 + $0x1b8] sm:$0xff]
  %v873 = vld [vmem:[%s816 + $0x1c0] sm:$0xff]
  %v874 = vld [vmem:[%s816 + $0x1c8] sm:$0xff]
  %v875 = vld [vmem:[%s816 + $0x1d0] sm:$0xff]
  %v876 = vld [vmem:[%s816 + $0x1d8] sm:$0xff]
  %v877 = vld [vmem:[%s816 + $0x1e0] sm:$0xff]
  %v878 = vld [vmem:[%s816 + $0x1e8] sm:$0xff]
  %v879 = vld [vmem:[%s816 + $0x1f0] sm:$0xff]
  %v880 = vld [vmem:[%s816 + $0x1f8] sm:$0xff]
  %v881 = vld [vmem:[%s816 + $0x200] sm:$0xff]
  %v882 = vld [vmem:[%s816 + $0x208] sm:$0xff]
  %v883 = vld [vmem:[%s816 + $0x210] sm:$0xff]
  %v884 = vld [vmem:[%s816 + $0x218] sm:$0xff]
  %v885 = vld [vmem:[%s816 + $0x220] sm:$0xff]
  %v886 = vld [vmem:[%s816 + $0x228] sm:$0xff]
  %v887 = vld [vmem:[%s816 + $0x230] sm:$0xff]
  %v888 = vld [vmem:[%s816 + $0x238] sm:$0xff]
  %v889 = vld [vmem:[%s816 + $0x240] sm:$0xff]
  %v890 = vld [vmem:[%s816 + $0x248] sm:$0xff]
  %v891 = vld [vmem:[%s816 + $0x250] sm:$0xff]
  %v892 = vld [vmem:[%s816 + $0x258] sm:$0xff]
  %v893 = vld [vmem:[%s816 + $0x260] sm:$0xff]
  %v894 = vld [vmem:[%s816 + $0x268] sm:$0xff]
  %v895 = vld [vmem:[%s816 + $0x270] sm:$0xff]
  %v896 = vld [vmem:[%s816 + $0x278] sm:$0xff]
  %v897 = vld [vmem:[%s816 + $0x280] sm:$0xff]
  %v898 = vld [vmem:[%s816 + $0x288] sm:$0xff]
  %v899 = vld [vmem:[%s816 + $0x290] sm:$0xff]
  %v900 = vld [vmem:[%s816 + $0x298] sm:$0xff]
  %v901 = vld [vmem:[%s816 + $0x2a0] sm:$0xff]
  %v902 = vld [vmem:[%s816 + $0x2a8] sm:$0xff]
  %v903 = vld [vmem:[%s816 + $0x2b0] sm:$0xff]
  %v904 = vld [vmem:[%s816 + $0x2b8] sm:$0xff]
  %v905 = vld [vmem:[%s816 + $0x2c0] sm:$0xff]
  %v906 = vld [vmem:[%s816 + $0x2c8] sm:$0xff]
  %v907 = vld [vmem:[%s816 + $0x2d0] sm:$0xff]
  %v908 = vld [vmem:[%s816 + $0x2d8] sm:$0xff]
  %v909 = vld [vmem:[%s816 + $0x2e0] sm:$0xff]
  %v910 = vld [vmem:[%s816 + $0x2e8] sm:$0xff]
  %v911 = vld [vmem:[%s816 + $0x2f0] sm:$0xff]
  %v912 = vld [vmem:[%s816 + $0x2f8] sm:$0xff]
  %v913 = vld [vmem:[%s816 + $0x300] sm:$0xff]
  %v914 = vld [vmem:[%s816 + $0x308] sm:$0xff]
  %915 = vmatprep.subr.mxu0 0.0
  %916 = vmatpush1.msra.mxu0 %v817
  %917 = vmatprep.subr.mxu0 0.0
  %918 = vmatpush1.msra.mxu0 %v818
  %919 = vmatprep.subr.mxu0 0.0
  %920 = vmatpush1.msra.mxu0 %v819
  %921 = vmatprep.subr.mxu0 0.0
  %922 = vmatpush1.msra.mxu0 %v820
  %923 = vmatprep.subr.mxu0 0.0
  %924 = vmatpush1.msra.mxu0 %v821
  %925 = vmatprep.subr.mxu0 0.0
  %926 = vmatpush1.msra.mxu0 %v822
  %927 = vmatprep.subr.mxu0 0.0
  %928 = vmatpush1.msra.mxu0 %v823
  %929 = vmatprep.subr.mxu0 0.0
  %930 = vmatpush1.msra.mxu0 %v824
  %931 = vmatprep.subr.mxu0 0.0
  %932 = vmatpush1.msra.mxu0 %v825
  %933 = vmatprep.subr.mxu0 0.0
  %934 = vmatpush1.msra.mxu0 %v826
  %935 = vmatprep.subr.mxu0 0.0
  %936 = vmatpush1.msra.mxu0 %v827
  %937 = vmatprep.subr.mxu0 0.0
  %938 = vmatpush1.msra.mxu0 %v828
  %939 = vmatprep.subr.mxu0 0.0
  %940 = vmatpush1.msra.mxu0 %v829
  %941 = vmatprep.subr.mxu0 0.0
  %942 = vmatpush1.msra.mxu0 %v830
  %943 = vmatprep.subr.mxu0 0.0
  %944 = vmatpush1.msra.mxu0 %v831
  %945 = vmatprep.subr.mxu0 0.0
  %946 = vmatpush1.msra.mxu0 %v832
  %947 = vmatprep.subr.mxu0 0.0
  %948 = vmatpush1.msra.mxu0 %v833
  %949 = vmatprep.subr.mxu0 0.0
  %950 = vmatpush1.msra.mxu0 %v834
  %951 = vmatprep.subr.mxu0 0.0
  %952 = vmatpush1.msra.mxu0 %v835
  %953 = vmatprep.subr.mxu0 0.0
  %954 = vmatpush1.msra.mxu0 %v836
  %955 = vmatprep.subr.mxu0 0.0
  %956 = vmatpush1.msra.mxu0 %v837
  %957 = vmatprep.subr.mxu0 0.0
  %958 = vmatpush1.msra.mxu0 %v838
  %959 = vmatprep.subr.mxu0 0.0
  %960 = vmatpush1.msra.mxu0 %v839
  %961 = vmatprep.subr.mxu0 0.0
  %962 = vmatpush1.msra.mxu0 %v840
  %963 = vmatprep.subr.mxu0 0.0
  %964 = vmatpush1.msra.mxu0 %v841
  %965 = vmatprep.subr.mxu0 0.0
  %966 = vmatpush1.msra.mxu0 %v842
  %967 = vmatprep.subr.mxu0 0.0
  %968 = vmatpush1.msra.mxu0 %v843
  %969 = vmatprep.subr.mxu0 0.0
  %970 = vmatpush1.msra.mxu0 %v844
  %971 = vmatprep.subr.mxu0 0.0
  %972 = vmatpush1.msra.mxu0 %v845
  %973 = vmatprep.subr.mxu0 0.0
  %974 = vmatpush1.msra.mxu0 %v846
  %975 = vmatprep.subr.mxu0 0.0
  %976 = vmatpush1.msra.mxu0 %v847
  %977 = vmatprep.subr.mxu0 0.0
  %978 = vmatpush1.msra.mxu0 %v848
  %979 = vmatprep.mubr.f32.mxu0 %v39
  %980 = vmatmul.mubr.f32.gmra.mrb[0].mxu0 %v38
  %v981 = vpop.f32.mrb[0].mxu0
  %v982 = vadd.f32 %v148, %v981
  %v983 = vpop.f32.mrb[0].mxu0
  %984 = vdwg.mxu0
  %985 = vmatprep.subr.mxu0 0.0
  %986 = vmatpush1.msra.mxu0 %v849
  %987 = vmatprep.subr.mxu0 0.0
  %988 = vmatpush1.msra.mxu0 %v850
  %989 = vmatprep.subr.mxu0 0.0
  %990 = vmatpush1.msra.mxu0 %v851
  %991 = vmatprep.subr.mxu0 0.0
  %992 = vmatpush1.msra.mxu0 %v852
  %993 = vmatprep.subr.mxu0 0.0
  %994 = vmatpush1.msra.mxu0 %v853
  %995 = vmatprep.subr.mxu0 0.0
  %996 = vmatpush1.msra.mxu0 %v854
  %997 = vmatprep.subr.mxu0 0.0
  %998 = vmatpush1.msra.mxu0 %v855
  %999 = vmatprep.subr.mxu0 0.0
  %1000 = vmatpush1.msra.mxu0 %v856
  %1001 = vmatprep.subr.mxu0 0.0
  %1002 = vmatpush1.msra.mxu0 %v857
  %1003 = vmatprep.subr.mxu0 0.0
  %1004 = vmatpush1.msra.mxu0 %v858
  %1005 = vmatprep.subr.mxu0 0.0
  %1006 = vmatpush1.msra.mxu0 %v859
  %1007 = vmatprep.subr.mxu0 0.0
  %1008 = vmatpush1.msra.mxu0 %v860
  %1009 = vmatprep.subr.mxu0 0.0
  %1010 = vmatpush1.msra.mxu0 %v861
  %1011 = vmatprep.subr.mxu0 0.0
  %1012 = vmatpush1.msra.mxu0 %v862
  %1013 = vmatprep.subr.mxu0 0.0
  %1014 = vmatpush1.msra.mxu0 %v863
  %1015 = vmatprep.subr.mxu0 0.0
  %1016 = vmatpush1.msra.mxu0 %v864
  %1017 = vmatprep.subr.mxu0 0.0
  %1018 = vmatpush1.msra.mxu0 %v865
  %1019 = vmatprep.subr.mxu0 0.0
  %1020 = vmatpush1.msra.mxu0 %v866
  %1021 = vmatprep.subr.mxu0 0.0
  %1022 = vmatpush1.msra.mxu0 %v867
  %1023 = vmatprep.subr.mxu0 0.0
  %1024 = vmatpush1.msra.mxu0 %v868
  %1025 = vmatprep.subr.mxu0 0.0
  %1026 = vmatpush1.msra.mxu0 %v869
  %1027 = vmatprep.subr.mxu0 0.0
  %1028 = vmatpush1.msra.mxu0 %v870
  %1029 = vmatprep.subr.mxu0 0.0
  %1030 = vmatpush1.msra.mxu0 %v871
  %1031 = vmatprep.subr.mxu0 0.0
  %1032 = vmatpush1.msra.mxu0 %v872
  %1033 = vmatprep.subr.mxu0 0.0
  %1034 = vmatpush1.msra.mxu0 %v873
  %1035 = vmatprep.subr.mxu0 0.0
  %1036 = vmatpush1.msra.mxu0 %v874
  %1037 = vmatprep.subr.mxu0 0.0
  %1038 = vmatpush1.msra.mxu0 %v875
  %1039 = vmatprep.subr.mxu0 0.0
  %1040 = vmatpush1.msra.mxu0 %v876
  %1041 = vmatprep.subr.mxu0 0.0
  %1042 = vmatpush1.msra.mxu0 %v877
  %1043 = vmatprep.subr.mxu0 0.0
  %1044 = vmatpush1.msra.mxu0 %v878
  %1045 = vmatprep.subr.mxu0 0.0
  %1046 = vmatpush1.msra.mxu0 %v879
  %1047 = vmatprep.subr.mxu0 0.0
  %1048 = vmatpush1.msra.mxu0 %v880
  %1049 = vmatprep.mubr.f32.mxu0 %v41
  %1050 = vmatmul.mubr.f32.gmra.mrb[0].mxu0 %v40
  %v1051 = vpop.f32.mrb[0].mxu0
  %v1052 = vadd.f32 %v982, %v1051
  %v1053 = vpop.f32.mrb[0].mxu0
  %1054 = vdwg.mxu0
  %1055 = vmatprep.subr.mxu0 0.0
  %1056 = vmatpush1.msra.mxu0 %v881
  %1057 = vmatprep.subr.mxu0 0.0
  %1058 = vmatpush1.msra.mxu0 %v882
  %1059 = vmatprep.subr.mxu0 0.0
  %1060 = vmatpush1.msra.mxu0 %v883
  %1061 = vmatprep.subr.mxu0 0.0
  %1062 = vmatpush1.msra.mxu0 %v884
  %1063 = vmatprep.subr.mxu0 0.0
  %1064 = vmatpush1.msra.mxu0 %v885
  %1065 = vmatprep.subr.mxu0 0.0
  %1066 = vmatpush1.msra.mxu0 %v886
  %1067 = vmatprep.subr.mxu0 0.0
  %1068 = vmatpush1.msra.mxu0 %v887
  %1069 = vmatprep.subr.mxu0 0.0
  %1070 = vmatpush1.msra.mxu0 %v888
  %1071 = vmatprep.subr.mxu0 0.0
  %1072 = vmatpush1.msra.mxu0 %v889
  %1073 = vmatprep.subr.mxu0 0.0
  %1074 = vmatpush1.msra.mxu0 %v890
  %1075 = vmatprep.subr.mxu0 0.0
  %1076 = vmatpush1.msra.mxu0 %v891
  %1077 = vmatprep.subr.mxu0 0.0
  %1078 = vmatpush1.msra.mxu0 %v892
  %1079 = vmatprep.subr.mxu0 0.0
  %1080 = vmatpush1.msra.mxu0 %v893
  %1081 = vmatprep.subr.mxu0 0.0
  %1082 = vmatpush1.msra.mxu0 %v894
  %1083 = vmatprep.subr.mxu0 0.0
  %1084 = vmatpush1.msra.mxu0 %v895
  %1085 = vmatprep.subr.mxu0 0.0
  %1086 = vmatpush1.msra.mxu0 %v896
  %1087 = vmatprep.subr.mxu0 0.0
  %1088 = vmatpush1.msra.mxu0 %v897
  %1089 = vmatprep.subr.mxu0 0.0
  %1090 = vmatpush1.msra.mxu0 %v898
  %1091 = vmatprep.subr.mxu0 0.0
  %1092 = vmatpush1.msra.mxu0 %v899
  %1093 = vmatprep.subr.mxu0 0.0
  %1094 = vmatpush1.msra.mxu0 %v900
  %1095 = vmatprep.subr.mxu0 0.0
  %1096 = vmatpush1.msra.mxu0 %v901
  %1097 = vmatprep.subr.mxu0 0.0
  %1098 = vmatpush1.msra.mxu0 %v902
  %1099 = vmatprep.subr.mxu0 0.0
  %1100 = vmatpush1.msra.mxu0 %v903
  %1101 = vmatprep.subr.mxu0 0.0
  %1102 = vmatpush1.msra.mxu0 %v904
  %1103 = vmatprep.subr.mxu0 0.0
  %1104 = vmatpush1.msra.mxu0 %v905
  %1105 = vmatprep.subr.mxu0 0.0
  %1106 = vmatpush1.msra.mxu0 %v906
  %1107 = vmatprep.subr.mxu0 0.0
  %1108 = vmatpush1.msra.mxu0 %v907
  %1109 = vmatprep.subr.mxu0 0.0
  %1110 = vmatpush1.msra.mxu0 %v908
  %1111 = vmatprep.subr.mxu0 0.0
  %1112 = vmatpush1.msra.mxu0 %v909
  %1113 = vmatprep.subr.mxu0 0.0
  %1114 = vmatpush1.msra.mxu0 %v910
  %1115 = vmatprep.subr.mxu0 0.0
  %1116 = vmatpush1.msra.mxu0 %v911
  %1117 = vmatprep.subr.mxu0 0.0
  %1118 = vmatpush1.msra.mxu0 %v912
  %1119 = vmatprep.mubr.f32.mxu0 %v43
  %1120 = vmatmul.mubr.f32.gmra.mrb[0].mxu0 %v42
  %v1121 = vpop.f32.mrb[0].mxu0
  %v1122 = vadd.f32 %v1052, %v1121
  %v1123 = vpop.f32.mrb[0].mxu0
  %1124 = vdwg.mxu0
  %1125 = vmatprep.subr.mxu0 0.0
  %1126 = vmatpush1.msra.mxu0 %v913
  %1127 = vmatprep.subr.mxu0 0.0
  %1128 = vmatpush1.msra.mxu0 %v914
  %1129 = vmatprep.subr.mxu0 0.0
  %1130 = vmatpush1.msra.mxu0 0.0
  %1131 = vmatprep.subr.mxu0 0.0
  %1132 = vmatpush1.msra.mxu0 0.0
  %1133 = vmatprep.subr.mxu0 0.0
  %1134 = vmatpush1.msra.mxu0 0.0
  %1135 = vmatprep.subr.mxu0 0.0
  %1136 = vmatpush1.msra.mxu0 0.0
  %1137 = vmatprep.subr.mxu0 0.0
  %1138 = vmatpush1.msra.mxu0 0.0
  %1139 = vmatprep.subr.mxu0 0.0
  %1140 = vmatpush1.msra.mxu0 0.0
  %1141 = vmatprep.subr.mxu0 0.0
  %1142 = vmatpush1.msra.mxu0 0.0
  %1143 = vmatprep.subr.mxu0 0.0
  %1144 = vmatpush1.msra.mxu0 0.0
  %1145 = vmatprep.subr.mxu0 0.0
  %1146 = vmatpush1.msra.mxu0 0.0
  %1147 = vmatprep.subr.mxu0 0.0
  %1148 = vmatpush1.msra.mxu0 0.0
  %1149 = vmatprep.subr.mxu0 0.0
  %1150 = vmatpush1.msra.mxu0 0.0
  %1151 = vmatprep.subr.mxu0 0.0
  %1152 = vmatpush1.msra.mxu0 0.0
  %1153 = vmatprep.subr.mxu0 0.0
  %1154 = vmatpush1.msra.mxu0 0.0
  %1155 = vmatprep.subr.mxu0 0.0
  %1156 = vmatpush1.msra.mxu0 0.0
  %1157 = vmatprep.subr.mxu0 0.0
  %1158 = vmatpush1.msra.mxu0 0.0
  %1159 = vmatprep.subr.mxu0 0.0
  %1160 = vmatpush1.msra.mxu0 0.0
  %1161 = vmatprep.subr.mxu0 0.0
  %1162 = vmatpush1.msra.mxu0 0.0
  %1163 = vmatprep.subr.mxu0 0.0
  %1164 = vmatpush1.msra.mxu0 0.0
  %1165 = vmatprep.subr.mxu0 0.0
  %1166 = vmatpush1.msra.mxu0 0.0
  %1167 = vmatprep.subr.mxu0 0.0
  %1168 = vmatpush1.msra.mxu0 0.0
  %1169 = vmatprep.subr.mxu0 0.0
  %1170 = vmatpush1.msra.mxu0 0.0
  %1171 = vmatprep.subr.mxu0 0.0
  %1172 = vmatpush1.msra.mxu0 0.0
  %1173 = vmatprep.subr.mxu0 0.0
  %1174 = vmatpush1.msra.mxu0 0.0
  %1175 = vmatprep.subr.mxu0 0.0
  %1176 = vmatpush1.msra.mxu0 0.0
  %1177 = vmatprep.subr.mxu0 0.0
  %1178 = vmatpush1.msra.mxu0 0.0
  %1179 = vmatprep.subr.mxu0 0.0
  %1180 = vmatpush1.msra.mxu0 0.0
  %1181 = vmatprep.subr.mxu0 0.0
  %1182 = vmatpush1.msra.mxu0 0.0
  %1183 = vmatprep.subr.mxu0 0.0
  %1184 = vmatpush1.msra.mxu0 0.0
  %1185 = vmatprep.subr.mxu0 0.0
  %1186 = vmatpush1.msra.mxu0 0.0
  %1187 = vmatprep.subr.mxu0 0.0
  %1188 = vmatpush1.msra.mxu0 0.0
  %1189 = vmatprep.mubr.f32.mxu0 0.0
  %1190 = vmatmul.mubr.f32.gmra.mrb[0].mxu0 %v152
  %v1191 = vpop.f32.mrb[0].mxu0
  %v1192 = vadd.f32 %v1122, %v1191
  %v1193 = vpop.f32.mrb[0].mxu0
  %1194 = vdwg.mxu0
  %v1195 = vmax.f32 %v1192, 0.0
  %v1196 = vmax.f32 %v815, %v1195
  %s1197 = scalar_lea.vmem %s1, 2352
  %v1198 = vld [vmem:[%s1197] sm:$0xff]
  %v1199 = vld [vmem:[%s1197 + $0x8] sm:$0xff]
  %v1200 = vld [vmem:[%s1197 + $0x10] sm:$0xff]
  %v1201 = vld [vmem:[%s1197 + $0x18] sm:$0xff]
  %v1202 = vld [vmem:[%s1197 + $0x20] sm:$0xff]
  %v1203 = vld [vmem:[%s1197 + $0x28] sm:$0xff]
  %v1204 = vld [vmem:[%s1197 + $0x30] sm:$0xff]
  %v1205 = vld [vmem:[%s1197 + $0x38] sm:$0xff]
  %v1206 = vld [vmem:[%s1197 + $0x40] sm:$0xff]
  %v1207 = vld [vmem:[%s1197 + $0x48] sm:$0xff]
  %v1208 = vld [vmem:[%s1197 + $0x50] sm:$0xff]
  %v1209 = vld [vmem:[%s1197 + $0x58] sm:$0xff]
  %v1210 = vld [vmem:[%s1197 + $0x60] sm:$0xff]
  %v1211 = vld [vmem:[%s1197 + $0x68] sm:$0xff]
  %v1212 = vld [vmem:[%s1197 + $0x70] sm:$0xff]
  %v1213 = vld [vmem:[%s1197 + $0x78] sm:$0xff]
  %v1214 = vld [vmem:[%s1197 + $0x80] sm:$0xff]
  %v1215 = vld [vmem:[%s1197 + $0x88] sm:$0xff]
  %v1216 = vld [vmem:[%s1197 + $0x90] sm:$0xff]
  %v1217 = vld [vmem:[%s1197 + $0x98] sm:$0xff]
  %v1218 = vld [vmem:[%s1197 + $0xa0] sm:$0xff]
  %v1219 = vld [vmem:[%s1197 + $0xa8] sm:$0xff]
  %v1220 = vld [vmem:[%s1197 + $0xb0] sm:$0xff]
  %v1221 = vld [vmem:[%s1197 + $0xb8] sm:$0xff]
  %v1222 = vld [vmem:[%s1197 + $0xc0] sm:$0xff]
  %v1223 = vld [vmem:[%s1197 + $0xc8] sm:$0xff]
  %v1224 = vld [vmem:[%s1197 + $0xd0] sm:$0xff]
  %v1225 = vld [vmem:[%s1197 + $0xd8] sm:$0xff]
  %v1226 = vld [vmem:[%s1197 + $0xe0] sm:$0xff]
  %v1227 = vld [vmem:[%s1197 + $0xe8] sm:$0xff]
  %v1228 = vld [vmem:[%s1197 + $0xf0] sm:$0xff]
  %v1229 = vld [vmem:[%s1197 + $0xf8] sm:$0xff]
  %v1230 = vld [vmem:[%s1197 + $0x100] sm:$0xff]
  %v1231 = vld [vmem:[%s1197 + $0x108] sm:$0xff]
  %v1232 = vld [vmem:[%s1197 + $0x110] sm:$0xff]
  %v1233 = vld [vmem:[%s1197 + $0x118] sm:$0xff]
  %v1234 = vld [vmem:[%s1197 + $0x120] sm:$0xff]
  %v1235 = vld [vmem:[%s1197 + $0x128] sm:$0xff]
  %v1236 = vld [vmem:[%s1197 + $0x130] sm:$0xff]
  %v1237 = vld [vmem:[%s1197 + $0x138] sm:$0xff]
  %v1238 = vld [vmem:[%s1197 + $0x140] sm:$0xff]
  %v1239 = vld [vmem:[%s1197 + $0x148] sm:$0xff]
  %v1240 = vld [vmem:[%s1197 + $0x150] sm:$0xff]
  %v1241 = vld [vmem:[%s1197 + $0x158] sm:$0xff]
  %v1242 = vld [vmem:[%s1197 + $0x160] sm:$0xff]
  %v1243 = vld [vmem:[%s1197 + $0x168] sm:$0xff]
  %v1244 = vld [vmem:[%s1197 + $0x170] sm:$0xff]
  %v1245 = vld [vmem:[%s1197 + $0x178] sm:$0xff]
  %v1246 = vld [vmem:[%s1197 + $0x180] sm:$0xff]
  %v1247 = vld [vmem:[%s1197 + $0x188] sm:$0xff]
  %v1248 = vld [vmem:[%s1197 + $0x190] sm:$0xff]
  %v1249 = vld [vmem:[%s1197 + $0x198] sm:$0xff]
  %v1250 = vld [vmem:[%s1197 + $0x1a0] sm:$0xff]
  %v1251 = vld [vmem:[%s1197 + $0x1a8] sm:$0xff]
  %v1252 = vld [vmem:[%s1197 + $0x1b0] sm:$0xff]
  %v1253 = vld [vmem:[%s1197 + $0x1b8] sm:$0xff]
  %v1254 = vld [vmem:[%s1197 + $0x1c0] sm:$0xff]
  %v1255 = vld [vmem:[%s1197 + $0x1c8] sm:$0xff]
  %v1256 = vld [vmem:[%s1197 + $0x1d0] sm:$0xff]
  %v1257 = vld [vmem:[%s1197 + $0x1d8] sm:$0xff]
  %v1258 = vld [vmem:[%s1197 + $0x1e0] sm:$0xff]
  %v1259 = vld [vmem:[%s1197 + $0x1e8] sm:$0xff]
  %v1260 = vld [vmem:[%s1197 + $0x1f0] sm:$0xff]
  %v1261 = vld [vmem:[%s1197 + $0x1f8] sm:$0xff]
  %v1262 = vld [vmem:[%s1197 + $0x200] sm:$0xff]
  %v1263 = vld [vmem:[%s1197 + $0x208] sm:$0xff]
  %v1264 = vld [vmem:[%s1197 + $0x210] sm:$0xff]
  %v1265 = vld [vmem:[%s1197 + $0x218] sm:$0xff]
  %v1266 = vld [vmem:[%s1197 + $0x220] sm:$0xff]
  %v1267 = vld [vmem:[%s1197 + $0x228] sm:$0xff]
  %v1268 = vld [vmem:[%s1197 + $0x230] sm:$0xff]
  %v1269 = vld [vmem:[%s1197 + $0x238] sm:$0xff]
  %v1270 = vld [vmem:[%s1197 + $0x240] sm:$0xff]
  %v1271 = vld [vmem:[%s1197 + $0x248] sm:$0xff]
  %v1272 = vld [vmem:[%s1197 + $0x250] sm:$0xff]
  %v1273 = vld [vmem:[%s1197 + $0x258] sm:$0xff]
  %v1274 = vld [vmem:[%s1197 + $0x260] sm:$0xff]
  %v1275 = vld [vmem:[%s1197 + $0x268] sm:$0xff]
  %v1276 = vld [vmem:[%s1197 + $0x270] sm:$0xff]
  %v1277 = vld [vmem:[%s1197 + $0x278] sm:$0xff]
  %v1278 = vld [vmem:[%s1197 + $0x280] sm:$0xff]
  %v1279 = vld [vmem:[%s1197 + $0x288] sm:$0xff]
  %v1280 = vld [vmem:[%s1197 + $0x290] sm:$0xff]
  %v1281 = vld [vmem:[%s1197 + $0x298] sm:$0xff]
  %v1282 = vld [vmem:[%s1197 + $0x2a0] sm:$0xff]
  %v1283 = vld [vmem:[%s1197 + $0x2a8] sm:$0xff]
  %v1284 = vld [vmem:[%s1197 + $0x2b0] sm:$0xff]
  %v1285 = vld [vmem:[%s1197 + $0x2b8] sm:$0xff]
  %v1286 = vld [vmem:[%s1197 + $0x2c0] sm:$0xff]
  %v1287 = vld [vmem:[%s1197 + $0x2c8] sm:$0xff]
  %v1288 = vld [vmem:[%s1197 + $0x2d0] sm:$0xff]
  %v1289 = vld [vmem:[%s1197 + $0x2d8] sm:$0xff]
  %v1290 = vld [vmem:[%s1197 + $0x2e0] sm:$0xff]
  %v1291 = vld [vmem:[%s1197 + $0x2e8] sm:$0xff]
  %v1292 = vld [vmem:[%s1197 + $0x2f0] sm:$0xff]
  %v1293 = vld [vmem:[%s1197 + $0x2f8] sm:$0xff]
  %v1294 = vld [vmem:[%s1197 + $0x300] sm:$0xff]
  %v1295 = vld [vmem:[%s1197 + $0x308] sm:$0xff]
  %1296 = vmatprep.subr.mxu0 0.0
  %1297 = vmatpush1.msra.mxu0 %v1198
  %1298 = vmatprep.subr.mxu0 0.0
  %1299 = vmatpush1.msra.mxu0 %v1199
  %1300 = vmatprep.subr.mxu0 0.0
  %1301 = vmatpush1.msra.mxu0 %v1200
  %1302 = vmatprep.subr.mxu0 0.0
  %1303 = vmatpush1.msra.mxu0 %v1201
  %1304 = vmatprep.subr.mxu0 0.0
  %1305 = vmatpush1.msra.mxu0 %v1202
  %1306 = vmatprep.subr.mxu0 0.0
  %1307 = vmatpush1.msra.mxu0 %v1203
  %1308 = vmatprep.subr.mxu0 0.0
  %1309 = vmatpush1.msra.mxu0 %v1204
  %1310 = vmatprep.subr.mxu0 0.0
  %1311 = vmatpush1.msra.mxu0 %v1205
  %1312 = vmatprep.subr.mxu0 0.0
  %1313 = vmatpush1.msra.mxu0 %v1206
  %1314 = vmatprep.subr.mxu0 0.0
  %1315 = vmatpush1.msra.mxu0 %v1207
  %1316 = vmatprep.subr.mxu0 0.0
  %1317 = vmatpush1.msra.mxu0 %v1208
  %1318 = vmatprep.subr.mxu0 0.0
  %1319 = vmatpush1.msra.mxu0 %v1209
  %1320 = vmatprep.subr.mxu0 0.0
  %1321 = vmatpush1.msra.mxu0 %v1210
  %1322 = vmatprep.subr.mxu0 0.0
  %1323 = vmatpush1.msra.mxu0 %v1211
  %1324 = vmatprep.subr.mxu0 0.0
  %1325 = vmatpush1.msra.mxu0 %v1212
  %1326 = vmatprep.subr.mxu0 0.0
  %1327 = vmatpush1.msra.mxu0 %v1213
  %1328 = vmatprep.subr.mxu0 0.0
  %1329 = vmatpush1.msra.mxu0 %v1214
  %1330 = vmatprep.subr.mxu0 0.0
  %1331 = vmatpush1.msra.mxu0 %v1215
  %1332 = vmatprep.subr.mxu0 0.0
  %1333 = vmatpush1.msra.mxu0 %v1216
  %1334 = vmatprep.subr.mxu0 0.0
  %1335 = vmatpush1.msra.mxu0 %v1217
  %1336 = vmatprep.subr.mxu0 0.0
  %1337 = vmatpush1.msra.mxu0 %v1218
  %1338 = vmatprep.subr.mxu0 0.0
  %1339 = vmatpush1.msra.mxu0 %v1219
  %1340 = vmatprep.subr.mxu0 0.0
  %1341 = vmatpush1.msra.mxu0 %v1220
  %1342 = vmatprep.subr.mxu0 0.0
  %1343 = vmatpush1.msra.mxu0 %v1221
  %1344 = vmatprep.subr.mxu0 0.0
  %1345 = vmatpush1.msra.mxu0 %v1222
  %1346 = vmatprep.subr.mxu0 0.0
  %1347 = vmatpush1.msra.mxu0 %v1223
  %1348 = vmatprep.subr.mxu0 0.0
  %1349 = vmatpush1.msra.mxu0 %v1224
  %1350 = vmatprep.subr.mxu0 0.0
  %1351 = vmatpush1.msra.mxu0 %v1225
  %1352 = vmatprep.subr.mxu0 0.0
  %1353 = vmatpush1.msra.mxu0 %v1226
  %1354 = vmatprep.subr.mxu0 0.0
  %1355 = vmatpush1.msra.mxu0 %v1227
  %1356 = vmatprep.subr.mxu0 0.0
  %1357 = vmatpush1.msra.mxu0 %v1228
  %1358 = vmatprep.subr.mxu0 0.0
  %1359 = vmatpush1.msra.mxu0 %v1229
  %1360 = vmatprep.mubr.f32.mxu0 %v39
  %1361 = vmatmul.mubr.f32.gmra.mrb[0].mxu0 %v38
  %v1362 = vpop.f32.mrb[0].mxu0
  %v1363 = vadd.f32 %v148, %v1362
  %v1364 = vpop.f32.mrb[0].mxu0
  %1365 = vdwg.mxu0
  %1366 = vmatprep.subr.mxu0 0.0
  %1367 = vmatpush1.msra.mxu0 %v1230
  %1368 = vmatprep.subr.mxu0 0.0
  %1369 = vmatpush1.msra.mxu0 %v1231
  %1370 = vmatprep.subr.mxu0 0.0
  %1371 = vmatpush1.msra.mxu0 %v1232
  %1372 = vmatprep.subr.mxu0 0.0
  %1373 = vmatpush1.msra.mxu0 %v1233
  %1374 = vmatprep.subr.mxu0 0.0
  %1375 = vmatpush1.msra.mxu0 %v1234
  %1376 = vmatprep.subr.mxu0 0.0
  %1377 = vmatpush1.msra.mxu0 %v1235
  %1378 = vmatprep.subr.mxu0 0.0
  %1379 = vmatpush1.msra.mxu0 %v1236
  %1380 = vmatprep.subr.mxu0 0.0
  %1381 = vmatpush1.msra.mxu0 %v1237
  %1382 = vmatprep.subr.mxu0 0.0
  %1383 = vmatpush1.msra.mxu0 %v1238
  %1384 = vmatprep.subr.mxu0 0.0
  %1385 = vmatpush1.msra.mxu0 %v1239
  %1386 = vmatprep.subr.mxu0 0.0
  %1387 = vmatpush1.msra.mxu0 %v1240
  %1388 = vmatprep.subr.mxu0 0.0
  %1389 = vmatpush1.msra.mxu0 %v1241
  %1390 = vmatprep.subr.mxu0 0.0
  %1391 = vmatpush1.msra.mxu0 %v1242
  %1392 = vmatprep.subr.mxu0 0.0
  %1393 = vmatpush1.msra.mxu0 %v1243
  %1394 = vmatprep.subr.mxu0 0.0
  %1395 = vmatpush1.msra.mxu0 %v1244
  %1396 = vmatprep.subr.mxu0 0.0
  %1397 = vmatpush1.msra.mxu0 %v1245
  %1398 = vmatprep.subr.mxu0 0.0
  %1399 = vmatpush1.msra.mxu0 %v1246
  %1400 = vmatprep.subr.mxu0 0.0
  %1401 = vmatpush1.msra.mxu0 %v1247
  %1402 = vmatprep.subr.mxu0 0.0
  %1403 = vmatpush1.msra.mxu0 %v1248
  %1404 = vmatprep.subr.mxu0 0.0
  %1405 = vmatpush1.msra.mxu0 %v1249
  %1406 = vmatprep.subr.mxu0 0.0
  %1407 = vmatpush1.msra.mxu0 %v1250
  %1408 = vmatprep.subr.mxu0 0.0
  %1409 = vmatpush1.msra.mxu0 %v1251
  %1410 = vmatprep.subr.mxu0 0.0
  %1411 = vmatpush1.msra.mxu0 %v1252
  %1412 = vmatprep.subr.mxu0 0.0
  %1413 = vmatpush1.msra.mxu0 %v1253
  %1414 = vmatprep.subr.mxu0 0.0
  %1415 = vmatpush1.msra.mxu0 %v1254
  %1416 = vmatprep.subr.mxu0 0.0
  %1417 = vmatpush1.msra.mxu0 %v1255
  %1418 = vmatprep.subr.mxu0 0.0
  %1419 = vmatpush1.msra.mxu0 %v1256
  %1420 = vmatprep.subr.mxu0 0.0
  %1421 = vmatpush1.msra.mxu0 %v1257
  %1422 = vmatprep.subr.mxu0 0.0
  %1423 = vmatpush1.msra.mxu0 %v1258
  %1424 = vmatprep.subr.mxu0 0.0
  %1425 = vmatpush1.msra.mxu0 %v1259
  %1426 = vmatprep.subr.mxu0 0.0
  %1427 = vmatpush1.msra.mxu0 %v1260
  %1428 = vmatprep.subr.mxu0 0.0
  %1429 = vmatpush1.msra.mxu0 %v1261
  %1430 = vmatprep.mubr.f32.mxu0 %v41
  %1431 = vmatmul.mubr.f32.gmra.mrb[0].mxu0 %v40
  %v1432 = vpop.f32.mrb[0].mxu0
  %v1433 = vadd.f32 %v1363, %v1432
  %v1434 = vpop.f32.mrb[0].mxu0
  %1435 = vdwg.mxu0
  %1436 = vmatprep.subr.mxu0 0.0
  %1437 = vmatpush1.msra.mxu0 %v1262
  %1438 = vmatprep.subr.mxu0 0.0
  %1439 = vmatpush1.msra.mxu0 %v1263
  %1440 = vmatprep.subr.mxu0 0.0
  %1441 = vmatpush1.msra.mxu0 %v1264
  %1442 = vmatprep.subr.mxu0 0.0
  %1443 = vmatpush1.msra.mxu0 %v1265
  %1444 = vmatprep.subr.mxu0 0.0
  %1445 = vmatpush1.msra.mxu0 %v1266
  %1446 = vmatprep.subr.mxu0 0.0
  %1447 = vmatpush1.msra.mxu0 %v1267
  %1448 = vmatprep.subr.mxu0 0.0
  %1449 = vmatpush1.msra.mxu0 %v1268
  %1450 = vmatprep.subr.mxu0 0.0
  %1451 = vmatpush1.msra.mxu0 %v1269
  %1452 = vmatprep.subr.mxu0 0.0
  %1453 = vmatpush1.msra.mxu0 %v1270
  %1454 = vmatprep.subr.mxu0 0.0
  %1455 = vmatpush1.msra.mxu0 %v1271
  %1456 = vmatprep.subr.mxu0 0.0
  %1457 = vmatpush1.msra.mxu0 %v1272
  %1458 = vmatprep.subr.mxu0 0.0
  %1459 = vmatpush1.msra.mxu0 %v1273
  %1460 = vmatprep.subr.mxu0 0.0
  %1461 = vmatpush1.msra.mxu0 %v1274
  %1462 = vmatprep.subr.mxu0 0.0
  %1463 = vmatpush1.msra.mxu0 %v1275
  %1464 = vmatprep.subr.mxu0 0.0
  %1465 = vmatpush1.msra.mxu0 %v1276
  %1466 = vmatprep.subr.mxu0 0.0
  %1467 = vmatpush1.msra.mxu0 %v1277
  %1468 = vmatprep.subr.mxu0 0.0
  %1469 = vmatpush1.msra.mxu0 %v1278
  %1470 = vmatprep.subr.mxu0 0.0
  %1471 = vmatpush1.msra.mxu0 %v1279
  %1472 = vmatprep.subr.mxu0 0.0
  %1473 = vmatpush1.msra.mxu0 %v1280
  %1474 = vmatprep.subr.mxu0 0.0
  %1475 = vmatpush1.msra.mxu0 %v1281
  %1476 = vmatprep.subr.mxu0 0.0
  %1477 = vmatpush1.msra.mxu0 %v1282
  %1478 = vmatprep.subr.mxu0 0.0
  %1479 = vmatpush1.msra.mxu0 %v1283
  %1480 = vmatprep.subr.mxu0 0.0
  %1481 = vmatpush1.msra.mxu0 %v1284
  %1482 = vmatprep.subr.mxu0 0.0
  %1483 = vmatpush1.msra.mxu0 %v1285
  %1484 = vmatprep.subr.mxu0 0.0
  %1485 = vmatpush1.msra.mxu0 %v1286
  %1486 = vmatprep.subr.mxu0 0.0
  %1487 = vmatpush1.msra.mxu0 %v1287
  %1488 = vmatprep.subr.mxu0 0.0
  %1489 = vmatpush1.msra.mxu0 %v1288
  %1490 = vmatprep.subr.mxu0 0.0
  %1491 = vmatpush1.msra.mxu0 %v1289
  %1492 = vmatprep.subr.mxu0 0.0
  %1493 = vmatpush1.msra.mxu0 %v1290
  %1494 = vmatprep.subr.mxu0 0.0
  %1495 = vmatpush1.msra.mxu0 %v1291
  %1496 = vmatprep.subr.mxu0 0.0
  %1497 = vmatpush1.msra.mxu0 %v1292
  %1498 = vmatprep.subr.mxu0 0.0
  %1499 = vmatpush1.msra.mxu0 %v1293
  %1500 = vmatprep.mubr.f32.mxu0 %v43
  %1501 = vmatmul.mubr.f32.gmra.mrb[0].mxu0 %v42
  %v1502 = vpop.f32.mrb[0].mxu0
  %v1503 = vadd.f32 %v1433, %v1502
  %v1504 = vpop.f32.mrb[0].mxu0
  %1505 = vdwg.mxu0
  %1506 = vmatprep.subr.mxu0 0.0
  %1507 = vmatpush1.msra.mxu0 %v1294
  %1508 = vmatprep.subr.mxu0 0.0
  %1509 = vmatpush1.msra.mxu0 %v1295
  %1510 = vmatprep.subr.mxu0 0.0
  %1511 = vmatpush1.msra.mxu0 0.0
  %1512 = vmatprep.subr.mxu0 0.0
  %1513 = vmatpush1.msra.mxu0 0.0
  %1514 = vmatprep.subr.mxu0 0.0
  %1515 = vmatpush1.msra.mxu0 0.0
  %1516 = vmatprep.subr.mxu0 0.0
  %1517 = vmatpush1.msra.mxu0 0.0
  %1518 = vmatprep.subr.mxu0 0.0
  %1519 = vmatpush1.msra.mxu0 0.0
  %1520 = vmatprep.subr.mxu0 0.0
  %1521 = vmatpush1.msra.mxu0 0.0
  %1522 = vmatprep.subr.mxu0 0.0
  %1523 = vmatpush1.msra.mxu0 0.0
  %1524 = vmatprep.subr.mxu0 0.0
  %1525 = vmatpush1.msra.mxu0 0.0
  %1526 = vmatprep.subr.mxu0 0.0
  %1527 = vmatpush1.msra.mxu0 0.0
  %1528 = vmatprep.subr.mxu0 0.0
  %1529 = vmatpush1.msra.mxu0 0.0
  %1530 = vmatprep.subr.mxu0 0.0
  %1531 = vmatpush1.msra.mxu0 0.0
  %1532 = vmatprep.subr.mxu0 0.0
  %1533 = vmatpush1.msra.mxu0 0.0
  %1534 = vmatprep.subr.mxu0 0.0
  %1535 = vmatpush1.msra.mxu0 0.0
  %1536 = vmatprep.subr.mxu0 0.0
  %1537 = vmatpush1.msra.mxu0 0.0
  %1538 = vmatprep.subr.mxu0 0.0
  %1539 = vmatpush1.msra.mxu0 0.0
  %1540 = vmatprep.subr.mxu0 0.0
  %1541 = vmatpush1.msra.mxu0 0.0
  %1542 = vmatprep.subr.mxu0 0.0
  %1543 = vmatpush1.msra.mxu0 0.0
  %1544 = vmatprep.subr.mxu0 0.0
  %1545 = vmatpush1.msra.mxu0 0.0
  %1546 = vmatprep.subr.mxu0 0.0
  %1547 = vmatpush1.msra.mxu0 0.0
  %1548 = vmatprep.subr.mxu0 0.0
  %1549 = vmatpush1.msra.mxu0 0.0
  %1550 = vmatprep.subr.mxu0 0.0
  %1551 = vmatpush1.msra.mxu0 0.0
  %1552 = vmatprep.subr.mxu0 0.0
  %1553 = vmatpush1.msra.mxu0 0.0
  %1554 = vmatprep.subr.mxu0 0.0
  %1555 = vmatpush1.msra.mxu0 0.0
  %1556 = vmatprep.subr.mxu0 0.0
  %1557 = vmatpush1.msra.mxu0 0.0
  %1558 = vmatprep.subr.mxu0 0.0
  %1559 = vmatpush1.msra.mxu0 0.0
  %1560 = vmatprep.subr.mxu0 0.0
  %1561 = vmatpush1.msra.mxu0 0.0
  %1562 = vmatprep.subr.mxu0 0.0
  %1563 = vmatpush1.msra.mxu0 0.0
  %1564 = vmatprep.subr.mxu0 0.0
  %1565 = vmatpush1.msra.mxu0 0.0
  %1566 = vmatprep.subr.mxu0 0.0
  %1567 = vmatpush1.msra.mxu0 0.0
  %1568 = vmatprep.subr.mxu0 0.0
  %1569 = vmatpush1.msra.mxu0 0.0
  %1570 = vmatprep.mubr.f32.mxu0 0.0
  %1571 = vmatmul.mubr.f32.gmra.mrb[0].mxu0 %v152
  %v1572 = vpop.f32.mrb[0].mxu0
  %v1573 = vadd.f32 %v1503, %v1572
  %v1574 = vpop.f32.mrb[0].mxu0
  %1575 = vdwg.mxu0
  %v1576 = vmax.f32 %v1573, 0.0
  %v1577 = vmax.f32 %v1196, %v1576
  %v1578 = vld [vmem:[%s4] sm:$0x1]
  %v1579 = vld [vmem:[%s3] sm:$0xff]
  %v1580 = vld [vmem:[%s3 + $0x8] sm:$0xff]
  %v1581 = vld [vmem:[%s3 + $0x10] sm:$0xff]
  %v1582 = vld [vmem:[%s3 + $0x18] sm:$0xff]
  %v1583 = vld [vmem:[%s3 + $0x20] sm:$0xff]
  %v1584 = vld [vmem:[%s3 + $0x28] sm:$0xff]
  %v1585 = vld [vmem:[%s3 + $0x30] sm:$0xff]
  %v1586 = vld [vmem:[%s3 + $0x38] sm:$0xff]
  %v1587 = vld [vmem:[%s3 + $0x40] sm:$0xff]
  %v1588 = vld [vmem:[%s3 + $0x48] sm:$0xff]
  %v1589 = vld [vmem:[%s3 + $0x50] sm:$0xff]
  %v1590 = vld [vmem:[%s3 + $0x58] sm:$0xff]
  %v1591 = vld [vmem:[%s3 + $0x60] sm:$0xf]
  %v1593 = vlaneseq
  %v1594 = vshrl.u32 %v1593, 7
  %v1595 = vsub.s32 0, %v1594
  %v1596 = vrot.slane %v1578, %v1595
  %vm1598 = vcmask 818176
  %v1600 = vsel %vm1598, %v1577, 0
  %vm1602 = vcmask 1043456
  %v1604 = vsel %vm1602, %v1591, 0
  %1606 = vmatprep.subr.mxu0 0.0
  %1607 = vmatpush1.msra.mxu0 %v1579
  %1608 = vmatprep.subr.mxu0 0.0
  %1609 = vmatpush1.msra.mxu0 %v1580
  %1610 = vmatprep.subr.mxu0 0.0
  %1611 = vmatpush1.msra.mxu0 %v1581
  %1612 = vmatprep.subr.mxu0 0.0
  %1613 = vmatpush1.msra.mxu0 %v1582
  %1614 = vmatprep.subr.mxu0 0.0
  %1615 = vmatpush1.msra.mxu0 %v1583
  %1616 = vmatprep.subr.mxu0 0.0
  %1617 = vmatpush1.msra.mxu0 %v1584
  %1618 = vmatprep.subr.mxu0 0.0
  %1619 = vmatpush1.msra.mxu0 %v1585
  %1620 = vmatprep.subr.mxu0 0.0
  %1621 = vmatpush1.msra.mxu0 %v1586
  %1622 = vmatprep.subr.mxu0 0.0
  %1623 = vmatpush1.msra.mxu0 %v1587
  %1624 = vmatprep.subr.mxu0 0.0
  %1625 = vmatpush1.msra.mxu0 %v1588
  %1626 = vmatprep.subr.mxu0 0.0
  %1627 = vmatpush1.msra.mxu0 %v1589
  %1628 = vmatprep.subr.mxu0 0.0
  %1629 = vmatpush1.msra.mxu0 %v1590
  %1630 = vmatprep.subr.mxu0 0.0
  %1631 = vmatpush1.msra.mxu0 %v1604
  %1632 = vmatprep.subr.mxu0 0.0
  %1633 = vmatpush1.msra.mxu0 0.0
  %1634 = vmatprep.subr.mxu0 0.0
  %1635 = vmatpush1.msra.mxu0 0.0
  %1636 = vmatprep.subr.mxu0 0.0
  %1637 = vmatpush1.msra.mxu0 0.0
  %1638 = vmatprep.subr.mxu0 0.0
  %1639 = vmatpush1.msra.mxu0 0.0
  %1640 = vmatprep.subr.mxu0 0.0
  %1641 = vmatpush1.msra.mxu0 0.0
  %1642 = vmatprep.subr.mxu0 0.0
  %1643 = vmatpush1.msra.mxu0 0.0
  %1644 = vmatprep.subr.mxu0 0.0
  %1645 = vmatpush1.msra.mxu0 0.0
  %1646 = vmatprep.subr.mxu0 0.0
  %1647 = vmatpush1.msra.mxu0 0.0
  %1648 = vmatprep.subr.mxu0 0.0
  %1649 = vmatpush1.msra.mxu0 0.0
  %1650 = vmatprep.subr.mxu0 0.0
  %1651 = vmatpush1.msra.mxu0 0.0
  %1652 = vmatprep.subr.mxu0 0.0
  %1653 = vmatpush1.msra.mxu0 0.0
  %1654 = vmatprep.subr.mxu0 0.0
  %1655 = vmatpush1.msra.mxu0 0.0
  %1656 = vmatprep.subr.mxu0 0.0
  %1657 = vmatpush1.msra.mxu0 0.0
  %1658 = vmatprep.subr.mxu0 0.0
  %1659 = vmatpush1.msra.mxu0 0.0
  %1660 = vmatprep.subr.mxu0 0.0
  %1661 = vmatpush1.msra.mxu0 0.0
  %1662 = vmatprep.subr.mxu0 0.0
  %1663 = vmatpush1.msra.mxu0 0.0
  %1664 = vmatprep.subr.mxu0 0.0
  %1665 = vmatpush1.msra.mxu0 0.0
  %1666 = vmatprep.subr.mxu0 0.0
  %1667 = vmatpush1.msra.mxu0 0.0
  %1668 = vmatprep.subr.mxu0 0.0
  %1669 = vmatpush1.msra.mxu0 0.0
  %1670 = vmatprep.mubr.f32.mxu0 0.0
  %1671 = vmatmul.mubr.f32.gmra.mrb[0].mxu0 %v1600
  %v1672 = vpop.f32.mrb[0].mxu0
  %v1673 = vadd.f32 %v1596, %v1672
  %v1674 = vpop.f32.mrb[0].mxu0
  %1675 = vdwg.mxu0
  %v1676 = vmax.f32 %v1673, 0.0
  %s1677 = scalar_lea.vmem %s3, 104
  %v1678 = vld [vmem:[%s1677] sm:$0xff]
  %v1679 = vld [vmem:[%s1677 + $0x8] sm:$0xff]
  %v1680 = vld [vmem:[%s1677 + $0x10] sm:$0xff]
  %v1681 = vld [vmem:[%s1677 + $0x18] sm:$0xff]
  %v1682 = vld [vmem:[%s1677 + $0x20] sm:$0xff]
  %v1683 = vld [vmem:[%s1677 + $0x28] sm:$0xff]
  %v1684 = vld [vmem:[%s1677 + $0x30] sm:$0xff]
  %v1685 = vld [vmem:[%s1677 + $0x38] sm:$0xff]
  %v1686 = vld [vmem:[%s1677 + $0x40] sm:$0xff]
  %v1687 = vld [vmem:[%s1677 + $0x48] sm:$0xff]
  %v1688 = vld [vmem:[%s1677 + $0x50] sm:$0xff]
  %v1689 = vld [vmem:[%s1677 + $0x58] sm:$0xff]
  %v1690 = vld [vmem:[%s1677 + $0x60] sm:$0xf]
  %v1692 = vsel %vm1602, %v1690, 0
  %1694 = vmatprep.subr.mxu0 0.0
  %1695 = vmatpush1.msra.mxu0 %v1678
  %1696 = vmatprep.subr.mxu0 0.0
  %1697 = vmatpush1.msra.mxu0 %v1679
  %1698 = vmatprep.subr.mxu0 0.0
  %1699 = vmatpush1.msra.mxu0 %v1680
  %1700 = vmatprep.subr.mxu0 0.0
  %1701 = vmatpush1.msra.mxu0 %v1681
  %1702 = vmatprep.subr.mxu0 0.0
  %1703 = vmatpush1.msra.mxu0 %v1682
  %1704 = vmatprep.subr.mxu0 0.0
  %1705 = vmatpush1.msra.mxu0 %v1683
  %1706 = vmatprep.subr.mxu0 0.0
  %1707 = vmatpush1.msra.mxu0 %v1684
  %1708 = vmatprep.subr.mxu0 0.0
  %1709 = vmatpush1.msra.mxu0 %v1685
  %1710 = vmatprep.subr.mxu0 0.0
  %1711 = vmatpush1.msra.mxu0 %v1686
  %1712 = vmatprep.subr.mxu0 0.0
  %1713 = vmatpush1.msra.mxu0 %v1687
  %1714 = vmatprep.subr.mxu0 0.0
  %1715 = vmatpush1.msra.mxu0 %v1688
  %1716 = vmatprep.subr.mxu0 0.0
  %1717 = vmatpush1.msra.mxu0 %v1689
  %1718 = vmatprep.subr.mxu0 0.0
  %1719 = vmatpush1.msra.mxu0 %v1692
  %1720 = vmatprep.subr.mxu0 0.0
  %1721 = vmatpush1.msra.mxu0 0.0
  %1722 = vmatprep.subr.mxu0 0.0
  %1723 = vmatpush1.msra.mxu0 0.0
  %1724 = vmatprep.subr.mxu0 0.0
  %1725 = vmatpush1.msra.mxu0 0.0
  %1726 = vmatprep.subr.mxu0 0.0
  %1727 = vmatpush1.msra.mxu0 0.0
  %1728 = vmatprep.subr.mxu0 0.0
  %1729 = vmatpush1.msra.mxu0 0.0
  %1730 = vmatprep.subr.mxu0 0.0
  %1731 = vmatpush1.msra.mxu0 0.0
  %1732 = vmatprep.subr.mxu0 0.0
  %1733 = vmatpush1.msra.mxu0 0.0
  %1734 = vmatprep.subr.mxu0 0.0
  %1735 = vmatpush1.msra.mxu0 0.0
  %1736 = vmatprep.subr.mxu0 0.0
  %1737 = vmatpush1.msra.mxu0 0.0
  %1738 = vmatprep.subr.mxu0 0.0
  %1739 = vmatpush1.msra.mxu0 0.0
  %1740 = vmatprep.subr.mxu0 0.0
  %1741 = vmatpush1.msra.mxu0 0.0
  %1742 = vmatprep.subr.mxu0 0.0
  %1743 = vmatpush1.msra.mxu0 0.0
  %1744 = vmatprep.subr.mxu0 0.0
  %1745 = vmatpush1.msra.mxu0 0.0
  %1746 = vmatprep.subr.mxu0 0.0
  %1747 = vmatpush1.msra.mxu0 0.0
  %1748 = vmatprep.subr.mxu0 0.0
  %1749 = vmatpush1.msra.mxu0 0.0
  %1750 = vmatprep.subr.mxu0 0.0
  %1751 = vmatpush1.msra.mxu0 0.0
  %1752 = vmatprep.subr.mxu0 0.0
  %1753 = vmatpush1.msra.mxu0 0.0
  %1754 = vmatprep.subr.mxu0 0.0
  %1755 = vmatpush1.msra.mxu0 0.0
  %1756 = vmatprep.subr.mxu0 0.0
  %1757 = vmatpush1.msra.mxu0 0.0
  %1758 = vmatprep.mubr.f32.mxu0 0.0
  %1759 = vmatmul.mubr.f32.gmra.mrb[0].mxu0 %v1600
  %v1760 = vpop.f32.mrb[0].mxu0
  %v1761 = vadd.f32 %v1596, %v1760
  %v1762 = vpop.f32.mrb[0].mxu0
  %1763 = vdwg.mxu0
  %v1764 = vmax.f32 %v1761, 0.0
  %v1765 = vmax.f32 %v1676, %v1764
  %s1766 = scalar_lea.vmem %s3, 208
  %v1767 = vld [vmem:[%s1766] sm:$0xff]
  %v1768 = vld [vmem:[%s1766 + $0x8] sm:$0xff]
  %v1769 = vld [vmem:[%s1766 + $0x10] sm:$0xff]
  %v1770 = vld [vmem:[%s1766 + $0x18] sm:$0xff]
  %v1771 = vld [vmem:[%s1766 + $0x20] sm:$0xff]
  %v1772 = vld [vmem:[%s1766 + $0x28] sm:$0xff]
  %v1773 = vld [vmem:[%s1766 + $0x30] sm:$0xff]
  %v1774 = vld [vmem:[%s1766 + $0x38] sm:$0xff]
  %v1775 = vld [vmem:[%s1766 + $0x40] sm:$0xff]
  %v1776 = vld [vmem:[%s1766 + $0x48] sm:$0xff]
  %v1777 = vld [vmem:[%s1766 + $0x50] sm:$0xff]
  %v1778 = vld [vmem:[%s1766 + $0x58] sm:$0xff]
  %v1779 = vld [vmem:[%s1766 + $0x60] sm:$0xf]
  %v1781 = vsel %vm1602, %v1779, 0
  %1783 = vmatprep.subr.mxu0 0.0
  %1784 = vmatpush1.msra.mxu0 %v1767
  %1785 = vmatprep.subr.mxu0 0.0
  %1786 = vmatpush1.msra.mxu0 %v1768
  %1787 = vmatprep.subr.mxu0 0.0
  %1788 = vmatpush1.msra.mxu0 %v1769
  %1789 = vmatprep.subr.mxu0 0.0
  %1790 = vmatpush1.msra.mxu0 %v1770
  %1791 = vmatprep.subr.mxu0 0.0
  %1792 = vmatpush1.msra.mxu0 %v1771
  %1793 = vmatprep.subr.mxu0 0.0
  %1794 = vmatpush1.msra.mxu0 %v1772
  %1795 = vmatprep.subr.mxu0 0.0
  %1796 = vmatpush1.msra.mxu0 %v1773
  %1797 = vmatprep.subr.mxu0 0.0
  %1798 = vmatpush1.msra.mxu0 %v1774
  %1799 = vmatprep.subr.mxu0 0.0
  %1800 = vmatpush1.msra.mxu0 %v1775
  %1801 = vmatprep.subr.mxu0 0.0
  %1802 = vmatpush1.msra.mxu0 %v1776
  %1803 = vmatprep.subr.mxu0 0.0
  %1804 = vmatpush1.msra.mxu0 %v1777
  %1805 = vmatprep.subr.mxu0 0.0
  %1806 = vmatpush1.msra.mxu0 %v1778
  %1807 = vmatprep.subr.mxu0 0.0
  %1808 = vmatpush1.msra.mxu0 %v1781
  %1809 = vmatprep.subr.mxu0 0.0
  %1810 = vmatpush1.msra.mxu0 0.0
  %1811 = vmatprep.subr.mxu0 0.0
  %1812 = vmatpush1.msra.mxu0 0.0
  %1813 = vmatprep.subr.mxu0 0.0
  %1814 = vmatpush1.msra.mxu0 0.0
  %1815 = vmatprep.subr.mxu0 0.0
  %1816 = vmatpush1.msra.mxu0 0.0
  %1817 = vmatprep.subr.mxu0 0.0
  %1818 = vmatpush1.msra.mxu0 0.0
  %1819 = vmatprep.subr.mxu0 0.0
  %1820 = vmatpush1.msra.mxu0 0.0
  %1821 = vmatprep.subr.mxu0 0.0
  %1822 = vmatpush1.msra.mxu0 0.0
  %1823 = vmatprep.subr.mxu0 0.0
  %1824 = vmatpush1.msra.mxu0 0.0
  %1825 = vmatprep.subr.mxu0 0.0
  %1826 = vmatpush1.msra.mxu0 0.0
  %1827 = vmatprep.subr.mxu0 0.0
  %1828 = vmatpush1.msra.mxu0 0.0
  %1829 = vmatprep.subr.mxu0 0.0
  %1830 = vmatpush1.msra.mxu0 0.0
  %1831 = vmatprep.subr.mxu0 0.0
  %1832 = vmatpush1.msra.mxu0 0.0
  %1833 = vmatprep.subr.mxu0 0.0
  %1834 = vmatpush1.msra.mxu0 0.0
  %1835 = vmatprep.subr.mxu0 0.0
  %1836 = vmatpush1.msra.mxu0 0.0
  %1837 = vmatprep.subr.mxu0 0.0
  %1838 = vmatpush1.msra.mxu0 0.0
  %1839 = vmatprep.subr.mxu0 0.0
  %1840 = vmatpush1.msra.mxu0 0.0
  %1841 = vmatprep.subr.mxu0 0.0
  %1842 = vmatpush1.msra.mxu0 0.0
  %1843 = vmatprep.subr.mxu0 0.0
  %1844 = vmatpush1.msra.mxu0 0.0
  %1845 = vmatprep.subr.mxu0 0.0
  %1846 = vmatpush1.msra.mxu0 0.0
  %1847 = vmatprep.mubr.f32.mxu0 0.0
  %1848 = vmatmul.mubr.f32.gmra.mrb[0].mxu0 %v1600
  %v1849 = vpop.f32.mrb[0].mxu0
  %v1850 = vadd.f32 %v1596, %v1849
  %v1851 = vpop.f32.mrb[0].mxu0
  %1852 = vdwg.mxu0
  %v1853 = vmax.f32 %v1850, 0.0
  %v1854 = vmax.f32 %v1765, %v1853
  %s1855 = scalar_lea.vmem %s3, 312
  %v1856 = vld [vmem:[%s1855] sm:$0xff]
  %v1857 = vld [vmem:[%s1855 + $0x8] sm:$0xff]
  %v1858 = vld [vmem:[%s1855 + $0x10] sm:$0xff]
  %v1859 = vld [vmem:[%s1855 + $0x18] sm:$0xff]
  %v1860 = vld [vmem:[%s1855 + $0x20] sm:$0xff]
  %v1861 = vld [vmem:[%s1855 + $0x28] sm:$0xff]
  %v1862 = vld [vmem:[%s1855 + $0x30] sm:$0xff]
  %v1863 = vld [vmem:[%s1855 + $0x38] sm:$0xff]
  %v1864 = vld [vmem:[%s1855 + $0x40] sm:$0xff]
  %v1865 = vld [vmem:[%s1855 + $0x48] sm:$0xff]
  %v1866 = vld [vmem:[%s1855 + $0x50] sm:$0xff]
  %v1867 = vld [vmem:[%s1855 + $0x58] sm:$0xff]
  %v1868 = vld [vmem:[%s1855 + $0x60] sm:$0xf]
  %v1870 = vsel %vm1602, %v1868, 0
  %1872 = vmatprep.subr.mxu0 0.0
  %1873 = vmatpush1.msra.mxu0 %v1856
  %1874 = vmatprep.subr.mxu0 0.0
  %1875 = vmatpush1.msra.mxu0 %v1857
  %1876 = vmatprep.subr.mxu0 0.0
  %1877 = vmatpush1.msra.mxu0 %v1858
  %1878 = vmatprep.subr.mxu0 0.0
  %1879 = vmatpush1.msra.mxu0 %v1859
  %1880 = vmatprep.subr.mxu0 0.0
  %1881 = vmatpush1.msra.mxu0 %v1860
  %1882 = vmatprep.subr.mxu0 0.0
  %1883 = vmatpush1.msra.mxu0 %v1861
  %1884 = vmatprep.subr.mxu0 0.0
  %1885 = vmatpush1.msra.mxu0 %v1862
  %1886 = vmatprep.subr.mxu0 0.0
  %1887 = vmatpush1.msra.mxu0 %v1863
  %1888 = vmatprep.subr.mxu0 0.0
  %1889 = vmatpush1.msra.mxu0 %v1864
  %1890 = vmatprep.subr.mxu0 0.0
  %1891 = vmatpush1.msra.mxu0 %v1865
  %1892 = vmatprep.subr.mxu0 0.0
  %1893 = vmatpush1.msra.mxu0 %v1866
  %1894 = vmatprep.subr.mxu0 0.0
  %1895 = vmatpush1.msra.mxu0 %v1867
  %1896 = vmatprep.subr.mxu0 0.0
  %1897 = vmatpush1.msra.mxu0 %v1870
  %1898 = vmatprep.subr.mxu0 0.0
  %1899 = vmatpush1.msra.mxu0 0.0
  %1900 = vmatprep.subr.mxu0 0.0
  %1901 = vmatpush1.msra.mxu0 0.0
  %1902 = vmatprep.subr.mxu0 0.0
  %1903 = vmatpush1.msra.mxu0 0.0
  %1904 = vmatprep.subr.mxu0 0.0
  %1905 = vmatpush1.msra.mxu0 0.0
  %1906 = vmatprep.subr.mxu0 0.0
  %1907 = vmatpush1.msra.mxu0 0.0
  %1908 = vmatprep.subr.mxu0 0.0
  %1909 = vmatpush1.msra.mxu0 0.0
  %1910 = vmatprep.subr.mxu0 0.0
  %1911 = vmatpush1.msra.mxu0 0.0
  %1912 = vmatprep.subr.mxu0 0.0
  %1913 = vmatpush1.msra.mxu0 0.0
  %1914 = vmatprep.subr.mxu0 0.0
  %1915 = vmatpush1.msra.mxu0 0.0
  %1916 = vmatprep.subr.mxu0 0.0
  %1917 = vmatpush1.msra.mxu0 0.0
  %1918 = vmatprep.subr.mxu0 0.0
  %1919 = vmatpush1.msra.mxu0 0.0
  %1920 = vmatprep.subr.mxu0 0.0
  %1921 = vmatpush1.msra.mxu0 0.0
  %1922 = vmatprep.subr.mxu0 0.0
  %1923 = vmatpush1.msra.mxu0 0.0
  %1924 = vmatprep.subr.mxu0 0.0
  %1925 = vmatpush1.msra.mxu0 0.0
  %1926 = vmatprep.subr.mxu0 0.0
  %1927 = vmatpush1.msra.mxu0 0.0
  %1928 = vmatprep.subr.mxu0 0.0
  %1929 = vmatpush1.msra.mxu0 0.0
  %1930 = vmatprep.subr.mxu0 0.0
  %1931 = vmatpush1.msra.mxu0 0.0
  %1932 = vmatprep.subr.mxu0 0.0
  %1933 = vmatpush1.msra.mxu0 0.0
  %1934 = vmatprep.subr.mxu0 0.0
  %1935 = vmatpush1.msra.mxu0 0.0
  %1936 = vmatprep.mubr.f32.mxu0 0.0
  %1937 = vmatmul.mubr.f32.gmra.mrb[0].mxu0 %v1600
  %v1938 = vpop.f32.mrb[0].mxu0
  %v1939 = vadd.f32 %v1596, %v1938
  %v1940 = vpop.f32.mrb[0].mxu0
  %1941 = vdwg.mxu0
  %v1942 = vmax.f32 %v1939, 0.0
  %v1943 = vmax.f32 %v1854, %v1942
  %v1944 = vld [vmem:[%s5] sm:$0xff]
  %v1945 = vld [vmem:[%s6] sm:$0x1]
  %v1947 = vlaneseq
  %v1948 = vshrl.u32 %v1947, 7
  %v1949 = vsub.s32 0, %v1948
  %v1950 = vrot.slane %v1945, %v1949
  %vm1952 = vcmask 64512
  %v1954 = vsel %vm1952, %v1943, 0
  %1956 = vmatprep.subr.mxu0 0.0
  %1957 = vmatpush1.msra.mxu0 %v1944
  %1958 = vmatprep.subr.mxu0 0.0
  %1959 = vmatpush1.msra.mxu0 0.0
  %1960 = vmatprep.subr.mxu0 0.0
  %1961 = vmatpush1.msra.mxu0 0.0
  %1962 = vmatprep.subr.mxu0 0.0
  %1963 = vmatpush1.msra.mxu0 0.0
  %1964 = vmatprep.subr.mxu0 0.0
  %1965 = vmatpush1.msra.mxu0 0.0
  %1966 = vmatprep.subr.mxu0 0.0
  %1967 = vmatpush1.msra.mxu0 0.0
  %1968 = vmatprep.subr.mxu0 0.0
  %1969 = vmatpush1.msra.mxu0 0.0
  %1970 = vmatprep.subr.mxu0 0.0
  %1971 = vmatpush1.msra.mxu0 0.0
  %1972 = vmatprep.subr.mxu0 0.0
  %1973 = vmatpush1.msra.mxu0 0.0
  %1974 = vmatprep.subr.mxu0 0.0
  %1975 = vmatpush1.msra.mxu0 0.0
  %1976 = vmatprep.subr.mxu0 0.0
  %1977 = vmatpush1.msra.mxu0 0.0
  %1978 = vmatprep.subr.mxu0 0.0
  %1979 = vmatpush1.msra.mxu0 0.0
  %1980 = vmatprep.subr.mxu0 0.0
  %1981 = vmatpush1.msra.mxu0 0.0
  %1982 = vmatprep.subr.mxu0 0.0
  %1983 = vmatpush1.msra.mxu0 0.0
  %1984 = vmatprep.subr.mxu0 0.0
  %1985 = vmatpush1.msra.mxu0 0.0
  %1986 = vmatprep.subr.mxu0 0.0
  %1987 = vmatpush1.msra.mxu0 0.0
  %1988 = vmatprep.subr.mxu0 0.0
  %1989 = vmatpush1.msra.mxu0 0.0
  %1990 = vmatprep.subr.mxu0 0.0
  %1991 = vmatpush1.msra.mxu0 0.0
  %1992 = vmatprep.subr.mxu0 0.0
  %1993 = vmatpush1.msra.mxu0 0.0
  %1994 = vmatprep.subr.mxu0 0.0
  %1995 = vmatpush1.msra.mxu0 0.0
  %1996 = vmatprep.subr.mxu0 0.0
  %1997 = vmatpush1.msra.mxu0 0.0
  %1998 = vmatprep.subr.mxu0 0.0
  %1999 = vmatpush1.msra.mxu0 0.0
  %2000 = vmatprep.subr.mxu0 0.0
  %2001 = vmatpush1.msra.mxu0 0.0
  %2002 = vmatprep.subr.mxu0 0.0
  %2003 = vmatpush1.msra.mxu0 0.0
  %2004 = vmatprep.subr.mxu0 0.0
  %2005 = vmatpush1.msra.mxu0 0.0
  %2006 = vmatprep.subr.mxu0 0.0
  %2007 = vmatpush1.msra.mxu0 0.0
  %2008 = vmatprep.subr.mxu0 0.0
  %2009 = vmatpush1.msra.mxu0 0.0
  %2010 = vmatprep.subr.mxu0 0.0
  %2011 = vmatpush1.msra.mxu0 0.0
  %2012 = vmatprep.subr.mxu0 0.0
  %2013 = vmatpush1.msra.mxu0 0.0
  %2014 = vmatprep.subr.mxu0 0.0
  %2015 = vmatpush1.msra.mxu0 0.0
  %2016 = vmatprep.subr.mxu0 0.0
  %2017 = vmatpush1.msra.mxu0 0.0
  %2018 = vmatprep.subr.mxu0 0.0
  %2019 = vmatpush1.msra.mxu0 0.0
  %2020 = vmatprep.mubr.f32.mxu0 0.0
  %2021 = vmatmul.mubr.f32.gmra.mrb[0].mxu0 %v1954
  %v2022 = vpop.f32.mrb[0].mxu0
  %v2023 = vadd.f32 %v1950, %v2022
  %v2024 = vpop.f32.mrb[0].mxu0
  %2025 = vdwg.mxu0
  %v2026 = vmax.f32 %v2023, 0.0
  %v2027 = vld [vmem:[%s7] sm:$0xff]
  %v2028 = vld [vmem:[%s7 + $0x8] sm:$0xff]
  %v2029 = vld [vmem:[%s7 + $0x10] sm:$0xff]
  %v2030 = vld [vmem:[%s7 + $0x18] sm:$0xff]
  %v2031 = vld [vmem:[%s7 + $0x20] sm:$0xff]
  %v2032 = vld [vmem:[%s7 + $0x28] sm:$0xff]
  %v2033 = vld [vmem:[%s7 + $0x30] sm:$0xff]
  %v2034 = vld [vmem:[%s7 + $0x38] sm:$0xff]
  %v2035 = vld [vmem:[%s7 + $0x40] sm:$0xff]
  %v2036 = vld [vmem:[%s7 + $0x48] sm:$0xff]
  %v2037 = vld [vmem:[%s7 + $0x50] sm:$0xff]
  %v2038 = vld [vmem:[%s7 + $0x58] sm:$0xff]
  %v2039 = vld [vmem:[%s7 + $0x60] sm:$0xff]
  %v2040 = vld [vmem:[%s7 + $0x68] sm:$0xff]
  %v2041 = vld [vmem:[%s7 + $0x70] sm:$0xff]
  %v2042 = vld [vmem:[%s7 + $0x78] sm:$0xff]
  %v2043 = vld [vmem:[%s7 + $0x80] sm:$0xff]
  %v2044 = vld [vmem:[%s7 + $0x88] sm:$0xff]
  %v2045 = vld [vmem:[%s7 + $0x90] sm:$0xff]
  %v2046 = vld [vmem:[%s7 + $0x98] sm:$0xff]
  %v2047 = vld [vmem:[%s7 + $0xa0] sm:$0xff]
  %v2048 = vld [vmem:[%s7 + $0xa8] sm:$0xff]
  %v2049 = vld [vmem:[%s7 + $0xb0] sm:$0xff]
  %v2050 = vld [vmem:[%s7 + $0xb8] sm:$0xff]
  %v2051 = vld [vmem:[%s7 + $0xc0] sm:$0xff]
  %v2052 = vld [vmem:[%s7 + $0xc8] sm:$0xff]
  %v2053 = vld [vmem:[%s7 + $0xd0] sm:$0xff]
  %v2054 = vld [vmem:[%s7 + $0xd8] sm:$0xff]
  %v2055 = vld [vmem:[%s7 + $0xe0] sm:$0xff]
  %v2056 = vld [vmem:[%s7 + $0xe8] sm:$0xff]
  %v2057 = vld [vmem:[%s7 + $0xf0] sm:$0xff]
  %v2058 = vld [vmem:[%s7 + $0xf8] sm:$0xff]
  %v2059 = vld [vmem:[%s7 + $0x100] sm:$0xff]
  %v2060 = vld [vmem:[%s7 + $0x108] sm:$0xff]
  %v2061 = vld [vmem:[%s7 + $0x110] sm:$0xff]
  %v2062 = vld [vmem:[%s7 + $0x118] sm:$0xff]
  %v2063 = vld [vmem:[%s7 + $0x120] sm:$0xff]
  %v2064 = vld [vmem:[%s7 + $0x128] sm:$0xff]
  %v2065 = vld [vmem:[%s7 + $0x130] sm:$0xff]
  %v2066 = vld [vmem:[%s7 + $0x138] sm:$0xff]
  %v2067 = vld [vmem:[%s7 + $0x140] sm:$0xff]
  %v2068 = vld [vmem:[%s7 + $0x148] sm:$0xff]
  %v2069 = vld [vmem:[%s7 + $0x150] sm:$0xff]
  %v2070 = vld [vmem:[%s7 + $0x158] sm:$0xff]
  %v2071 = vld [vmem:[%s7 + $0x160] sm:$0xff]
  %v2072 = vld [vmem:[%s7 + $0x168] sm:$0xff]
  %v2073 = vld [vmem:[%s7 + $0x170] sm:$0xff]
  %v2074 = vld [vmem:[%s7 + $0x178] sm:$0xff]
  %v2075 = vld [vmem:[%s7 + $0x180] sm:$0xff]
  %v2076 = vld [vmem:[%s7 + $0x188] sm:$0xff]
  %v2077 = vld [vmem:[%s7 + $0x190] sm:$0xff]
  %v2078 = vld [vmem:[%s7 + $0x198] sm:$0xff]
  %v2079 = vld [vmem:[%s7 + $0x1a0] sm:$0xff]
  %v2080 = vld [vmem:[%s7 + $0x1a8] sm:$0xff]
  %v2081 = vld [vmem:[%s7 + $0x1b0] sm:$0xff]
  %v2082 = vld [vmem:[%s7 + $0x1b8] sm:$0xff]
  %v2083 = vld [vmem:[%s7 + $0x1c0] sm:$0xff]
  %v2084 = vld [vmem:[%s7 + $0x1c8] sm:$0xff]
  %v2085 = vld [vmem:[%s7 + $0x1d0] sm:$0xff]
  %v2086 = vld [vmem:[%s7 + $0x1d8] sm:$0xff]
  %v2087 = vld [vmem:[%s7 + $0x1e0] sm:$0xf]
  %v2088 = vld [vmem:[%s7 + $0x1e8] sm:$0xf]
  %v2089 = vld [vmem:[%s7 + $0x1f0] sm:$0xf]
  %v2090 = vld [vmem:[%s7 + $0x1f8] sm:$0xf]
  %v2091 = vld [vmem:[%s7 + $0x200] sm:$0xf]
  %v2092 = vld [vmem:[%s8] sm:$0x1f]
  %v2094 = vlaneseq
  %v2095 = vshrl.u32 %v2094, 7
  %v2096 = vsub.s32 0, %v2095
  %v2097 = vrot.slane %v2092, %v2096
  %v2098 = vlaneseq
  %v2099 = vshrl.u32 %v2098, 7
  %v2100 = vsub.s32 1, %v2099
  %v2101 = vrot.slane %v2092, %v2100
  %v2102 = vlaneseq
  %v2103 = vshrl.u32 %v2102, 7
  %v2104 = vsub.s32 2, %v2103
  %v2105 = vrot.slane %v2092, %v2104
  %v2106 = vlaneseq
  %v2107 = vshrl.u32 %v2106, 7
  %v2108 = vsub.s32 3, %v2107
  %v2109 = vrot.slane %v2092, %v2108
  %v2110 = vlaneseq
  %v2111 = vshrl.u32 %v2110, 7
  %v2112 = vsub.s32 4, %v2111
  %v2113 = vrot.slane %v2092, %v2112
  %v2120 = vsel %vm1598, %v2026, 0
  %v2123 = vsel %vm1602, %v2087, 0
  %v2126 = vsel %vm1602, %v2088, 0
  %v2129 = vsel %vm1602, %v2089, 0
  %v2132 = vsel %vm1602, %v2090, 0
  %v2135 = vsel %vm1602, %v2091, 0
  %2137 = vmatprep.subr.mxu0 %v2028
  %2138 = vmatpush1.msra.mxu0 %v2027
  %2139 = vmatprep.subr.mxu0 %v2033
  %2140 = vmatpush1.msra.mxu0 %v2032
  %2141 = vmatprep.subr.mxu0 %v2038
  %2142 = vmatpush1.msra.mxu0 %v2037
  %2143 = vmatprep.subr.mxu0 %v2043
  %2144 = vmatpush1.msra.mxu0 %v2042
  %2145 = vmatprep.subr.mxu0 %v2048
  %2146 = vmatpush1.msra.mxu0 %v2047
  %2147 = vmatprep.subr.mxu0 %v2053
  %2148 = vmatpush1.msra.mxu0 %v2052
  %2149 = vmatprep.subr.mxu0 %v2058
  %2150 = vmatpush1.msra.mxu0 %v2057
  %2151 = vmatprep.subr.mxu0 %v2063
  %2152 = vmatpush1.msra.mxu0 %v2062
  %2153 = vmatprep.subr.mxu0 %v2068
  %2154 = vmatpush1.msra.mxu0 %v2067
  %2155 = vmatprep.subr.mxu0 %v2073
  %2156 = vmatpush1.msra.mxu0 %v2072
  %2157 = vmatprep.subr.mxu0 %v2078
  %2158 = vmatpush1.msra.mxu0 %v2077
  %2159 = vmatprep.subr.mxu0 %v2083
  %2160 = vmatpush1.msra.mxu0 %v2082
  %2161 = vmatprep.subr.mxu0 %v2126
  %2162 = vmatpush1.msra.mxu0 %v2123
  %2163 = vmatprep.subr.mxu0 0.0
  %2164 = vmatpush1.msra.mxu0 0.0
  %2165 = vmatprep.subr.mxu0 0.0
  %2166 = vmatpush1.msra.mxu0 0.0
  %2167 = vmatprep.subr.mxu0 0.0
  %2168 = vmatpush1.msra.mxu0 0.0
  %2169 = vmatprep.subr.mxu0 0.0
  %2170 = vmatpush1.msra.mxu0 0.0
  %2171 = vmatprep.subr.mxu0 0.0
  %2172 = vmatpush1.msra.mxu0 0.0
  %2173 = vmatprep.subr.mxu0 0.0
  %2174 = vmatpush1.msra.mxu0 0.0
  %2175 = vmatprep.subr.mxu0 0.0
  %2176 = vmatpush1.msra.mxu0 0.0
  %2177 = vmatprep.subr.mxu0 0.0
  %2178 = vmatpush1.msra.mxu0 0.0
  %2179 = vmatprep.subr.mxu0 0.0
  %2180 = vmatpush1.msra.mxu0 0.0
  %2181 = vmatprep.subr.mxu0 0.0
  %2182 = vmatpush1.msra.mxu0 0.0
  %2183 = vmatprep.subr.mxu0 0.0
  %2184 = vmatpush1.msra.mxu0 0.0
  %2185 = vmatprep.subr.mxu0 0.0
  %2186 = vmatpush1.msra.mxu0 0.0
  %2187 = vmatprep.subr.mxu0 0.0
  %2188 = vmatpush1.msra.mxu0 0.0
  %2189 = vmatprep.subr.mxu0 0.0
  %2190 = vmatpush1.msra.mxu0 0.0
  %2191 = vmatprep.subr.mxu0 0.0
  %2192 = vmatpush1.msra.mxu0 0.0
  %2193 = vmatprep.subr.mxu0 0.0
  %2194 = vmatpush1.msra.mxu0 0.0
  %2195 = vmatprep.subr.mxu0 0.0
  %2196 = vmatpush1.msra.mxu0 0.0
  %2197 = vmatprep.subr.mxu0 0.0
  %2198 = vmatpush1.msra.mxu0 0.0
  %2199 = vmatprep.subr.mxu0 0.0
  %2200 = vmatpush1.msra.mxu0 0.0
  %2201 = vmatprep.mubr.f32.mxu0 0.0
  %2202 = vmatmul.mubr.f32.gmra.mrb[0].mxu0 %v2120
  %v2203 = vpop.f32.mrb[0].mxu0
  %v2204 = vadd.f32 %v2097, %v2203
  %v2205 = vpop.f32.mrb[0].mxu0
  %v2206 = vadd.f32 %v2101, %v2205
  %2207 = vdwg.mxu0
  %2208 = vmatprep.subr.mxu0 %v2030
  %2209 = vmatpush1.msra.mxu0 %v2029
  %2210 = vmatprep.subr.mxu0 %v2035
  %2211 = vmatpush1.msra.mxu0 %v2034
  %2212 = vmatprep.subr.mxu0 %v2040
  %2213 = vmatpush1.msra.mxu0 %v2039
  %2214 = vmatprep.subr.mxu0 %v2045
  %2215 = vmatpush1.msra.mxu0 %v2044
  %2216 = vmatprep.subr.mxu0 %v2050
  %2217 = vmatpush1.msra.mxu0 %v2049
  %2218 = vmatprep.subr.mxu0 %v2055
  %2219 = vmatpush1.msra.mxu0 %v2054
  %2220 = vmatprep.subr.mxu0 %v2060
  %2221 = vmatpush1.msra.mxu0 %v2059
  %2222 = vmatprep.subr.mxu0 %v2065
  %2223 = vmatpush1.msra.mxu0 %v2064
  %2224 = vmatprep.subr.mxu0 %v2070
  %2225 = vmatpush1.msra.mxu0 %v2069
  %2226 = vmatprep.subr.mxu0 %v2075
  %2227 = vmatpush1.msra.mxu0 %v2074
  %2228 = vmatprep.subr.mxu0 %v2080
  %2229 = vmatpush1.msra.mxu0 %v2079
  %2230 = vmatprep.subr.mxu0 %v2085
  %2231 = vmatpush1.msra.mxu0 %v2084
  %2232 = vmatprep.subr.mxu0 %v2132
  %2233 = vmatpush1.msra.mxu0 %v2129
  %2234 = vmatprep.subr.mxu0 0.0
  %2235 = vmatpush1.msra.mxu0 0.0
  %2236 = vmatprep.subr.mxu0 0.0
  %2237 = vmatpush1.msra.mxu0 0.0
  %2238 = vmatprep.subr.mxu0 0.0
  %2239 = vmatpush1.msra.mxu0 0.0
  %2240 = vmatprep.subr.mxu0 0.0
  %2241 = vmatpush1.msra.mxu0 0.0
  %2242 = vmatprep.subr.mxu0 0.0
  %2243 = vmatpush1.msra.mxu0 0.0
  %2244 = vmatprep.subr.mxu0 0.0
  %2245 = vmatpush1.msra.mxu0 0.0
  %2246 = vmatprep.subr.mxu0 0.0
  %2247 = vmatpush1.msra.mxu0 0.0
  %2248 = vmatprep.subr.mxu0 0.0
  %2249 = vmatpush1.msra.mxu0 0.0
  %2250 = vmatprep.subr.mxu0 0.0
  %2251 = vmatpush1.msra.mxu0 0.0
  %2252 = vmatprep.subr.mxu0 0.0
  %2253 = vmatpush1.msra.mxu0 0.0
  %2254 = vmatprep.subr.mxu0 0.0
  %2255 = vmatpush1.msra.mxu0 0.0
  %2256 = vmatprep.subr.mxu0 0.0
  %2257 = vmatpush1.msra.mxu0 0.0
  %2258 = vmatprep.subr.mxu0 0.0
  %2259 = vmatpush1.msra.mxu0 0.0
  %2260 = vmatprep.subr.mxu0 0.0
  %2261 = vmatpush1.msra.mxu0 0.0
  %2262 = vmatprep.subr.mxu0 0.0
  %2263 = vmatpush1.msra.mxu0 0.0
  %2264 = vmatprep.subr.mxu0 0.0
  %2265 = vmatpush1.msra.mxu0 0.0
  %2266 = vmatprep.subr.mxu0 0.0
  %2267 = vmatpush1.msra.mxu0 0.0
  %2268 = vmatprep.subr.mxu0 0.0
  %2269 = vmatpush1.msra.mxu0 0.0
  %2270 = vmatprep.subr.mxu0 0.0
  %2271 = vmatpush1.msra.mxu0 0.0
  %2272 = vmatprep.mubr.f32.mxu0 0.0
  %2273 = vmatmul.mubr.f32.gmra.mrb[0].mxu0 %v2120
  %v2274 = vpop.f32.mrb[0].mxu0
  %v2275 = vadd.f32 %v2105, %v2274
  %v2276 = vpop.f32.mrb[0].mxu0
  %v2277 = vadd.f32 %v2109, %v2276
  %2278 = vdwg.mxu0
  %2279 = vmatprep.subr.mxu0 0.0
  %2280 = vmatpush1.msra.mxu0 %v2031
  %2281 = vmatprep.subr.mxu0 0.0
  %2282 = vmatpush1.msra.mxu0 %v2036
  %2283 = vmatprep.subr.mxu0 0.0
  %2284 = vmatpush1.msra.mxu0 %v2041
  %2285 = vmatprep.subr.mxu0 0.0
  %2286 = vmatpush1.msra.mxu0 %v2046
  %2287 = vmatprep.subr.mxu0 0.0
  %2288 = vmatpush1.msra.mxu0 %v2051
  %2289 = vmatprep.subr.mxu0 0.0
  %2290 = vmatpush1.msra.mxu0 %v2056
  %2291 = vmatprep.subr.mxu0 0.0
  %2292 = vmatpush1.msra.mxu0 %v2061
  %2293 = vmatprep.subr.mxu0 0.0
  %2294 = vmatpush1.msra.mxu0 %v2066
  %2295 = vmatprep.subr.mxu0 0.0
  %2296 = vmatpush1.msra.mxu0 %v2071
  %2297 = vmatprep.subr.mxu0 0.0
  %2298 = vmatpush1.msra.mxu0 %v2076
  %2299 = vmatprep.subr.mxu0 0.0
  %2300 = vmatpush1.msra.mxu0 %v2081
  %2301 = vmatprep.subr.mxu0 0.0
  %2302 = vmatpush1.msra.mxu0 %v2086
  %2303 = vmatprep.subr.mxu0 0.0
  %2304 = vmatpush1.msra.mxu0 %v2135
  %2305 = vmatprep.subr.mxu0 0.0
  %2306 = vmatpush1.msra.mxu0 0.0
  %2307 = vmatprep.subr.mxu0 0.0
  %2308 = vmatpush1.msra.mxu0 0.0
  %2309 = vmatprep.subr.mxu0 0.0
  %2310 = vmatpush1.msra.mxu0 0.0
  %2311 = vmatprep.subr.mxu0 0.0
  %2312 = vmatpush1.msra.mxu0 0.0
  %2313 = vmatprep.subr.mxu0 0.0
  %2314 = vmatpush1.msra.mxu0 0.0
  %2315 = vmatprep.subr.mxu0 0.0
  %2316 = vmatpush1.msra.mxu0 0.0
  %2317 = vmatprep.subr.mxu0 0.0
  %2318 = vmatpush1.msra.mxu0 0.0
  %2319 = vmatprep.subr.mxu0 0.0
  %2320 = vmatpush1.msra.mxu0 0.0
  %2321 = vmatprep.subr.mxu0 0.0
  %2322 = vmatpush1.msra.mxu0 0.0
  %2323 = vmatprep.subr.mxu0 0.0
  %2324 = vmatpush1.msra.mxu0 0.0
  %2325 = vmatprep.subr.mxu0 0.0
  %2326 = vmatpush1.msra.mxu0 0.0
  %2327 = vmatprep.subr.mxu0 0.0
  %2328 = vmatpush1.msra.mxu0 0.0
  %2329 = vmatprep.subr.mxu0 0.0
  %2330 = vmatpush1.msra.mxu0 0.0
  %2331 = vmatprep.subr.mxu0 0.0
  %2332 = vmatpush1.msra.mxu0 0.0
  %2333 = vmatprep.subr.mxu0 0.0
  %2334 = vmatpush1.msra.mxu0 0.0
  %2335 = vmatprep.subr.mxu0 0.0
  %2336 = vmatpush1.msra.mxu0 0.0
  %2337 = vmatprep.subr.mxu0 0.0
  %2338 = vmatpush1.msra.mxu0 0.0
  %2339 = vmatprep.subr.mxu0 0.0
  %2340 = vmatpush1.msra.mxu0 0.0
  %2341 = vmatprep.subr.mxu0 0.0
  %2342 = vmatpush1.msra.mxu0 0.0
  %2343 = vmatprep.mubr.f32.mxu0 0.0
  %2344 = vmatmul.mubr.f32.gmra.mrb[0].mxu0 %v2120
  %v2345 = vpop.f32.mrb[0].mxu0
  %v2346 = vadd.f32 %v2113, %v2345
  %v2347 = vpop.f32.mrb[0].mxu0
  %2348 = vdwg.mxu0
  %v2349 = vmax.f32 %v2204, 0.0
  %v2350 = vmax.f32 %v2206, 0.0
  %v2351 = vmax.f32 %v2275, 0.0
  %v2352 = vmax.f32 %v2277, 0.0
  %v2353 = vmax.f32 %v2346, 0.0
  %v2354 = vld [vmem:[%s9] sm:$0xff]
  %v2355 = vld [vmem:[%s9 + $0x8] sm:$0xff]
  %v2356 = vld [vmem:[%s9 + $0x10] sm:$0xff]
  %v2357 = vld [vmem:[%s9 + $0x18] sm:$0xff]
  %v2358 = vld [vmem:[%s9 + $0x20] sm:$0xff]
  %v2359 = vld [vmem:[%s9 + $0x28] sm:$0xff]
  %v2360 = vld [vmem:[%s9 + $0x30] sm:$0xff]
  %v2361 = vld [vmem:[%s9 + $0x38] sm:$0xff]
  %v2362 = vld [vmem:[%s9 + $0x40] sm:$0xff]
  %v2363 = vld [vmem:[%s9 + $0x48] sm:$0xff]
  %v2364 = vld [vmem:[%s9 + $0x50] sm:$0xff]
  %v2365 = vld [vmem:[%s9 + $0x58] sm:$0xff]
  %v2366 = vld [vmem:[%s9 + $0x60] sm:$0xff]
  %v2367 = vld [vmem:[%s9 + $0x68] sm:$0xff]
  %v2368 = vld [vmem:[%s9 + $0x70] sm:$0xff]
  %v2369 = vld [vmem:[%s9 + $0x78] sm:$0xff]
  %v2370 = vld [vmem:[%s9 + $0x80] sm:$0xff]
  %v2371 = vld [vmem:[%s9 + $0x88] sm:$0xff]
  %v2372 = vld [vmem:[%s9 + $0x90] sm:$0xff]
  %v2373 = vld [vmem:[%s9 + $0x98] sm:$0xff]
  %v2374 = vld [vmem:[%s9 + $0xa0] sm:$0xff]
  %v2375 = vld [vmem:[%s9 + $0xa8] sm:$0xff]
  %v2376 = vld [vmem:[%s9 + $0xb0] sm:$0xff]
  %v2377 = vld [vmem:[%s9 + $0xb8] sm:$0xff]
  %v2378 = vld [vmem:[%s9 + $0xc0] sm:$0xff]
  %v2379 = vld [vmem:[%s9 + $0xc8] sm:$0xff]
  %v2380 = vld [vmem:[%s9 + $0xd0] sm:$0xff]
  %v2381 = vld [vmem:[%s9 + $0xd8] sm:$0xff]
  %v2382 = vld [vmem:[%s9 + $0xe0] sm:$0xff]
  %v2383 = vld [vmem:[%s9 + $0xe8] sm:$0xff]
  %v2384 = vld [vmem:[%s9 + $0xf0] sm:$0xff]
  %v2385 = vld [vmem:[%s9 + $0xf8] sm:$0xff]
  %v2386 = vld [vmem:[%s9 + $0x100] sm:$0xff]
  %v2387 = vld [vmem:[%s9 + $0x108] sm:$0xff]
  %v2388 = vld [vmem:[%s9 + $0x110] sm:$0xff]
  %v2389 = vld [vmem:[%s9 + $0x118] sm:$0xff]
  %v2390 = vld [vmem:[%s9 + $0x120] sm:$0xff]
  %v2391 = vld [vmem:[%s9 + $0x128] sm:$0xff]
  %v2392 = vld [vmem:[%s9 + $0x130] sm:$0xff]
  %v2393 = vld [vmem:[%s9 + $0x138] sm:$0xff]
  %v2394 = vld [vmem:[%s9 + $0x140] sm:$0xff]
  %v2395 = vld [vmem:[%s9 + $0x148] sm:$0xff]
  %v2396 = vld [vmem:[%s9 + $0x150] sm:$0xff]
  %v2397 = vld [vmem:[%s9 + $0x158] sm:$0xff]
  %v2398 = vld [vmem:[%s9 + $0x160] sm:$0xff]
  %v2399 = vld [vmem:[%s9 + $0x168] sm:$0xff]
  %v2400 = vld [vmem:[%s9 + $0x170] sm:$0xff]
  %v2401 = vld [vmem:[%s9 + $0x178] sm:$0xff]
  %v2402 = vld [vmem:[%s9 + $0x180] sm:$0xff]
  %v2403 = vld [vmem:[%s9 + $0x188] sm:$0xff]
  %v2404 = vld [vmem:[%s9 + $0x190] sm:$0xff]
  %v2405 = vld [vmem:[%s9 + $0x198] sm:$0xff]
  %v2406 = vld [vmem:[%s9 + $0x1a0] sm:$0xff]
  %v2407 = vld [vmem:[%s9 + $0x1a8] sm:$0xff]
  %v2408 = vld [vmem:[%s9 + $0x1b0] sm:$0xff]
  %v2409 = vld [vmem:[%s9 + $0x1b8] sm:$0xff]
  %v2410 = vld [vmem:[%s9 + $0x1c0] sm:$0xff]
  %v2411 = vld [vmem:[%s9 + $0x1c8] sm:$0xff]
  %v2412 = vld [vmem:[%s9 + $0x1d0] sm:$0xff]
  %v2413 = vld [vmem:[%s9 + $0x1d8] sm:$0xff]
  %v2414 = vld [vmem:[%s9 + $0x1e0] sm:$0xff]
  %v2415 = vld [vmem:[%s9 + $0x1e8] sm:$0xff]
  %v2416 = vld [vmem:[%s9 + $0x1f0] sm:$0xff]
  %v2417 = vld [vmem:[%s9 + $0x1f8] sm:$0xff]
  %v2418 = vld [vmem:[%s9 + $0x200] sm:$0xff]
  %v2419 = vld [vmem:[%s9 + $0x208] sm:$0xff]
  %v2420 = vld [vmem:[%s9 + $0x210] sm:$0xff]
  %v2421 = vld [vmem:[%s9 + $0x218] sm:$0xff]
  %v2422 = vld [vmem:[%s9 + $0x220] sm:$0xff]
  %v2423 = vld [vmem:[%s9 + $0x228] sm:$0xff]
  %v2424 = vld [vmem:[%s9 + $0x230] sm:$0xff]
  %v2425 = vld [vmem:[%s9 + $0x238] sm:$0xff]
  %v2426 = vld [vmem:[%s9 + $0x240] sm:$0xff]
  %v2427 = vld [vmem:[%s9 + $0x248] sm:$0xff]
  %v2428 = vld [vmem:[%s9 + $0x250] sm:$0xff]
  %v2429 = vld [vmem:[%s9 + $0x258] sm:$0xff]
  %v2430 = vld [vmem:[%s9 + $0x260] sm:$0xff]
  %v2431 = vld [vmem:[%s9 + $0x268] sm:$0xff]
  %v2432 = vld [vmem:[%s9 + $0x270] sm:$0xff]
  %v2433 = vld [vmem:[%s9 + $0x278] sm:$0xff]
  %v2434 = vld [vmem:[%s9 + $0x280] sm:$0xff]
  %v2435 = vld [vmem:[%s9 + $0x288] sm:$0xff]
  %v2436 = vld [vmem:[%s9 + $0x290] sm:$0xff]
  %v2437 = vld [vmem:[%s9 + $0x298] sm:$0xff]
  %v2438 = vld [vmem:[%s9 + $0x2a0] sm:$0xff]
  %v2439 = vld [vmem:[%s9 + $0x2a8] sm:$0xff]
  %v2440 = vld [vmem:[%s9 + $0x2b0] sm:$0xff]
  %v2441 = vld [vmem:[%s9 + $0x2b8] sm:$0xff]
  %v2442 = vld [vmem:[%s9 + $0x2c0] sm:$0xff]
  %v2443 = vld [vmem:[%s9 + $0x2c8] sm:$0xff]
  %v2444 = vld [vmem:[%s9 + $0x2d0] sm:$0xff]
  %v2445 = vld [vmem:[%s9 + $0x2d8] sm:$0xff]
  %v2446 = vld [vmem:[%s9 + $0x2e0] sm:$0xff]
  %v2447 = vld [vmem:[%s9 + $0x2e8] sm:$0xff]
  %v2448 = vld [vmem:[%s9 + $0x2f0] sm:$0xff]
  %v2449 = vld [vmem:[%s9 + $0x2f8] sm:$0xff]
  %v2450 = vld [vmem:[%s9 + $0x300] sm:$0xff]
  %v2451 = vld [vmem:[%s9 + $0x308] sm:$0xff]
  %v2452 = vld [vmem:[%s9 + $0x310] sm:$0xff]
  %v2453 = vld [vmem:[%s9 + $0x318] sm:$0xff]
  %v2454 = vld [vmem:[%s9 + $0x320] sm:$0xff]
  %v2455 = vld [vmem:[%s9 + $0x328] sm:$0xff]
  %v2456 = vld [vmem:[%s9 + $0x330] sm:$0xff]
  %v2457 = vld [vmem:[%s9 + $0x338] sm:$0xff]
  %v2458 = vld [vmem:[%s9 + $0x340] sm:$0xff]
  %v2459 = vld [vmem:[%s9 + $0x348] sm:$0xff]
  %v2460 = vld [vmem:[%s9 + $0x350] sm:$0xff]
  %v2461 = vld [vmem:[%s9 + $0x358] sm:$0xff]
  %v2462 = vld [vmem:[%s9 + $0x360] sm:$0xff]
  %v2463 = vld [vmem:[%s9 + $0x368] sm:$0xff]
  %v2464 = vld [vmem:[%s9 + $0x370] sm:$0xff]
  %v2465 = vld [vmem:[%s9 + $0x378] sm:$0xff]
  %v2466 = vld [vmem:[%s9 + $0x380] sm:$0xff]
  %v2467 = vld [vmem:[%s9 + $0x388] sm:$0xff]
  %v2468 = vld [vmem:[%s9 + $0x390] sm:$0xff]
  %v2469 = vld [vmem:[%s9 + $0x398] sm:$0xff]
  %v2470 = vld [vmem:[%s9 + $0x3a0] sm:$0xff]
  %v2471 = vld [vmem:[%s9 + $0x3a8] sm:$0xff]
  %v2472 = vld [vmem:[%s9 + $0x3b0] sm:$0xff]
  %v2473 = vld [vmem:[%s9 + $0x3b8] sm:$0xff]
  %v2474 = vld [vmem:[%s9 + $0x3c0] sm:$0xff]
  %v2475 = vld [vmem:[%s9 + $0x3c8] sm:$0xff]
  %v2476 = vld [vmem:[%s9 + $0x3d0] sm:$0xff]
  %v2477 = vld [vmem:[%s9 + $0x3d8] sm:$0xff]
  %v2478 = vld [vmem:[%s9 + $0x3e0] sm:$0xff]
  %v2479 = vld [vmem:[%s9 + $0x3e8] sm:$0xff]
  %v2480 = vld [vmem:[%s9 + $0x3f0] sm:$0xff]
  %v2481 = vld [vmem:[%s9 + $0x3f8] sm:$0xff]
  %v2482 = vld [vmem:[%s9 + $0x400] sm:$0xff]
  %v2483 = vld [vmem:[%s9 + $0x408] sm:$0xff]
  %v2484 = vld [vmem:[%s9 + $0x410] sm:$0xff]
  %v2485 = vld [vmem:[%s9 + $0x418] sm:$0xff]
  %v2486 = vld [vmem:[%s9 + $0x420] sm:$0xff]
  %v2487 = vld [vmem:[%s9 + $0x428] sm:$0xff]
  %v2488 = vld [vmem:[%s9 + $0x430] sm:$0xff]
  %v2489 = vld [vmem:[%s9 + $0x438] sm:$0xff]
  %v2490 = vld [vmem:[%s9 + $0x440] sm:$0xff]
  %v2491 = vld [vmem:[%s9 + $0x448] sm:$0xff]
  %v2492 = vld [vmem:[%s9 + $0x450] sm:$0xff]
  %v2493 = vld [vmem:[%s9 + $0x458] sm:$0xff]
  %v2494 = vld [vmem:[%s9 + $0x460] sm:$0xff]
  %v2495 = vld [vmem:[%s9 + $0x468] sm:$0xff]
  %v2496 = vld [vmem:[%s9 + $0x470] sm:$0xff]
  %v2497 = vld [vmem:[%s9 + $0x478] sm:$0xff]
  %v2498 = vld [vmem:[%s9 + $0x480] sm:$0xff]
  %v2499 = vld [vmem:[%s9 + $0x488] sm:$0xff]
  %v2500 = vld [vmem:[%s9 + $0x490] sm:$0xff]
  %v2501 = vld [vmem:[%s9 + $0x498] sm:$0xff]
  %v2502 = vld [vmem:[%s9 + $0x4a0] sm:$0xff]
  %v2503 = vld [vmem:[%s9 + $0x4a8] sm:$0xff]
  %v2504 = vld [vmem:[%s9 + $0x4b0] sm:$0xff]
  %v2505 = vld [vmem:[%s9 + $0x4b8] sm:$0xff]
  %v2506 = vld [vmem:[%s9 + $0x4c0] sm:$0xff]
  %v2507 = vld [vmem:[%s9 + $0x4c8] sm:$0xff]
  %v2508 = vld [vmem:[%s9 + $0x4d0] sm:$0xff]
  %v2509 = vld [vmem:[%s9 + $0x4d8] sm:$0xff]
  %v2510 = vld [vmem:[%s9 + $0x4e0] sm:$0xff]
  %v2511 = vld [vmem:[%s9 + $0x4e8] sm:$0xff]
  %v2512 = vld [vmem:[%s9 + $0x4f0] sm:$0xff]
  %v2513 = vld [vmem:[%s9 + $0x4f8] sm:$0xff]
  %v2514 = vld [vmem:[%s9 + $0x500] sm:$0xff]
  %v2515 = vld [vmem:[%s9 + $0x508] sm:$0xff]
  %v2516 = vld [vmem:[%s9 + $0x510] sm:$0xff]
  %v2517 = vld [vmem:[%s9 + $0x518] sm:$0xff]
  %v2518 = vld [vmem:[%s9 + $0x520] sm:$0xff]
  %v2519 = vld [vmem:[%s9 + $0x528] sm:$0xff]
  %v2520 = vld [vmem:[%s9 + $0x530] sm:$0xff]
  %v2521 = vld [vmem:[%s9 + $0x538] sm:$0xff]
  %v2522 = vld [vmem:[%s9 + $0x540] sm:$0xff]
  %v2523 = vld [vmem:[%s9 + $0x548] sm:$0xff]
  %v2524 = vld [vmem:[%s9 + $0x550] sm:$0xff]
  %v2525 = vld [vmem:[%s9 + $0x558] sm:$0xff]
  %v2526 = vld [vmem:[%s9 + $0x560] sm:$0xff]
  %v2527 = vld [vmem:[%s9 + $0x568] sm:$0xff]
  %v2528 = vld [vmem:[%s9 + $0x570] sm:$0xff]
  %v2529 = vld [vmem:[%s9 + $0x578] sm:$0xff]
  %v2530 = vld [vmem:[%s9 + $0x580] sm:$0xff]
  %v2531 = vld [vmem:[%s9 + $0x588] sm:$0xff]
  %v2532 = vld [vmem:[%s9 + $0x590] sm:$0xff]
  %v2533 = vld [vmem:[%s9 + $0x598] sm:$0xff]
  %v2534 = vld [vmem:[%s9 + $0x5a0] sm:$0xff]
  %v2535 = vld [vmem:[%s9 + $0x5a8] sm:$0xff]
  %v2536 = vld [vmem:[%s9 + $0x5b0] sm:$0xff]
  %v2537 = vld [vmem:[%s9 + $0x5b8] sm:$0xff]
  %v2538 = vld [vmem:[%s9 + $0x5c0] sm:$0xff]
  %v2539 = vld [vmem:[%s9 + $0x5c8] sm:$0xff]
  %v2540 = vld [vmem:[%s9 + $0x5d0] sm:$0xff]
  %v2541 = vld [vmem:[%s9 + $0x5d8] sm:$0xff]
  %v2542 = vld [vmem:[%s9 + $0x5e0] sm:$0xff]
  %v2543 = vld [vmem:[%s9 + $0x5e8] sm:$0xff]
  %v2544 = vld [vmem:[%s9 + $0x5f0] sm:$0xff]
  %v2545 = vld [vmem:[%s9 + $0x5f8] sm:$0xff]
  %v2546 = vld [vmem:[%s9 + $0x600] sm:$0xff]
  %v2547 = vld [vmem:[%s9 + $0x608] sm:$0xff]
  %v2548 = vld [vmem:[%s9 + $0x610] sm:$0xff]
  %v2549 = vld [vmem:[%s9 + $0x618] sm:$0xff]
  %v2550 = vld [vmem:[%s9 + $0x620] sm:$0xff]
  %v2551 = vld [vmem:[%s9 + $0x628] sm:$0xff]
  %v2552 = vld [vmem:[%s9 + $0x630] sm:$0xff]
  %v2553 = vld [vmem:[%s9 + $0x638] sm:$0xff]
  %v2554 = vld [vmem:[%s9 + $0x640] sm:$0xff]
  %v2555 = vld [vmem:[%s9 + $0x648] sm:$0xff]
  %v2556 = vld [vmem:[%s9 + $0x650] sm:$0xff]
  %v2557 = vld [vmem:[%s9 + $0x658] sm:$0xff]
  %v2558 = vld [vmem:[%s9 + $0x660] sm:$0xff]
  %v2559 = vld [vmem:[%s9 + $0x668] sm:$0xff]
  %v2560 = vld [vmem:[%s9 + $0x670] sm:$0xff]
  %v2561 = vld [vmem:[%s9 + $0x678] sm:$0xff]
  %v2562 = vld [vmem:[%s9 + $0x680] sm:$0xff]
  %v2563 = vld [vmem:[%s9 + $0x688] sm:$0xff]
  %v2564 = vld [vmem:[%s9 + $0x690] sm:$0xff]
  %v2565 = vld [vmem:[%s9 + $0x698] sm:$0xff]
  %v2566 = vld [vmem:[%s9 + $0x6a0] sm:$0xff]
  %v2567 = vld [vmem:[%s9 + $0x6a8] sm:$0xff]
  %v2568 = vld [vmem:[%s9 + $0x6b0] sm:$0xff]
  %v2569 = vld [vmem:[%s9 + $0x6b8] sm:$0xff]
  %v2570 = vld [vmem:[%s9 + $0x6c0] sm:$0xff]
  %v2571 = vld [vmem:[%s9 + $0x6c8] sm:$0xff]
  %v2572 = vld [vmem:[%s9 + $0x6d0] sm:$0xff]
  %v2573 = vld [vmem:[%s9 + $0x6d8] sm:$0xff]
  %v2574 = vld [vmem:[%s9 + $0x6e0] sm:$0xff]
  %v2575 = vld [vmem:[%s9 + $0x6e8] sm:$0xff]
  %v2576 = vld [vmem:[%s9 + $0x6f0] sm:$0xff]
  %v2577 = vld [vmem:[%s9 + $0x6f8] sm:$0xff]
  %v2578 = vld [vmem:[%s9 + $0x700] sm:$0xff]
  %v2579 = vld [vmem:[%s9 + $0x708] sm:$0xff]
  %v2580 = vld [vmem:[%s9 + $0x710] sm:$0xff]
  %v2581 = vld [vmem:[%s9 + $0x718] sm:$0xff]
  %v2582 = vld [vmem:[%s9 + $0x720] sm:$0xff]
  %v2583 = vld [vmem:[%s9 + $0x728] sm:$0xff]
  %v2584 = vld [vmem:[%s9 + $0x730] sm:$0xff]
  %v2585 = vld [vmem:[%s9 + $0x738] sm:$0xff]
  %v2586 = vld [vmem:[%s9 + $0x740] sm:$0xff]
  %v2587 = vld [vmem:[%s9 + $0x748] sm:$0xff]
  %v2588 = vld [vmem:[%s9 + $0x750] sm:$0xff]
  %v2589 = vld [vmem:[%s9 + $0x758] sm:$0xff]
  %v2590 = vld [vmem:[%s9 + $0x760] sm:$0xff]
  %v2591 = vld [vmem:[%s9 + $0x768] sm:$0xff]
  %v2592 = vld [vmem:[%s9 + $0x770] sm:$0xff]
  %v2593 = vld [vmem:[%s9 + $0x778] sm:$0xff]
  %v2594 = vld [vmem:[%s9 + $0x780] sm:$0xff]
  %v2595 = vld [vmem:[%s9 + $0x788] sm:$0xff]
  %v2596 = vld [vmem:[%s9 + $0x790] sm:$0xff]
  %v2597 = vld [vmem:[%s9 + $0x798] sm:$0xff]
  %v2598 = vld [vmem:[%s9 + $0x7a0] sm:$0xff]
  %v2599 = vld [vmem:[%s9 + $0x7a8] sm:$0xff]
  %v2600 = vld [vmem:[%s9 + $0x7b0] sm:$0xff]
  %v2601 = vld [vmem:[%s9 + $0x7b8] sm:$0xff]
  %v2602 = vld [vmem:[%s9 + $0x7c0] sm:$0xff]
  %v2603 = vld [vmem:[%s9 + $0x7c8] sm:$0xff]
  %v2604 = vld [vmem:[%s9 + $0x7d0] sm:$0xff]
  %v2605 = vld [vmem:[%s9 + $0x7d8] sm:$0xff]
  %v2606 = vld [vmem:[%s9 + $0x7e0] sm:$0xff]
  %v2607 = vld [vmem:[%s9 + $0x7e8] sm:$0xff]
  %v2608 = vld [vmem:[%s9 + $0x7f0] sm:$0xff]
  %v2609 = vld [vmem:[%s9 + $0x7f8] sm:$0xff]
  %v2610 = vld [vmem:[%s9 + $0x800] sm:$0xff]
  %v2611 = vld [vmem:[%s9 + $0x808] sm:$0xff]
  %v2612 = vld [vmem:[%s9 + $0x810] sm:$0xff]
  %v2613 = vld [vmem:[%s9 + $0x818] sm:$0xff]
  %v2614 = vld [vmem:[%s9 + $0x820] sm:$0xff]
  %v2615 = vld [vmem:[%s9 + $0x828] sm:$0xff]
  %v2616 = vld [vmem:[%s9 + $0x830] sm:$0xff]
  %v2617 = vld [vmem:[%s9 + $0x838] sm:$0xff]
  %v2618 = vld [vmem:[%s9 + $0x840] sm:$0xff]
  %v2619 = vld [vmem:[%s9 + $0x848] sm:$0xff]
  %v2620 = vld [vmem:[%s9 + $0x850] sm:$0xff]
  %v2621 = vld [vmem:[%s9 + $0x858] sm:$0xff]
  %v2622 = vld [vmem:[%s9 + $0x860] sm:$0xff]
  %v2623 = vld [vmem:[%s9 + $0x868] sm:$0xff]
  %v2624 = vld [vmem:[%s9 + $0x870] sm:$0xff]
  %v2625 = vld [vmem:[%s9 + $0x878] sm:$0xff]
  %v2626 = vld [vmem:[%s9 + $0x880] sm:$0xff]
  %v2627 = vld [vmem:[%s9 + $0x888] sm:$0xff]
  %v2628 = vld [vmem:[%s9 + $0x890] sm:$0xff]
  %v2629 = vld [vmem:[%s9 + $0x898] sm:$0xff]
  %v2630 = vld [vmem:[%s9 + $0x8a0] sm:$0xff]
  %v2631 = vld [vmem:[%s9 + $0x8a8] sm:$0xff]
  %v2632 = vld [vmem:[%s9 + $0x8b0] sm:$0xff]
  %v2633 = vld [vmem:[%s9 + $0x8b8] sm:$0xff]
  %v2634 = vld [vmem:[%s9 + $0x8c0] sm:$0xff]
  %v2635 = vld [vmem:[%s9 + $0x8c8] sm:$0xff]
  %v2636 = vld [vmem:[%s9 + $0x8d0] sm:$0xff]
  %v2637 = vld [vmem:[%s9 + $0x8d8] sm:$0xff]
  %v2638 = vld [vmem:[%s9 + $0x8e0] sm:$0xff]
  %v2639 = vld [vmem:[%s9 + $0x8e8] sm:$0xff]
  %v2640 = vld [vmem:[%s9 + $0x8f0] sm:$0xff]
  %v2641 = vld [vmem:[%s9 + $0x8f8] sm:$0xff]
  %v2642 = vld [vmem:[%s9 + $0x900] sm:$0xff]
  %v2643 = vld [vmem:[%s9 + $0x908] sm:$0xff]
  %v2644 = vld [vmem:[%s9 + $0x910] sm:$0xff]
  %v2645 = vld [vmem:[%s9 + $0x918] sm:$0xff]
  %v2646 = vld [vmem:[%s9 + $0x920] sm:$0xff]
  %v2647 = vld [vmem:[%s9 + $0x928] sm:$0xff]
  %v2648 = vld [vmem:[%s9 + $0x930] sm:$0xff]
  %v2649 = vld [vmem:[%s9 + $0x938] sm:$0xff]
  %v2650 = vld [vmem:[%s9 + $0x940] sm:$0xff]
  %v2651 = vld [vmem:[%s9 + $0x948] sm:$0xff]
  %v2652 = vld [vmem:[%s9 + $0x950] sm:$0xff]
  %v2653 = vld [vmem:[%s9 + $0x958] sm:$0xff]
  %v2654 = vld [vmem:[%s9 + $0x960] sm:$0xff]
  %v2655 = vld [vmem:[%s9 + $0x968] sm:$0xff]
  %v2656 = vld [vmem:[%s9 + $0x970] sm:$0xff]
  %v2657 = vld [vmem:[%s9 + $0x978] sm:$0xff]
  %v2658 = vld [vmem:[%s9 + $0x980] sm:$0xff]
  %v2659 = vld [vmem:[%s9 + $0x988] sm:$0xff]
  %v2660 = vld [vmem:[%s9 + $0x990] sm:$0xff]
  %v2661 = vld [vmem:[%s9 + $0x998] sm:$0xff]
  %v2662 = vld [vmem:[%s9 + $0x9a0] sm:$0xff]
  %v2663 = vld [vmem:[%s9 + $0x9a8] sm:$0xff]
  %v2664 = vld [vmem:[%s9 + $0x9b0] sm:$0xff]
  %v2665 = vld [vmem:[%s9 + $0x9b8] sm:$0xff]
  %v2666 = vld [vmem:[%s9 + $0x9c0] sm:$0xff]
  %v2667 = vld [vmem:[%s9 + $0x9c8] sm:$0xff]
  %v2668 = vld [vmem:[%s9 + $0x9d0] sm:$0xff]
  %v2669 = vld [vmem:[%s9 + $0x9d8] sm:$0xff]
  %v2670 = vld [vmem:[%s9 + $0x9e0] sm:$0xff]
  %v2671 = vld [vmem:[%s9 + $0x9e8] sm:$0xff]
  %v2672 = vld [vmem:[%s9 + $0x9f0] sm:$0xff]
  %v2673 = vld [vmem:[%s9 + $0x9f8] sm:$0xff]
  %v2674 = vld [vmem:[%s9 + $0xa00] sm:$0xff]
  %v2675 = vld [vmem:[%s9 + $0xa08] sm:$0xff]
  %v2676 = vld [vmem:[%s9 + $0xa10] sm:$0xff]
  %v2677 = vld [vmem:[%s9 + $0xa18] sm:$0xff]
  %v2678 = vld [vmem:[%s9 + $0xa20] sm:$0xff]
  %v2679 = vld [vmem:[%s9 + $0xa28] sm:$0xff]
  %v2680 = vld [vmem:[%s9 + $0xa30] sm:$0xff]
  %v2681 = vld [vmem:[%s9 + $0xa38] sm:$0xff]
  %v2682 = vld [vmem:[%s9 + $0xa40] sm:$0xff]
  %v2683 = vld [vmem:[%s9 + $0xa48] sm:$0xff]
  %v2684 = vld [vmem:[%s9 + $0xa50] sm:$0xff]
  %v2685 = vld [vmem:[%s9 + $0xa58] sm:$0xff]
  %v2686 = vld [vmem:[%s9 + $0xa60] sm:$0xff]
  %v2687 = vld [vmem:[%s9 + $0xa68] sm:$0xff]
  %v2688 = vld [vmem:[%s9 + $0xa70] sm:$0xff]
  %v2689 = vld [vmem:[%s9 + $0xa78] sm:$0xff]
  %v2690 = vld [vmem:[%s9 + $0xa80] sm:$0xff]
  %v2691 = vld [vmem:[%s9 + $0xa88] sm:$0xff]
  %v2692 = vld [vmem:[%s9 + $0xa90] sm:$0xff]
  %v2693 = vld [vmem:[%s9 + $0xa98] sm:$0xff]
  %v2694 = vld [vmem:[%s9 + $0xaa0] sm:$0xff]
  %v2695 = vld [vmem:[%s9 + $0xaa8] sm:$0xff]
  %v2696 = vld [vmem:[%s9 + $0xab0] sm:$0xff]
  %v2697 = vld [vmem:[%s9 + $0xab8] sm:$0xff]
  %v2698 = vld [vmem:[%s9 + $0xac0] sm:$0xff]
  %v2699 = vld [vmem:[%s9 + $0xac8] sm:$0xff]
  %v2700 = vld [vmem:[%s9 + $0xad0] sm:$0xff]
  %v2701 = vld [vmem:[%s9 + $0xad8] sm:$0xff]
  %v2702 = vld [vmem:[%s9 + $0xae0] sm:$0xff]
  %v2703 = vld [vmem:[%s9 + $0xae8] sm:$0xff]
  %v2704 = vld [vmem:[%s9 + $0xaf0] sm:$0xff]
  %v2705 = vld [vmem:[%s9 + $0xaf8] sm:$0xff]
  %v2706 = vld [vmem:[%s9 + $0xb00] sm:$0xff]
  %v2707 = vld [vmem:[%s9 + $0xb08] sm:$0xff]
  %v2708 = vld [vmem:[%s9 + $0xb10] sm:$0xff]
  %v2709 = vld [vmem:[%s9 + $0xb18] sm:$0xff]
  %v2710 = vld [vmem:[%s9 + $0xb20] sm:$0xff]
  %v2711 = vld [vmem:[%s9 + $0xb28] sm:$0xff]
  %v2712 = vld [vmem:[%s9 + $0xb30] sm:$0xff]
  %v2713 = vld [vmem:[%s9 + $0xb38] sm:$0xff]
  %v2714 = vld [vmem:[%s9 + $0xb40] sm:$0xff]
  %v2715 = vld [vmem:[%s9 + $0xb48] sm:$0xff]
  %v2716 = vld [vmem:[%s9 + $0xb50] sm:$0xff]
  %v2717 = vld [vmem:[%s9 + $0xb58] sm:$0xff]
  %v2718 = vld [vmem:[%s9 + $0xb60] sm:$0xff]
  %v2719 = vld [vmem:[%s9 + $0xb68] sm:$0xff]
  %v2720 = vld [vmem:[%s9 + $0xb70] sm:$0xff]
  %v2721 = vld [vmem:[%s9 + $0xb78] sm:$0xff]
  %v2722 = vld [vmem:[%s9 + $0xb80] sm:$0xff]
  %v2723 = vld [vmem:[%s9 + $0xb88] sm:$0xff]
  %v2724 = vld [vmem:[%s9 + $0xb90] sm:$0xff]
  %v2725 = vld [vmem:[%s9 + $0xb98] sm:$0xff]
  %v2726 = vld [vmem:[%s9 + $0xba0] sm:$0xff]
  %v2727 = vld [vmem:[%s9 + $0xba8] sm:$0xff]
  %v2728 = vld [vmem:[%s9 + $0xbb0] sm:$0xff]
  %v2729 = vld [vmem:[%s9 + $0xbb8] sm:$0xff]
  %v2730 = vld [vmem:[%s9 + $0xbc0] sm:$0xff]
  %v2731 = vld [vmem:[%s9 + $0xbc8] sm:$0xff]
  %v2732 = vld [vmem:[%s9 + $0xbd0] sm:$0xff]
  %v2733 = vld [vmem:[%s9 + $0xbd8] sm:$0xff]
  %v2734 = vld [vmem:[%s9 + $0xbe0] sm:$0xff]
  %v2735 = vld [vmem:[%s9 + $0xbe8] sm:$0xff]
  %v2736 = vld [vmem:[%s9 + $0xbf0] sm:$0xff]
  %v2737 = vld [vmem:[%s9 + $0xbf8] sm:$0xff]
  %v2738 = vld [vmem:[%s9 + $0xc00] sm:$0xff]
  %v2739 = vld [vmem:[%s9 + $0xc08] sm:$0xff]
  %v2740 = vld [vmem:[%s9 + $0xc10] sm:$0xff]
  %v2741 = vld [vmem:[%s9 + $0xc18] sm:$0xff]
  %v2742 = vld [vmem:[%s9 + $0xc20] sm:$0xff]
  %v2743 = vld [vmem:[%s9 + $0xc28] sm:$0xff]
  %v2744 = vld [vmem:[%s9 + $0xc30] sm:$0xff]
  %v2745 = vld [vmem:[%s9 + $0xc38] sm:$0xff]
  %v2746 = vld [vmem:[%s9 + $0xc40] sm:$0xff]
  %v2747 = vld [vmem:[%s9 + $0xc48] sm:$0xff]
  %v2748 = vld [vmem:[%s9 + $0xc50] sm:$0xff]
  %v2749 = vld [vmem:[%s9 + $0xc58] sm:$0xff]
  %v2750 = vld [vmem:[%s9 + $0xc60] sm:$0xff]
  %v2751 = vld [vmem:[%s9 + $0xc68] sm:$0xff]
  %v2752 = vld [vmem:[%s9 + $0xc70] sm:$0xff]
  %v2753 = vld [vmem:[%s9 + $0xc78] sm:$0xff]
  %v2754 = vld [vmem:[%s9 + $0xc80] sm:$0xff]
  %v2755 = vld [vmem:[%s9 + $0xc88] sm:$0xff]
  %v2756 = vld [vmem:[%s9 + $0xc90] sm:$0xff]
  %v2757 = vld [vmem:[%s9 + $0xc98] sm:$0xff]
  %v2758 = vld [vmem:[%s9 + $0xca0] sm:$0xff]
  %v2759 = vld [vmem:[%s9 + $0xca8] sm:$0xff]
  %v2760 = vld [vmem:[%s9 + $0xcb0] sm:$0xff]
  %v2761 = vld [vmem:[%s9 + $0xcb8] sm:$0xff]
  %v2762 = vld [vmem:[%s9 + $0xcc0] sm:$0xff]
  %v2763 = vld [vmem:[%s9 + $0xcc8] sm:$0xff]
  %v2764 = vld [vmem:[%s9 + $0xcd0] sm:$0xff]
  %v2765 = vld [vmem:[%s9 + $0xcd8] sm:$0xff]
  %v2766 = vld [vmem:[%s9 + $0xce0] sm:$0xff]
  %v2767 = vld [vmem:[%s9 + $0xce8] sm:$0xff]
  %v2768 = vld [vmem:[%s9 + $0xcf0] sm:$0xff]
  %v2769 = vld [vmem:[%s9 + $0xcf8] sm:$0xff]
  %v2770 = vld [vmem:[%s9 + $0xd00] sm:$0xff]
  %v2771 = vld [vmem:[%s9 + $0xd08] sm:$0xff]
  %v2772 = vld [vmem:[%s9 + $0xd10] sm:$0xff]
  %v2773 = vld [vmem:[%s9 + $0xd18] sm:$0xff]
  %v2774 = vld [vmem:[%s9 + $0xd20] sm:$0xff]
  %v2775 = vld [vmem:[%s9 + $0xd28] sm:$0xff]
  %v2776 = vld [vmem:[%s9 + $0xd30] sm:$0xff]
  %v2777 = vld [vmem:[%s9 + $0xd38] sm:$0xff]
  %v2778 = vld [vmem:[%s9 + $0xd40] sm:$0xff]
  %v2779 = vld [vmem:[%s9 + $0xd48] sm:$0xff]
  %v2780 = vld [vmem:[%s9 + $0xd50] sm:$0xff]
  %v2781 = vld [vmem:[%s9 + $0xd58] sm:$0xff]
  %v2782 = vld [vmem:[%s9 + $0xd60] sm:$0xff]
  %v2783 = vld [vmem:[%s9 + $0xd68] sm:$0xff]
  %v2784 = vld [vmem:[%s9 + $0xd70] sm:$0xff]
  %v2785 = vld [vmem:[%s9 + $0xd78] sm:$0xff]
  %v2786 = vld [vmem:[%s9 + $0xd80] sm:$0xff]
  %v2787 = vld [vmem:[%s9 + $0xd88] sm:$0xff]
  %v2788 = vld [vmem:[%s9 + $0xd90] sm:$0xff]
  %v2789 = vld [vmem:[%s9 + $0xd98] sm:$0xff]
  %v2790 = vld [vmem:[%s9 + $0xda0] sm:$0xff]
  %v2791 = vld [vmem:[%s9 + $0xda8] sm:$0xff]
  %v2792 = vld [vmem:[%s9 + $0xdb0] sm:$0xff]
  %v2793 = vld [vmem:[%s9 + $0xdb8] sm:$0xff]
  %v2794 = vld [vmem:[%s9 + $0xdc0] sm:$0xff]
  %v2795 = vld [vmem:[%s9 + $0xdc8] sm:$0xff]
  %v2796 = vld [vmem:[%s9 + $0xdd0] sm:$0xff]
  %v2797 = vld [vmem:[%s9 + $0xdd8] sm:$0xff]
  %v2798 = vld [vmem:[%s9 + $0xde0] sm:$0xff]
  %v2799 = vld [vmem:[%s9 + $0xde8] sm:$0xff]
  %v2800 = vld [vmem:[%s9 + $0xdf0] sm:$0xff]
  %v2801 = vld [vmem:[%s9 + $0xdf8] sm:$0xff]
  %v2802 = vld [vmem:[%s9 + $0xe00] sm:$0xff]
  %v2803 = vld [vmem:[%s9 + $0xe08] sm:$0xff]
  %v2804 = vld [vmem:[%s9 + $0xe10] sm:$0xff]
  %v2805 = vld [vmem:[%s9 + $0xe18] sm:$0xff]
  %v2806 = vld [vmem:[%s9 + $0xe20] sm:$0xff]
  %v2807 = vld [vmem:[%s9 + $0xe28] sm:$0xff]
  %v2808 = vld [vmem:[%s9 + $0xe30] sm:$0xff]
  %v2809 = vld [vmem:[%s9 + $0xe38] sm:$0xff]
  %v2810 = vld [vmem:[%s9 + $0xe40] sm:$0xff]
  %v2811 = vld [vmem:[%s9 + $0xe48] sm:$0xff]
  %v2812 = vld [vmem:[%s9 + $0xe50] sm:$0xff]
  %v2813 = vld [vmem:[%s9 + $0xe58] sm:$0xff]
  %v2814 = vld [vmem:[%s9 + $0xe60] sm:$0xff]
  %v2815 = vld [vmem:[%s9 + $0xe68] sm:$0xff]
  %v2816 = vld [vmem:[%s9 + $0xe70] sm:$0xff]
  %v2817 = vld [vmem:[%s9 + $0xe78] sm:$0xff]
  %v2818 = vld [vmem:[%s9 + $0xe80] sm:$0xff]
  %v2819 = vld [vmem:[%s9 + $0xe88] sm:$0xff]
  %v2820 = vld [vmem:[%s9 + $0xe90] sm:$0xff]
  %v2821 = vld [vmem:[%s9 + $0xe98] sm:$0xff]
  %v2822 = vld [vmem:[%s9 + $0xea0] sm:$0xff]
  %v2823 = vld [vmem:[%s9 + $0xea8] sm:$0xff]
  %v2824 = vld [vmem:[%s9 + $0xeb0] sm:$0xff]
  %v2825 = vld [vmem:[%s9 + $0xeb8] sm:$0xff]
  %v2826 = vld [vmem:[%s9 + $0xec0] sm:$0xff]
  %v2827 = vld [vmem:[%s9 + $0xec8] sm:$0xff]
  %v2828 = vld [vmem:[%s9 + $0xed0] sm:$0xff]
  %v2829 = vld [vmem:[%s9 + $0xed8] sm:$0xff]
  %v2830 = vld [vmem:[%s9 + $0xee0] sm:$0xff]
  %v2831 = vld [vmem:[%s9 + $0xee8] sm:$0xff]
  %v2832 = vld [vmem:[%s9 + $0xef0] sm:$0xff]
  %v2833 = vld [vmem:[%s9 + $0xef8] sm:$0xff]
  %v2834 = vld [vmem:[%s9 + $0xf00] sm:$0xff]
  %v2835 = vld [vmem:[%s9 + $0xf08] sm:$0xff]
  %v2836 = vld [vmem:[%s9 + $0xf10] sm:$0xff]
  %v2837 = vld [vmem:[%s9 + $0xf18] sm:$0xff]
  %v2838 = vld [vmem:[%s9 + $0xf20] sm:$0xff]
  %v2839 = vld [vmem:[%s9 + $0xf28] sm:$0xff]
  %v2840 = vld [vmem:[%s9 + $0xf30] sm:$0xff]
  %v2841 = vld [vmem:[%s9 + $0xf38] sm:$0xff]
  %v2842 = vld [vmem:[%s9 + $0xf40] sm:$0xff]
  %v2843 = vld [vmem:[%s9 + $0xf48] sm:$0xff]
  %v2844 = vld [vmem:[%s9 + $0xf50] sm:$0xff]
  %v2845 = vld [vmem:[%s9 + $0xf58] sm:$0xff]
  %v2846 = vld [vmem:[%s9 + $0xf60] sm:$0xff]
  %v2847 = vld [vmem:[%s9 + $0xf68] sm:$0xff]
  %v2848 = vld [vmem:[%s9 + $0xf70] sm:$0xff]
  %v2849 = vld [vmem:[%s9 + $0xf78] sm:$0xff]
  %v2850 = vld [vmem:[%s9 + $0xf80] sm:$0xff]
  %v2851 = vld [vmem:[%s9 + $0xf88] sm:$0xff]
  %v2852 = vld [vmem:[%s9 + $0xf90] sm:$0xff]
  %v2853 = vld [vmem:[%s9 + $0xf98] sm:$0xff]
  %v2854 = vld [vmem:[%s9 + $0xfa0] sm:$0xff]
  %v2855 = vld [vmem:[%s9 + $0xfa8] sm:$0xff]
  %v2856 = vld [vmem:[%s9 + $0xfb0] sm:$0xff]
  %v2857 = vld [vmem:[%s9 + $0xfb8] sm:$0xff]
  %v2858 = vld [vmem:[%s9 + $0xfc0] sm:$0xff]
  %v2859 = vld [vmem:[%s9 + $0xfc8] sm:$0xff]
  %v2860 = vld [vmem:[%s9 + $0xfd0] sm:$0xff]
  %v2861 = vld [vmem:[%s9 + $0xfd8] sm:$0xff]
  %v2862 = vld [vmem:[%s9 + $0xfe0] sm:$0xff]
  %v2863 = vld [vmem:[%s9 + $0xfe8] sm:$0xff]
  %v2864 = vld [vmem:[%s9 + $0xff0] sm:$0xff]
  %v2865 = vld [vmem:[%s9 + $0xff8] sm:$0xff]
  %v2866 = vld [vmem:[%s9 + $0x1000] sm:$0xff]
  %v2867 = vld [vmem:[%s9 + $0x1008] sm:$0xff]
  %v2868 = vld [vmem:[%s9 + $0x1010] sm:$0xff]
  %v2869 = vld [vmem:[%s9 + $0x1018] sm:$0xff]
  %v2870 = vld [vmem:[%s9 + $0x1020] sm:$0xff]
  %v2871 = vld [vmem:[%s9 + $0x1028] sm:$0xff]
  %v2872 = vld [vmem:[%s9 + $0x1030] sm:$0xff]
  %v2873 = vld [vmem:[%s9 + $0x1038] sm:$0xff]
  %v2874 = vld [vmem:[%s9 + $0x1040] sm:$0xff]
  %v2875 = vld [vmem:[%s9 + $0x1048] sm:$0xff]
  %v2876 = vld [vmem:[%s9 + $0x1050] sm:$0xff]
  %v2877 = vld [vmem:[%s9 + $0x1058] sm:$0xff]
  %v2878 = vld [vmem:[%s9 + $0x1060] sm:$0xff]
  %v2879 = vld [vmem:[%s9 + $0x1068] sm:$0xff]
  %v2880 = vld [vmem:[%s9 + $0x1070] sm:$0xff]
  %v2881 = vld [vmem:[%s9 + $0x1078] sm:$0xff]
  %v2882 = vld [vmem:[%s9 + $0x1080] sm:$0xff]
  %v2883 = vld [vmem:[%s9 + $0x1088] sm:$0xff]
  %v2884 = vld [vmem:[%s9 + $0x1090] sm:$0xff]
  %v2885 = vld [vmem:[%s9 + $0x1098] sm:$0xff]
  %v2886 = vld [vmem:[%s9 + $0x10a0] sm:$0xff]
  %v2887 = vld [vmem:[%s9 + $0x10a8] sm:$0xff]
  %v2888 = vld [vmem:[%s9 + $0x10b0] sm:$0xff]
  %v2889 = vld [vmem:[%s9 + $0x10b8] sm:$0xff]
  %v2890 = vld [vmem:[%s9 + $0x10c0] sm:$0xff]
  %v2891 = vld [vmem:[%s9 + $0x10c8] sm:$0xff]
  %v2892 = vld [vmem:[%s9 + $0x10d0] sm:$0xff]
  %v2893 = vld [vmem:[%s9 + $0x10d8] sm:$0xff]
  %v2894 = vld [vmem:[%s9 + $0x10e0] sm:$0xff]
  %v2895 = vld [vmem:[%s9 + $0x10e8] sm:$0xff]
  %v2896 = vld [vmem:[%s9 + $0x10f0] sm:$0xff]
  %v2897 = vld [vmem:[%s9 + $0x10f8] sm:$0xff]
  %v2898 = vld [vmem:[%s9 + $0x1100] sm:$0xff]
  %v2899 = vld [vmem:[%s9 + $0x1108] sm:$0xff]
  %v2900 = vld [vmem:[%s9 + $0x1110] sm:$0xff]
  %v2901 = vld [vmem:[%s9 + $0x1118] sm:$0xff]
  %v2902 = vld [vmem:[%s9 + $0x1120] sm:$0xff]
  %v2903 = vld [vmem:[%s9 + $0x1128] sm:$0xff]
  %v2904 = vld [vmem:[%s9 + $0x1130] sm:$0xff]
  %v2905 = vld [vmem:[%s9 + $0x1138] sm:$0xff]
  %v2906 = vld [vmem:[%s9 + $0x1140] sm:$0xff]
  %v2907 = vld [vmem:[%s9 + $0x1148] sm:$0xff]
  %v2908 = vld [vmem:[%s9 + $0x1150] sm:$0xff]
  %v2909 = vld [vmem:[%s9 + $0x1158] sm:$0xff]
  %v2910 = vld [vmem:[%s9 + $0x1160] sm:$0xff]
  %v2911 = vld [vmem:[%s9 + $0x1168] sm:$0xff]
  %v2912 = vld [vmem:[%s9 + $0x1170] sm:$0xff]
  %v2913 = vld [vmem:[%s9 + $0x1178] sm:$0xff]
  %v2914 = vld [vmem:[%s9 + $0x1180] sm:$0xff]
  %v2915 = vld [vmem:[%s9 + $0x1188] sm:$0xff]
  %v2916 = vld [vmem:[%s9 + $0x1190] sm:$0xff]
  %v2917 = vld [vmem:[%s9 + $0x1198] sm:$0xff]
  %v2918 = vld [vmem:[%s9 + $0x11a0] sm:$0xff]
  %v2919 = vld [vmem:[%s9 + $0x11a8] sm:$0xff]
  %v2920 = vld [vmem:[%s9 + $0x11b0] sm:$0xff]
  %v2921 = vld [vmem:[%s9 + $0x11b8] sm:$0xff]
  %v2922 = vld [vmem:[%s9 + $0x11c0] sm:$0xff]
  %v2923 = vld [vmem:[%s9 + $0x11c8] sm:$0xff]
  %v2924 = vld [vmem:[%s9 + $0x11d0] sm:$0xff]
  %v2925 = vld [vmem:[%s9 + $0x11d8] sm:$0xff]
  %v2926 = vld [vmem:[%s9 + $0x11e0] sm:$0xff]
  %v2927 = vld [vmem:[%s9 + $0x11e8] sm:$0xff]
  %v2928 = vld [vmem:[%s9 + $0x11f0] sm:$0xff]
  %v2929 = vld [vmem:[%s9 + $0x11f8] sm:$0xff]
  %v2930 = vld [vmem:[%s9 + $0x1200] sm:$0x3]
  %v2931 = vld [vmem:[%s9 + $0x1208] sm:$0x3]
  %v2932 = vld [vmem:[%s9 + $0x1210] sm:$0x3]
  %v2933 = vld [vmem:[%s9 + $0x1218] sm:$0x3]
  %v2934 = vld [vmem:[%s9 + $0x1220] sm:$0x3]
  %v2935 = vld [vmem:[%s9 + $0x1228] sm:$0x3]
  %v2936 = vld [vmem:[%s9 + $0x1230] sm:$0x3]
  %v2937 = vld [vmem:[%s9 + $0x1238] sm:$0x3]
  %v2938 = vld [vmem:[%s10] sm:$0xff]
  %v2940 = vlaneseq
  %v2941 = vshrl.u32 %v2940, 7
  %v2942 = vsub.s32 0, %v2941
  %v2943 = vrot.slane %v2938, %v2942
  %v2944 = vlaneseq
  %v2945 = vshrl.u32 %v2944, 7
  %v2946 = vsub.s32 1, %v2945
  %v2947 = vrot.slane %v2938, %v2946
  %v2948 = vlaneseq
  %v2949 = vshrl.u32 %v2948, 7
  %v2950 = vsub.s32 2, %v2949
  %v2951 = vrot.slane %v2938, %v2950
  %v2952 = vlaneseq
  %v2953 = vshrl.u32 %v2952, 7
  %v2954 = vsub.s32 3, %v2953
  %v2955 = vrot.slane %v2938, %v2954
  %v2956 = vlaneseq
  %v2957 = vshrl.u32 %v2956, 7
  %v2958 = vsub.s32 4, %v2957
  %v2959 = vrot.slane %v2938, %v2958
  %v2960 = vlaneseq
  %v2961 = vshrl.u32 %v2960, 7
  %v2962 = vsub.s32 5, %v2961
  %v2963 = vrot.slane %v2938, %v2962
  %v2964 = vlaneseq
  %v2965 = vshrl.u32 %v2964, 7
  %v2966 = vsub.s32 6, %v2965
  %v2967 = vrot.slane %v2938, %v2966
  %v2968 = vlaneseq
  %v2969 = vshrl.u32 %v2968, 7
  %v2970 = vsub.s32 7, %v2969
  %v2971 = vrot.slane %v2938, %v2970
  %vm2980 = vcmask 539648
  %v2982 = vsel %vm2980, %v2353, 0
  %vm2984 = vcmask 1041408
  %v2986 = vsel %vm2984, %v2930, 0
  %v2989 = vsel %vm2984, %v2931, 0
  %v2992 = vsel %vm2984, %v2932, 0
  %v2995 = vsel %vm2984, %v2933, 0
  %v2998 = vsel %vm2984, %v2934, 0
  %v3001 = vsel %vm2984, %v2935, 0
  %v3004 = vsel %vm2984, %v2936, 0
  %v3007 = vsel %vm2984, %v2937, 0
  %3009 = vmatprep.subr.mxu0 %v2355
  %3010 = vmatpush1.msra.mxu0 %v2354
  %3011 = vmatprep.subr.mxu0 %v2363
  %3012 = vmatpush1.msra.mxu0 %v2362
  %3013 = vmatprep.subr.mxu0 %v2371
  %3014 = vmatpush1.msra.mxu0 %v2370
  %3015 = vmatprep.subr.mxu0 %v2379
  %3016 = vmatpush1.msra.mxu0 %v2378
  %3017 = vmatprep.subr.mxu0 %v2387
  %3018 = vmatpush1.msra.mxu0 %v2386
  %3019 = vmatprep.subr.mxu0 %v2395
  %3020 = vmatpush1.msra.mxu0 %v2394
  %3021 = vmatprep.subr.mxu0 %v2403
  %3022 = vmatpush1.msra.mxu0 %v2402
  %3023 = vmatprep.subr.mxu0 %v2411
  %3024 = vmatpush1.msra.mxu0 %v2410
  %3025 = vmatprep.subr.mxu0 %v2419
  %3026 = vmatpush1.msra.mxu0 %v2418
  %3027 = vmatprep.subr.mxu0 %v2427
  %3028 = vmatpush1.msra.mxu0 %v2426
  %3029 = vmatprep.subr.mxu0 %v2435
  %3030 = vmatpush1.msra.mxu0 %v2434
  %3031 = vmatprep.subr.mxu0 %v2443
  %3032 = vmatpush1.msra.mxu0 %v2442
  %3033 = vmatprep.subr.mxu0 %v2451
  %3034 = vmatpush1.msra.mxu0 %v2450
  %3035 = vmatprep.subr.mxu0 %v2459
  %3036 = vmatpush1.msra.mxu0 %v2458
  %3037 = vmatprep.subr.mxu0 %v2467
  %3038 = vmatpush1.msra.mxu0 %v2466
  %3039 = vmatprep.subr.mxu0 %v2475
  %3040 = vmatpush1.msra.mxu0 %v2474
  %3041 = vmatprep.subr.mxu0 %v2483
  %3042 = vmatpush1.msra.mxu0 %v2482
  %3043 = vmatprep.subr.mxu0 %v2491
  %3044 = vmatpush1.msra.mxu0 %v2490
  %3045 = vmatprep.subr.mxu0 %v2499
  %3046 = vmatpush1.msra.mxu0 %v2498
  %3047 = vmatprep.subr.mxu0 %v2507
  %3048 = vmatpush1.msra.mxu0 %v2506
  %3049 = vmatprep.subr.mxu0 %v2515
  %3050 = vmatpush1.msra.mxu0 %v2514
  %3051 = vmatprep.subr.mxu0 %v2523
  %3052 = vmatpush1.msra.mxu0 %v2522
  %3053 = vmatprep.subr.mxu0 %v2531
  %3054 = vmatpush1.msra.mxu0 %v2530
  %3055 = vmatprep.subr.mxu0 %v2539
  %3056 = vmatpush1.msra.mxu0 %v2538
  %3057 = vmatprep.subr.mxu0 %v2547
  %3058 = vmatpush1.msra.mxu0 %v2546
  %3059 = vmatprep.subr.mxu0 %v2555
  %3060 = vmatpush1.msra.mxu0 %v2554
  %3061 = vmatprep.subr.mxu0 %v2563
  %3062 = vmatpush1.msra.mxu0 %v2562
  %3063 = vmatprep.subr.mxu0 %v2571
  %3064 = vmatpush1.msra.mxu0 %v2570
  %3065 = vmatprep.subr.mxu0 %v2579
  %3066 = vmatpush1.msra.mxu0 %v2578
  %3067 = vmatprep.subr.mxu0 %v2587
  %3068 = vmatpush1.msra.mxu0 %v2586
  %3069 = vmatprep.subr.mxu0 %v2595
  %3070 = vmatpush1.msra.mxu0 %v2594
  %3071 = vmatprep.subr.mxu0 %v2603
  %3072 = vmatpush1.msra.mxu0 %v2602
  %3073 = vmatprep.mubr.f32.mxu0 %v2350
  %3074 = vmatmul.mubr.f32.gmra.mrb[0].mxu0 %v2349
  %v3075 = vpop.f32.mrb[0].mxu0
  %v3076 = vadd.f32 %v2943, %v3075
  %v3077 = vpop.f32.mrb[0].mxu0
  %v3078 = vadd.f32 %v2947, %v3077
  %3079 = vdwg.mxu0
  %3080 = vmatprep.subr.mxu0 %v2611
  %3081 = vmatpush1.msra.mxu0 %v2610
  %3082 = vmatprep.subr.mxu0 %v2619
  %3083 = vmatpush1.msra.mxu0 %v2618
  %3084 = vmatprep.subr.mxu0 %v2627
  %3085 = vmatpush1.msra.mxu0 %v2626
  %3086 = vmatprep.subr.mxu0 %v2635
  %3087 = vmatpush1.msra.mxu0 %v2634
  %3088 = vmatprep.subr.mxu0 %v2643
  %3089 = vmatpush1.msra.mxu0 %v2642
  %3090 = vmatprep.subr.mxu0 %v2651
  %3091 = vmatpush1.msra.mxu0 %v2650
  %3092 = vmatprep.subr.mxu0 %v2659
  %3093 = vmatpush1.msra.mxu0 %v2658
  %3094 = vmatprep.subr.mxu0 %v2667
  %3095 = vmatpush1.msra.mxu0 %v2666
  %3096 = vmatprep.subr.mxu0 %v2675
  %3097 = vmatpush1.msra.mxu0 %v2674
  %3098 = vmatprep.subr.mxu0 %v2683
  %3099 = vmatpush1.msra.mxu0 %v2682
  %3100 = vmatprep.subr.mxu0 %v2691
  %3101 = vmatpush1.msra.mxu0 %v2690
  %3102 = vmatprep.subr.mxu0 %v2699
  %3103 = vmatpush1.msra.mxu0 %v2698
  %3104 = vmatprep.subr.mxu0 %v2707
  %3105 = vmatpush1.msra.mxu0 %v2706
  %3106 = vmatprep.subr.mxu0 %v2715
  %3107 = vmatpush1.msra.mxu0 %v2714
  %3108 = vmatprep.subr.mxu0 %v2723
  %3109 = vmatpush1.msra.mxu0 %v2722
  %3110 = vmatprep.subr.mxu0 %v2731
  %3111 = vmatpush1.msra.mxu0 %v2730
  %3112 = vmatprep.subr.mxu0 %v2739
  %3113 = vmatpush1.msra.mxu0 %v2738
  %3114 = vmatprep.subr.mxu0 %v2747
  %3115 = vmatpush1.msra.mxu0 %v2746
  %3116 = vmatprep.subr.mxu0 %v2755
  %3117 = vmatpush1.msra.mxu0 %v2754
  %3118 = vmatprep.subr.mxu0 %v2763
  %3119 = vmatpush1.msra.mxu0 %v2762
  %3120 = vmatprep.subr.mxu0 %v2771
  %3121 = vmatpush1.msra.mxu0 %v2770
  %3122 = vmatprep.subr.mxu0 %v2779
  %3123 = vmatpush1.msra.mxu0 %v2778
  %3124 = vmatprep.subr.mxu0 %v2787
  %3125 = vmatpush1.msra.mxu0 %v2786
  %3126 = vmatprep.subr.mxu0 %v2795
  %3127 = vmatpush1.msra.mxu0 %v2794
  %3128 = vmatprep.subr.mxu0 %v2803
  %3129 = vmatpush1.msra.mxu0 %v2802
  %3130 = vmatprep.subr.mxu0 %v2811
  %3131 = vmatpush1.msra.mxu0 %v2810
  %3132 = vmatprep.subr.mxu0 %v2819
  %3133 = vmatpush1.msra.mxu0 %v2818
  %3134 = vmatprep.subr.mxu0 %v2827
  %3135 = vmatpush1.msra.mxu0 %v2826
  %3136 = vmatprep.subr.mxu0 %v2835
  %3137 = vmatpush1.msra.mxu0 %v2834
  %3138 = vmatprep.subr.mxu0 %v2843
  %3139 = vmatpush1.msra.mxu0 %v2842
  %3140 = vmatprep.subr.mxu0 %v2851
  %3141 = vmatpush1.msra.mxu0 %v2850
  %3142 = vmatprep.subr.mxu0 %v2859
  %3143 = vmatpush1.msra.mxu0 %v2858
  %3144 = vmatprep.mubr.f32.mxu0 %v2352
  %3145 = vmatmul.mubr.f32.gmra.mrb[0].mxu0 %v2351
  %v3146 = vpop.f32.mrb[0].mxu0
  %v3147 = vadd.f32 %v3076, %v3146
  %v3148 = vpop.f32.mrb[0].mxu0
  %v3149 = vadd.f32 %v3078, %v3148
  %3150 = vdwg.mxu0
  %3151 = vmatprep.subr.mxu0 %v2867
  %3152 = vmatpush1.msra.mxu0 %v2866
  %3153 = vmatprep.subr.mxu0 %v2875
  %3154 = vmatpush1.msra.mxu0 %v2874
  %3155 = vmatprep.subr.mxu0 %v2883
  %3156 = vmatpush1.msra.mxu0 %v2882
  %3157 = vmatprep.subr.mxu0 %v2891
  %3158 = vmatpush1.msra.mxu0 %v2890
  %3159 = vmatprep.subr.mxu0 %v2899
  %3160 = vmatpush1.msra.mxu0 %v2898
  %3161 = vmatprep.subr.mxu0 %v2907
  %3162 = vmatpush1.msra.mxu0 %v2906
  %3163 = vmatprep.subr.mxu0 %v2915
  %3164 = vmatpush1.msra.mxu0 %v2914
  %3165 = vmatprep.subr.mxu0 %v2923
  %3166 = vmatpush1.msra.mxu0 %v2922
  %3167 = vmatprep.subr.mxu0 %v2989
  %3168 = vmatpush1.msra.mxu0 %v2986
  %3169 = vmatprep.subr.mxu0 0.0
  %3170 = vmatpush1.msra.mxu0 0.0
  %3171 = vmatprep.subr.mxu0 0.0
  %3172 = vmatpush1.msra.mxu0 0.0
  %3173 = vmatprep.subr.mxu0 0.0
  %3174 = vmatpush1.msra.mxu0 0.0
  %3175 = vmatprep.subr.mxu0 0.0
  %3176 = vmatpush1.msra.mxu0 0.0
  %3177 = vmatprep.subr.mxu0 0.0
  %3178 = vmatpush1.msra.mxu0 0.0
  %3179 = vmatprep.subr.mxu0 0.0
  %3180 = vmatpush1.msra.mxu0 0.0
  %3181 = vmatprep.subr.mxu0 0.0
  %3182 = vmatpush1.msra.mxu0 0.0
  %3183 = vmatprep.subr.mxu0 0.0
  %3184 = vmatpush1.msra.mxu0 0.0
  %3185 = vmatprep.subr.mxu0 0.0
  %3186 = vmatpush1.msra.mxu0 0.0
  %3187 = vmatprep.subr.mxu0 0.0
  %3188 = vmatpush1.msra.mxu0 0.0
  %3189 = vmatprep.subr.mxu0 0.0
  %3190 = vmatpush1.msra.mxu0 0.0
  %3191 = vmatprep.subr.mxu0 0.0
  %3192 = vmatpush1.msra.mxu0 0.0
  %3193 = vmatprep.subr.mxu0 0.0
  %3194 = vmatpush1.msra.mxu0 0.0
  %3195 = vmatprep.subr.mxu0 0.0
  %3196 = vmatpush1.msra.mxu0 0.0
  %3197 = vmatprep.subr.mxu0 0.0
  %3198 = vmatpush1.msra.mxu0 0.0
  %3199 = vmatprep.subr.mxu0 0.0
  %3200 = vmatpush1.msra.mxu0 0.0
  %3201 = vmatprep.subr.mxu0 0.0
  %3202 = vmatpush1.msra.mxu0 0.0
  %3203 = vmatprep.subr.mxu0 0.0
  %3204 = vmatpush1.msra.mxu0 0.0
  %3205 = vmatprep.subr.mxu0 0.0
  %3206 = vmatpush1.msra.mxu0 0.0
  %3207 = vmatprep.subr.mxu0 0.0
  %3208 = vmatpush1.msra.mxu0 0.0
  %3209 = vmatprep.subr.mxu0 0.0
  %3210 = vmatpush1.msra.mxu0 0.0
  %3211 = vmatprep.subr.mxu0 0.0
  %3212 = vmatpush1.msra.mxu0 0.0
  %3213 = vmatprep.subr.mxu0 0.0
  %3214 = vmatpush1.msra.mxu0 0.0
  %3215 = vmatprep.mubr.f32.mxu0 0.0
  %3216 = vmatmul.mubr.f32.gmra.mrb[0].mxu0 %v2982
  %v3217 = vpop.f32.mrb[0].mxu0
  %v3218 = vadd.f32 %v3147, %v3217
  %v3219 = vpop.f32.mrb[0].mxu0
  %v3220 = vadd.f32 %v3149, %v3219
  %3221 = vdwg.mxu0
  %3222 = vmatprep.subr.mxu0 %v2357
  %3223 = vmatpush1.msra.mxu0 %v2356
  %3224 = vmatprep.subr.mxu0 %v2365
  %3225 = vmatpush1.msra.mxu0 %v2364
  %3226 = vmatprep.subr.mxu0 %v2373
  %3227 = vmatpush1.msra.mxu0 %v2372
  %3228 = vmatprep.subr.mxu0 %v2381
  %3229 = vmatpush1.msra.mxu0 %v2380
  %3230 = vmatprep.subr.mxu0 %v2389
  %3231 = vmatpush1.msra.mxu0 %v2388
  %3232 = vmatprep.subr.mxu0 %v2397
  %3233 = vmatpush1.msra.mxu0 %v2396
  %3234 = vmatprep.subr.mxu0 %v2405
  %3235 = vmatpush1.msra.mxu0 %v2404
  %3236 = vmatprep.subr.mxu0 %v2413
  %3237 = vmatpush1.msra.mxu0 %v2412
  %3238 = vmatprep.subr.mxu0 %v2421
  %3239 = vmatpush1.msra.mxu0 %v2420
  %3240 = vmatprep.subr.mxu0 %v2429
  %3241 = vmatpush1.msra.mxu0 %v2428
  %3242 = vmatprep.subr.mxu0 %v2437
  %3243 = vmatpush1.msra.mxu0 %v2436
  %3244 = vmatprep.subr.mxu0 %v2445
  %3245 = vmatpush1.msra.mxu0 %v2444
  %3246 = vmatprep.subr.mxu0 %v2453
  %3247 = vmatpush1.msra.mxu0 %v2452
  %3248 = vmatprep.subr.mxu0 %v2461
  %3249 = vmatpush1.msra.mxu0 %v2460
  %3250 = vmatprep.subr.mxu0 %v2469
  %3251 = vmatpush1.msra.mxu0 %v2468
  %3252 = vmatprep.subr.mxu0 %v2477
  %3253 = vmatpush1.msra.mxu0 %v2476
  %3254 = vmatprep.subr.mxu0 %v2485
  %3255 = vmatpush1.msra.mxu0 %v2484
  %3256 = vmatprep.subr.mxu0 %v2493
  %3257 = vmatpush1.msra.mxu0 %v2492
  %3258 = vmatprep.subr.mxu0 %v2501
  %3259 = vmatpush1.msra.mxu0 %v2500
  %3260 = vmatprep.subr.mxu0 %v2509
  %3261 = vmatpush1.msra.mxu0 %v2508
  %3262 = vmatprep.subr.mxu0 %v2517
  %3263 = vmatpush1.msra.mxu0 %v2516
  %3264 = vmatprep.subr.mxu0 %v2525
  %3265 = vmatpush1.msra.mxu0 %v2524
  %3266 = vmatprep.subr.mxu0 %v2533
  %3267 = vmatpush1.msra.mxu0 %v2532
  %3268 = vmatprep.subr.mxu0 %v2541
  %3269 = vmatpush1.msra.mxu0 %v2540
  %3270 = vmatprep.subr.mxu0 %v2549
  %3271 = vmatpush1.msra.mxu0 %v2548
  %3272 = vmatprep.subr.mxu0 %v2557
  %3273 = vmatpush1.msra.mxu0 %v2556
  %3274 = vmatprep.subr.mxu0 %v2565
  %3275 = vmatpush1.msra.mxu0 %v2564
  %3276 = vmatprep.subr.mxu0 %v2573
  %3277 = vmatpush1.msra.mxu0 %v2572
  %3278 = vmatprep.subr.mxu0 %v2581
  %3279 = vmatpush1.msra.mxu0 %v2580
  %3280 = vmatprep.subr.mxu0 %v2589
  %3281 = vmatpush1.msra.mxu0 %v2588
  %3282 = vmatprep.subr.mxu0 %v2597
  %3283 = vmatpush1.msra.mxu0 %v2596
  %3284 = vmatprep.subr.mxu0 %v2605
  %3285 = vmatpush1.msra.mxu0 %v2604
  %3286 = vmatprep.mubr.f32.mxu0 %v2350
  %3287 = vmatmul.mubr.f32.gmra.mrb[0].mxu0 %v2349
  %v3288 = vpop.f32.mrb[0].mxu0
  %v3289 = vadd.f32 %v2951, %v3288
  %v3290 = vpop.f32.mrb[0].mxu0
  %v3291 = vadd.f32 %v2955, %v3290
  %3292 = vdwg.mxu0
  %3293 = vmatprep.subr.mxu0 %v2613
  %3294 = vmatpush1.msra.mxu0 %v2612
  %3295 = vmatprep.subr.mxu0 %v2621
  %3296 = vmatpush1.msra.mxu0 %v2620
  %3297 = vmatprep.subr.mxu0 %v2629
  %3298 = vmatpush1.msra.mxu0 %v2628
  %3299 = vmatprep.subr.mxu0 %v2637
  %3300 = vmatpush1.msra.mxu0 %v2636
  %3301 = vmatprep.subr.mxu0 %v2645
  %3302 = vmatpush1.msra.mxu0 %v2644
  %3303 = vmatprep.subr.mxu0 %v2653
  %3304 = vmatpush1.msra.mxu0 %v2652
  %3305 = vmatprep.subr.mxu0 %v2661
  %3306 = vmatpush1.msra.mxu0 %v2660
  %3307 = vmatprep.subr.mxu0 %v2669
  %3308 = vmatpush1.msra.mxu0 %v2668
  %3309 = vmatprep.subr.mxu0 %v2677
  %3310 = vmatpush1.msra.mxu0 %v2676
  %3311 = vmatprep.subr.mxu0 %v2685
  %3312 = vmatpush1.msra.mxu0 %v2684
  %3313 = vmatprep.subr.mxu0 %v2693
  %3314 = vmatpush1.msra.mxu0 %v2692
  %3315 = vmatprep.subr.mxu0 %v2701
  %3316 = vmatpush1.msra.mxu0 %v2700
  %3317 = vmatprep.subr.mxu0 %v2709
  %3318 = vmatpush1.msra.mxu0 %v2708
  %3319 = vmatprep.subr.mxu0 %v2717
  %3320 = vmatpush1.msra.mxu0 %v2716
  %3321 = vmatprep.subr.mxu0 %v2725
  %3322 = vmatpush1.msra.mxu0 %v2724
  %3323 = vmatprep.subr.mxu0 %v2733
  %3324 = vmatpush1.msra.mxu0 %v2732
  %3325 = vmatprep.subr.mxu0 %v2741
  %3326 = vmatpush1.msra.mxu0 %v2740
  %3327 = vmatprep.subr.mxu0 %v2749
  %3328 = vmatpush1.msra.mxu0 %v2748
  %3329 = vmatprep.subr.mxu0 %v2757
  %3330 = vmatpush1.msra.mxu0 %v2756
  %3331 = vmatprep.subr.mxu0 %v2765
  %3332 = vmatpush1.msra.mxu0 %v2764
  %3333 = vmatprep.subr.mxu0 %v2773
  %3334 = vmatpush1.msra.mxu0 %v2772
  %3335 = vmatprep.subr.mxu0 %v2781
  %3336 = vmatpush1.msra.mxu0 %v2780
  %3337 = vmatprep.subr.mxu0 %v2789
  %3338 = vmatpush1.msra.mxu0 %v2788
  %3339 = vmatprep.subr.mxu0 %v2797
  %3340 = vmatpush1.msra.mxu0 %v2796
  %3341 = vmatprep.subr.mxu0 %v2805
  %3342 = vmatpush1.msra.mxu0 %v2804
  %3343 = vmatprep.subr.mxu0 %v2813
  %3344 = vmatpush1.msra.mxu0 %v2812
  %3345 = vmatprep.subr.mxu0 %v2821
  %3346 = vmatpush1.msra.mxu0 %v2820
  %3347 = vmatprep.subr.mxu0 %v2829
  %3348 = vmatpush1.msra.mxu0 %v2828
  %3349 = vmatprep.subr.mxu0 %v2837
  %3350 = vmatpush1.msra.mxu0 %v2836
  %3351 = vmatprep.subr.mxu0 %v2845
  %3352 = vmatpush1.msra.mxu0 %v2844
  %3353 = vmatprep.subr.mxu0 %v2853
  %3354 = vmatpush1.msra.mxu0 %v2852
  %3355 = vmatprep.subr.mxu0 %v2861
  %3356 = vmatpush1.msra.mxu0 %v2860
  %3357 = vmatprep.mubr.f32.mxu0 %v2352
  %3358 = vmatmul.mubr.f32.gmra.mrb[0].mxu0 %v2351
  %v3359 = vpop.f32.mrb[0].mxu0
  %v3360 = vadd.f32 %v3289, %v3359
  %v3361 = vpop.f32.mrb[0].mxu0
  %v3362 = vadd.f32 %v3291, %v3361
  %3363 = vdwg.mxu0
  %3364 = vmatprep.subr.mxu0 %v2869
  %3365 = vmatpush1.msra.mxu0 %v2868
  %3366 = vmatprep.subr.mxu0 %v2877
  %3367 = vmatpush1.msra.mxu0 %v2876
  %3368 = vmatprep.subr.mxu0 %v2885
  %3369 = vmatpush1.msra.mxu0 %v2884
  %3370 = vmatprep.subr.mxu0 %v2893
  %3371 = vmatpush1.msra.mxu0 %v2892
  %3372 = vmatprep.subr.mxu0 %v2901
  %3373 = vmatpush1.msra.mxu0 %v2900
  %3374 = vmatprep.subr.mxu0 %v2909
  %3375 = vmatpush1.msra.mxu0 %v2908
  %3376 = vmatprep.subr.mxu0 %v2917
  %3377 = vmatpush1.msra.mxu0 %v2916
  %3378 = vmatprep.subr.mxu0 %v2925
  %3379 = vmatpush1.msra.mxu0 %v2924
  %3380 = vmatprep.subr.mxu0 %v2995
  %3381 = vmatpush1.msra.mxu0 %v2992
  %3382 = vmatprep.subr.mxu0 0.0
  %3383 = vmatpush1.msra.mxu0 0.0
  %3384 = vmatprep.subr.mxu0 0.0
  %3385 = vmatpush1.msra.mxu0 0.0
  %3386 = vmatprep.subr.mxu0 0.0
  %3387 = vmatpush1.msra.mxu0 0.0
  %3388 = vmatprep.subr.mxu0 0.0
  %3389 = vmatpush1.msra.mxu0 0.0
  %3390 = vmatprep.subr.mxu0 0.0
  %3391 = vmatpush1.msra.mxu0 0.0
  %3392 = vmatprep.subr.mxu0 0.0
  %3393 = vmatpush1.msra.mxu0 0.0
  %3394 = vmatprep.subr.mxu0 0.0
  %3395 = vmatpush1.msra.mxu0 0.0
  %3396 = vmatprep.subr.mxu0 0.0
  %3397 = vmatpush1.msra.mxu0 0.0
  %3398 = vmatprep.subr.mxu0 0.0
  %3399 = vmatpush1.msra.mxu0 0.0
  %3400 = vmatprep.subr.mxu0 0.0
  %3401 = vmatpush1.msra.mxu0 0.0
  %3402 = vmatprep.subr.mxu0 0.0
  %3403 = vmatpush1.msra.mxu0 0.0
  %3404 = vmatprep.subr.mxu0 0.0
  %3405 = vmatpush1.msra.mxu0 0.0
  %3406 = vmatprep.subr.mxu0 0.0
  %3407 = vmatpush1.msra.mxu0 0.0
  %3408 = vmatprep.subr.mxu0 0.0
  %3409 = vmatpush1.msra.mxu0 0.0
  %3410 = vmatprep.subr.mxu0 0.0
  %3411 = vmatpush1.msra.mxu0 0.0
  %3412 = vmatprep.subr.mxu0 0.0
  %3413 = vmatpush1.msra.mxu0 0.0
  %3414 = vmatprep.subr.mxu0 0.0
  %3415 = vmatpush1.msra.mxu0 0.0
  %3416 = vmatprep.subr.mxu0 0.0
  %3417 = vmatpush1.msra.mxu0 0.0
  %3418 = vmatprep.subr.mxu0 0.0
  %3419 = vmatpush1.msra.mxu0 0.0
  %3420 = vmatprep.subr.mxu0 0.0
  %3421 = vmatpush1.msra.mxu0 0.0
  %3422 = vmatprep.subr.mxu0 0.0
  %3423 = vmatpush1.msra.mxu0 0.0
  %3424 = vmatprep.subr.mxu0 0.0
  %3425 = vmatpush1.msra.mxu0 0.0
  %3426 = vmatprep.subr.mxu0 0.0
  %3427 = vmatpush1.msra.mxu0 0.0
  %3428 = vmatprep.mubr.f32.mxu0 0.0
  %3429 = vmatmul.mubr.f32.gmra.mrb[0].mxu0 %v2982
  %v3430 = vpop.f32.mrb[0].mxu0
  %v3431 = vadd.f32 %v3360, %v3430
  %v3432 = vpop.f32.mrb[0].mxu0
  %v3433 = vadd.f32 %v3362, %v3432
  %3434 = vdwg.mxu0
  %3435 = vmatprep.subr.mxu0 %v2359
  %3436 = vmatpush1.msra.mxu0 %v2358
  %3437 = vmatprep.subr.mxu0 %v2367
  %3438 = vmatpush1.msra.mxu0 %v2366
  %3439 = vmatprep.subr.mxu0 %v2375
  %3440 = vmatpush1.msra.mxu0 %v2374
  %3441 = vmatprep.subr.mxu0 %v2383
  %3442 = vmatpush1.msra.mxu0 %v2382
  %3443 = vmatprep.subr.mxu0 %v2391
  %3444 = vmatpush1.msra.mxu0 %v2390
  %3445 = vmatprep.subr.mxu0 %v2399
  %3446 = vmatpush1.msra.mxu0 %v2398
  %3447 = vmatprep.subr.mxu0 %v2407
  %3448 = vmatpush1.msra.mxu0 %v2406
  %3449 = vmatprep.subr.mxu0 %v2415
  %3450 = vmatpush1.msra.mxu0 %v2414
  %3451 = vmatprep.subr.mxu0 %v2423
  %3452 = vmatpush1.msra.mxu0 %v2422
  %3453 = vmatprep.subr.mxu0 %v2431
  %3454 = vmatpush1.msra.mxu0 %v2430
  %3455 = vmatprep.subr.mxu0 %v2439
  %3456 = vmatpush1.msra.mxu0 %v2438
  %3457 = vmatprep.subr.mxu0 %v2447
  %3458 = vmatpush1.msra.mxu0 %v2446
  %3459 = vmatprep.subr.mxu0 %v2455
  %3460 = vmatpush1.msra.mxu0 %v2454
  %3461 = vmatprep.subr.mxu0 %v2463
  %3462 = vmatpush1.msra.mxu0 %v2462
  %3463 = vmatprep.subr.mxu0 %v2471
  %3464 = vmatpush1.msra.mxu0 %v2470
  %3465 = vmatprep.subr.mxu0 %v2479
  %3466 = vmatpush1.msra.mxu0 %v2478
  %3467 = vmatprep.subr.mxu0 %v2487
  %3468 = vmatpush1.msra.mxu0 %v2486
  %3469 = vmatprep.subr.mxu0 %v2495
  %3470 = vmatpush1.msra.mxu0 %v2494
  %3471 = vmatprep.subr.mxu0 %v2503
  %3472 = vmatpush1.msra.mxu0 %v2502
  %3473 = vmatprep.subr.mxu0 %v2511
  %3474 = vmatpush1.msra.mxu0 %v2510
  %3475 = vmatprep.subr.mxu0 %v2519
  %3476 = vmatpush1.msra.mxu0 %v2518
  %3477 = vmatprep.subr.mxu0 %v2527
  %3478 = vmatpush1.msra.mxu0 %v2526
  %3479 = vmatprep.subr.mxu0 %v2535
  %3480 = vmatpush1.msra.mxu0 %v2534
  %3481 = vmatprep.subr.mxu0 %v2543
  %3482 = vmatpush1.msra.mxu0 %v2542
  %3483 = vmatprep.subr.mxu0 %v2551
  %3484 = vmatpush1.msra.mxu0 %v2550
  %3485 = vmatprep.subr.mxu0 %v2559
  %3486 = vmatpush1.msra.mxu0 %v2558
  %3487 = vmatprep.subr.mxu0 %v2567
  %3488 = vmatpush1.msra.mxu0 %v2566
  %3489 = vmatprep.subr.mxu0 %v2575
  %3490 = vmatpush1.msra.mxu0 %v2574
  %3491 = vmatprep.subr.mxu0 %v2583
  %3492 = vmatpush1.msra.mxu0 %v2582
  %3493 = vmatprep.subr.mxu0 %v2591
  %3494 = vmatpush1.msra.mxu0 %v2590
  %3495 = vmatprep.subr.mxu0 %v2599
  %3496 = vmatpush1.msra.mxu0 %v2598
  %3497 = vmatprep.subr.mxu0 %v2607
  %3498 = vmatpush1.msra.mxu0 %v2606
  %3499 = vmatprep.mubr.f32.mxu0 %v2350
  %3500 = vmatmul.mubr.f32.gmra.mrb[0].mxu0 %v2349
  %v3501 = vpop.f32.mrb[0].mxu0
  %v3502 = vadd.f32 %v2959, %v3501
  %v3503 = vpop.f32.mrb[0].mxu0
  %v3504 = vadd.f32 %v2963, %v3503
  %3505 = vdwg.mxu0
  %3506 = vmatprep.subr.mxu0 %v2615
  %3507 = vmatpush1.msra.mxu0 %v2614
  %3508 = vmatprep.subr.mxu0 %v2623
  %3509 = vmatpush1.msra.mxu0 %v2622
  %3510 = vmatprep.subr.mxu0 %v2631
  %3511 = vmatpush1.msra.mxu0 %v2630
  %3512 = vmatprep.subr.mxu0 %v2639
  %3513 = vmatpush1.msra.mxu0 %v2638
  %3514 = vmatprep.subr.mxu0 %v2647
  %3515 = vmatpush1.msra.mxu0 %v2646
  %3516 = vmatprep.subr.mxu0 %v2655
  %3517 = vmatpush1.msra.mxu0 %v2654
  %3518 = vmatprep.subr.mxu0 %v2663
  %3519 = vmatpush1.msra.mxu0 %v2662
  %3520 = vmatprep.subr.mxu0 %v2671
  %3521 = vmatpush1.msra.mxu0 %v2670
  %3522 = vmatprep.subr.mxu0 %v2679
  %3523 = vmatpush1.msra.mxu0 %v2678
  %3524 = vmatprep.subr.mxu0 %v2687
  %3525 = vmatpush1.msra.mxu0 %v2686
  %3526 = vmatprep.subr.mxu0 %v2695
  %3527 = vmatpush1.msra.mxu0 %v2694
  %3528 = vmatprep.subr.mxu0 %v2703
  %3529 = vmatpush1.msra.mxu0 %v2702
  %3530 = vmatprep.subr.mxu0 %v2711
  %3531 = vmatpush1.msra.mxu0 %v2710
  %3532 = vmatprep.subr.mxu0 %v2719
  %3533 = vmatpush1.msra.mxu0 %v2718
  %3534 = vmatprep.subr.mxu0 %v2727
  %3535 = vmatpush1.msra.mxu0 %v2726
  %3536 = vmatprep.subr.mxu0 %v2735
  %3537 = vmatpush1.msra.mxu0 %v2734
  %3538 = vmatprep.subr.mxu0 %v2743
  %3539 = vmatpush1.msra.mxu0 %v2742
  %3540 = vmatprep.subr.mxu0 %v2751
  %3541 = vmatpush1.msra.mxu0 %v2750
  %3542 = vmatprep.subr.mxu0 %v2759
  %3543 = vmatpush1.msra.mxu0 %v2758
  %3544 = vmatprep.subr.mxu0 %v2767
  %3545 = vmatpush1.msra.mxu0 %v2766
  %3546 = vmatprep.subr.mxu0 %v2775
  %3547 = vmatpush1.msra.mxu0 %v2774
  %3548 = vmatprep.subr.mxu0 %v2783
  %3549 = vmatpush1.msra.mxu0 %v2782
  %3550 = vmatprep.subr.mxu0 %v2791
  %3551 = vmatpush1.msra.mxu0 %v2790
  %3552 = vmatprep.subr.mxu0 %v2799
  %3553 = vmatpush1.msra.mxu0 %v2798
  %3554 = vmatprep.subr.mxu0 %v2807
  %3555 = vmatpush1.msra.mxu0 %v2806
  %3556 = vmatprep.subr.mxu0 %v2815
  %3557 = vmatpush1.msra.mxu0 %v2814
  %3558 = vmatprep.subr.mxu0 %v2823
  %3559 = vmatpush1.msra.mxu0 %v2822
  %3560 = vmatprep.subr.mxu0 %v2831
  %3561 = vmatpush1.msra.mxu0 %v2830
  %3562 = vmatprep.subr.mxu0 %v2839
  %3563 = vmatpush1.msra.mxu0 %v2838
  %3564 = vmatprep.subr.mxu0 %v2847
  %3565 = vmatpush1.msra.mxu0 %v2846
  %3566 = vmatprep.subr.mxu0 %v2855
  %3567 = vmatpush1.msra.mxu0 %v2854
  %3568 = vmatprep.subr.mxu0 %v2863
  %3569 = vmatpush1.msra.mxu0 %v2862
  %3570 = vmatprep.mubr.f32.mxu0 %v2352
  %3571 = vmatmul.mubr.f32.gmra.mrb[0].mxu0 %v2351
  %v3572 = vpop.f32.mrb[0].mxu0
  %v3573 = vadd.f32 %v3502, %v3572
  %v3574 = vpop.f32.mrb[0].mxu0
  %v3575 = vadd.f32 %v3504, %v3574
  %3576 = vdwg.mxu0
  %3577 = vmatprep.subr.mxu0 %v2871
  %3578 = vmatpush1.msra.mxu0 %v2870
  %3579 = vmatprep.subr.mxu0 %v2879
  %3580 = vmatpush1.msra.mxu0 %v2878
  %3581 = vmatprep.subr.mxu0 %v2887
  %3582 = vmatpush1.msra.mxu0 %v2886
  %3583 = vmatprep.subr.mxu0 %v2895
  %3584 = vmatpush1.msra.mxu0 %v2894
  %3585 = vmatprep.subr.mxu0 %v2903
  %3586 = vmatpush1.msra.mxu0 %v2902
  %3587 = vmatprep.subr.mxu0 %v2911
  %3588 = vmatpush1.msra.mxu0 %v2910
  %3589 = vmatprep.subr.mxu0 %v2919
  %3590 = vmatpush1.msra.mxu0 %v2918
  %3591 = vmatprep.subr.mxu0 %v2927
  %3592 = vmatpush1.msra.mxu0 %v2926
  %3593 = vmatprep.subr.mxu0 %v3001
  %3594 = vmatpush1.msra.mxu0 %v2998
  %3595 = vmatprep.subr.mxu0 0.0
  %3596 = vmatpush1.msra.mxu0 0.0
  %3597 = vmatprep.subr.mxu0 0.0
  %3598 = vmatpush1.msra.mxu0 0.0
  %3599 = vmatprep.subr.mxu0 0.0
  %3600 = vmatpush1.msra.mxu0 0.0
  %3601 = vmatprep.subr.mxu0 0.0
  %3602 = vmatpush1.msra.mxu0 0.0
  %3603 = vmatprep.subr.mxu0 0.0
  %3604 = vmatpush1.msra.mxu0 0.0
  %3605 = vmatprep.subr.mxu0 0.0
  %3606 = vmatpush1.msra.mxu0 0.0
  %3607 = vmatprep.subr.mxu0 0.0
  %3608 = vmatpush1.msra.mxu0 0.0
  %3609 = vmatprep.subr.mxu0 0.0
  %3610 = vmatpush1.msra.mxu0 0.0
  %3611 = vmatprep.subr.mxu0 0.0
  %3612 = vmatpush1.msra.mxu0 0.0
  %3613 = vmatprep.subr.mxu0 0.0
  %3614 = vmatpush1.msra.mxu0 0.0
  %3615 = vmatprep.subr.mxu0 0.0
  %3616 = vmatpush1.msra.mxu0 0.0
  %3617 = vmatprep.subr.mxu0 0.0
  %3618 = vmatpush1.msra.mxu0 0.0
  %3619 = vmatprep.subr.mxu0 0.0
  %3620 = vmatpush1.msra.mxu0 0.0
  %3621 = vmatprep.subr.mxu0 0.0
  %3622 = vmatpush1.msra.mxu0 0.0
  %3623 = vmatprep.subr.mxu0 0.0
  %3624 = vmatpush1.msra.mxu0 0.0
  %3625 = vmatprep.subr.mxu0 0.0
  %3626 = vmatpush1.msra.mxu0 0.0
  %3627 = vmatprep.subr.mxu0 0.0
  %3628 = vmatpush1.msra.mxu0 0.0
  %3629 = vmatprep.subr.mxu0 0.0
  %3630 = vmatpush1.msra.mxu0 0.0
  %3631 = vmatprep.subr.mxu0 0.0
  %3632 = vmatpush1.msra.mxu0 0.0
  %3633 = vmatprep.subr.mxu0 0.0
  %3634 = vmatpush1.msra.mxu0 0.0
  %3635 = vmatprep.subr.mxu0 0.0
  %3636 = vmatpush1.msra.mxu0 0.0
  %3637 = vmatprep.subr.mxu0 0.0
  %3638 = vmatpush1.msra.mxu0 0.0
  %3639 = vmatprep.subr.mxu0 0.0
  %3640 = vmatpush1.msra.mxu0 0.0
  %3641 = vmatprep.mubr.f32.mxu0 0.0
  %3642 = vmatmul.mubr.f32.gmra.mrb[0].mxu0 %v2982
  %v3643 = vpop.f32.mrb[0].mxu0
  %v3644 = vadd.f32 %v3573, %v3643
  %v3645 = vpop.f32.mrb[0].mxu0
  %v3646 = vadd.f32 %v3575, %v3645
  %3647 = vdwg.mxu0
  %3648 = vmatprep.subr.mxu0 %v2361
  %3649 = vmatpush1.msra.mxu0 %v2360
  %3650 = vmatprep.subr.mxu0 %v2369
  %3651 = vmatpush1.msra.mxu0 %v2368
  %3652 = vmatprep.subr.mxu0 %v2377
  %3653 = vmatpush1.msra.mxu0 %v2376
  %3654 = vmatprep.subr.mxu0 %v2385
  %3655 = vmatpush1.msra.mxu0 %v2384
  %3656 = vmatprep.subr.mxu0 %v2393
  %3657 = vmatpush1.msra.mxu0 %v2392
  %3658 = vmatprep.subr.mxu0 %v2401
  %3659 = vmatpush1.msra.mxu0 %v2400
  %3660 = vmatprep.subr.mxu0 %v2409
  %3661 = vmatpush1.msra.mxu0 %v2408
  %3662 = vmatprep.subr.mxu0 %v2417
  %3663 = vmatpush1.msra.mxu0 %v2416
  %3664 = vmatprep.subr.mxu0 %v2425
  %3665 = vmatpush1.msra.mxu0 %v2424
  %3666 = vmatprep.subr.mxu0 %v2433
  %3667 = vmatpush1.msra.mxu0 %v2432
  %3668 = vmatprep.subr.mxu0 %v2441
  %3669 = vmatpush1.msra.mxu0 %v2440
  %3670 = vmatprep.subr.mxu0 %v2449
  %3671 = vmatpush1.msra.mxu0 %v2448
  %3672 = vmatprep.subr.mxu0 %v2457
  %3673 = vmatpush1.msra.mxu0 %v2456
  %3674 = vmatprep.subr.mxu0 %v2465
  %3675 = vmatpush1.msra.mxu0 %v2464
  %3676 = vmatprep.subr.mxu0 %v2473
  %3677 = vmatpush1.msra.mxu0 %v2472
  %3678 = vmatprep.subr.mxu0 %v2481
  %3679 = vmatpush1.msra.mxu0 %v2480
  %3680 = vmatprep.subr.mxu0 %v2489
  %3681 = vmatpush1.msra.mxu0 %v2488
  %3682 = vmatprep.subr.mxu0 %v2497
  %3683 = vmatpush1.msra.mxu0 %v2496
  %3684 = vmatprep.subr.mxu0 %v2505
  %3685 = vmatpush1.msra.mxu0 %v2504
  %3686 = vmatprep.subr.mxu0 %v2513
  %3687 = vmatpush1.msra.mxu0 %v2512
  %3688 = vmatprep.subr.mxu0 %v2521
  %3689 = vmatpush1.msra.mxu0 %v2520
  %3690 = vmatprep.subr.mxu0 %v2529
  %3691 = vmatpush1.msra.mxu0 %v2528
  %3692 = vmatprep.subr.mxu0 %v2537
  %3693 = vmatpush1.msra.mxu0 %v2536
  %3694 = vmatprep.subr.mxu0 %v2545
  %3695 = vmatpush1.msra.mxu0 %v2544
  %3696 = vmatprep.subr.mxu0 %v2553
  %3697 = vmatpush1.msra.mxu0 %v2552
  %3698 = vmatprep.subr.mxu0 %v2561
  %3699 = vmatpush1.msra.mxu0 %v2560
  %3700 = vmatprep.subr.mxu0 %v2569
  %3701 = vmatpush1.msra.mxu0 %v2568
  %3702 = vmatprep.subr.mxu0 %v2577
  %3703 = vmatpush1.msra.mxu0 %v2576
  %3704 = vmatprep.subr.mxu0 %v2585
  %3705 = vmatpush1.msra.mxu0 %v2584
  %3706 = vmatprep.subr.mxu0 %v2593
  %3707 = vmatpush1.msra.mxu0 %v2592
  %3708 = vmatprep.subr.mxu0 %v2601
  %3709 = vmatpush1.msra.mxu0 %v2600
  %3710 = vmatprep.subr.mxu0 %v2609
  %3711 = vmatpush1.msra.mxu0 %v2608
  %3712 = vmatprep.mubr.f32.mxu0 %v2350
  %3713 = vmatmul.mubr.f32.gmra.mrb[0].mxu0 %v2349
  %v3714 = vpop.f32.mrb[0].mxu0
  %v3715 = vadd.f32 %v2967, %v3714
  %v3716 = vpop.f32.mrb[0].mxu0
  %v3717 = vadd.f32 %v2971, %v3716
  %3718 = vdwg.mxu0
  %3719 = vmatprep.subr.mxu0 %v2617
  %3720 = vmatpush1.msra.mxu0 %v2616
  %3721 = vmatprep.subr.mxu0 %v2625
  %3722 = vmatpush1.msra.mxu0 %v2624
  %3723 = vmatprep.subr.mxu0 %v2633
  %3724 = vmatpush1.msra.mxu0 %v2632
  %3725 = vmatprep.subr.mxu0 %v2641
  %3726 = vmatpush1.msra.mxu0 %v2640
  %3727 = vmatprep.subr.mxu0 %v2649
  %3728 = vmatpush1.msra.mxu0 %v2648
  %3729 = vmatprep.subr.mxu0 %v2657
  %3730 = vmatpush1.msra.mxu0 %v2656
  %3731 = vmatprep.subr.mxu0 %v2665
  %3732 = vmatpush1.msra.mxu0 %v2664
  %3733 = vmatprep.subr.mxu0 %v2673
  %3734 = vmatpush1.msra.mxu0 %v2672
  %3735 = vmatprep.subr.mxu0 %v2681
  %3736 = vmatpush1.msra.mxu0 %v2680
  %3737 = vmatprep.subr.mxu0 %v2689
  %3738 = vmatpush1.msra.mxu0 %v2688
  %3739 = vmatprep.subr.mxu0 %v2697
  %3740 = vmatpush1.msra.mxu0 %v2696
  %3741 = vmatprep.subr.mxu0 %v2705
  %3742 = vmatpush1.msra.mxu0 %v2704
  %3743 = vmatprep.subr.mxu0 %v2713
  %3744 = vmatpush1.msra.mxu0 %v2712
  %3745 = vmatprep.subr.mxu0 %v2721
  %3746 = vmatpush1.msra.mxu0 %v2720
  %3747 = vmatprep.subr.mxu0 %v2729
  %3748 = vmatpush1.msra.mxu0 %v2728
  %3749 = vmatprep.subr.mxu0 %v2737
  %3750 = vmatpush1.msra.mxu0 %v2736
  %3751 = vmatprep.subr.mxu0 %v2745
  %3752 = vmatpush1.msra.mxu0 %v2744
  %3753 = vmatprep.subr.mxu0 %v2753
  %3754 = vmatpush1.msra.mxu0 %v2752
  %3755 = vmatprep.subr.mxu0 %v2761
  %3756 = vmatpush1.msra.mxu0 %v2760
  %3757 = vmatprep.subr.mxu0 %v2769
  %3758 = vmatpush1.msra.mxu0 %v2768
  %3759 = vmatprep.subr.mxu0 %v2777
  %3760 = vmatpush1.msra.mxu0 %v2776
  %3761 = vmatprep.subr.mxu0 %v2785
  %3762 = vmatpush1.msra.mxu0 %v2784
  %3763 = vmatprep.subr.mxu0 %v2793
  %3764 = vmatpush1.msra.mxu0 %v2792
  %3765 = vmatprep.subr.mxu0 %v2801
  %3766 = vmatpush1.msra.mxu0 %v2800
  %3767 = vmatprep.subr.mxu0 %v2809
  %3768 = vmatpush1.msra.mxu0 %v2808
  %3769 = vmatprep.subr.mxu0 %v2817
  %3770 = vmatpush1.msra.mxu0 %v2816
  %3771 = vmatprep.subr.mxu0 %v2825
  %3772 = vmatpush1.msra.mxu0 %v2824
  %3773 = vmatprep.subr.mxu0 %v2833
  %3774 = vmatpush1.msra.mxu0 %v2832
  %3775 = vmatprep.subr.mxu0 %v2841
  %3776 = vmatpush1.msra.mxu0 %v2840
  %3777 = vmatprep.subr.mxu0 %v2849
  %3778 = vmatpush1.msra.mxu0 %v2848
  %3779 = vmatprep.subr.mxu0 %v2857
  %3780 = vmatpush1.msra.mxu0 %v2856
  %3781 = vmatprep.subr.mxu0 %v2865
  %3782 = vmatpush1.msra.mxu0 %v2864
  %3783 = vmatprep.mubr.f32.mxu0 %v2352
  %3784 = vmatmul.mubr.f32.gmra.mrb[0].mxu0 %v2351
  %v3785 = vpop.f32.mrb[0].mxu0
  %v3786 = vadd.f32 %v3715, %v3785
  %v3787 = vpop.f32.mrb[0].mxu0
  %v3788 = vadd.f32 %v3717, %v3787
  %3789 = vdwg.mxu0
  %3790 = vmatprep.subr.mxu0 %v2873
  %3791 = vmatpush1.msra.mxu0 %v2872
  %3792 = vmatprep.subr.mxu0 %v2881
  %3793 = vmatpush1.msra.mxu0 %v2880
  %3794 = vmatprep.subr.mxu0 %v2889
  %3795 = vmatpush1.msra.mxu0 %v2888
  %3796 = vmatprep.subr.mxu0 %v2897
  %3797 = vmatpush1.msra.mxu0 %v2896
  %3798 = vmatprep.subr.mxu0 %v2905
  %3799 = vmatpush1.msra.mxu0 %v2904
  %3800 = vmatprep.subr.mxu0 %v2913
  %3801 = vmatpush1.msra.mxu0 %v2912
  %3802 = vmatprep.subr.mxu0 %v2921
  %3803 = vmatpush1.msra.mxu0 %v2920
  %3804 = vmatprep.subr.mxu0 %v2929
  %3805 = vmatpush1.msra.mxu0 %v2928
  %3806 = vmatprep.subr.mxu0 %v3007
  %3807 = vmatpush1.msra.mxu0 %v3004
  %3808 = vmatprep.subr.mxu0 0.0
  %3809 = vmatpush1.msra.mxu0 0.0
  %3810 = vmatprep.subr.mxu0 0.0
  %3811 = vmatpush1.msra.mxu0 0.0
  %3812 = vmatprep.subr.mxu0 0.0
  %3813 = vmatpush1.msra.mxu0 0.0
  %3814 = vmatprep.subr.mxu0 0.0
  %3815 = vmatpush1.msra.mxu0 0.0
  %3816 = vmatprep.subr.mxu0 0.0
  %3817 = vmatpush1.msra.mxu0 0.0
  %3818 = vmatprep.subr.mxu0 0.0
  %3819 = vmatpush1.msra.mxu0 0.0
  %3820 = vmatprep.subr.mxu0 0.0
  %3821 = vmatpush1.msra.mxu0 0.0
  %3822 = vmatprep.subr.mxu0 0.0
  %3823 = vmatpush1.msra.mxu0 0.0
  %3824 = vmatprep.subr.mxu0 0.0
  %3825 = vmatpush1.msra.mxu0 0.0
  %3826 = vmatprep.subr.mxu0 0.0
  %3827 = vmatpush1.msra.mxu0 0.0
  %3828 = vmatprep.subr.mxu0 0.0
  %3829 = vmatpush1.msra.mxu0 0.0
  %3830 = vmatprep.subr.mxu0 0.0
  %3831 = vmatpush1.msra.mxu0 0.0
  %3832 = vmatprep.subr.mxu0 0.0
  %3833 = vmatpush1.msra.mxu0 0.0
  %3834 = vmatprep.subr.mxu0 0.0
  %3835 = vmatpush1.msra.mxu0 0.0
  %3836 = vmatprep.subr.mxu0 0.0
  %3837 = vmatpush1.msra.mxu0 0.0
  %3838 = vmatprep.subr.mxu0 0.0
  %3839 = vmatpush1.msra.mxu0 0.0
  %3840 = vmatprep.subr.mxu0 0.0
  %3841 = vmatpush1.msra.mxu0 0.0
  %3842 = vmatprep.subr.mxu0 0.0
  %3843 = vmatpush1.msra.mxu0 0.0
  %3844 = vmatprep.subr.mxu0 0.0
  %3845 = vmatpush1.msra.mxu0 0.0
  %3846 = vmatprep.subr.mxu0 0.0
  %3847 = vmatpush1.msra.mxu0 0.0
  %3848 = vmatprep.subr.mxu0 0.0
  %3849 = vmatpush1.msra.mxu0 0.0
  %3850 = vmatprep.subr.mxu0 0.0
  %3851 = vmatpush1.msra.mxu0 0.0
  %3852 = vmatprep.subr.mxu0 0.0
  %3853 = vmatpush1.msra.mxu0 0.0
  %3854 = vmatprep.mubr.f32.mxu0 0.0
  %3855 = vmatmul.mubr.f32.gmra.mrb[0].mxu0 %v2982
  %v3856 = vpop.f32.mrb[0].mxu0
  %v3857 = vadd.f32 %v3786, %v3856
  %v3858 = vpop.f32.mrb[0].mxu0
  %v3859 = vadd.f32 %v3788, %v3858
  %3860 = vdwg.mxu0
  %v3861 = vtanh.pop %v3218
  %v3862 = vtanh.pop %v3220
  %v3863 = vtanh.pop %v3431
  %v3864 = vtanh.pop %v3433
  %v3865 = vtanh.pop %v3644
  %v3866 = vtanh.pop %v3646
  %v3867 = vtanh.pop %v3857
  %v3868 = vtanh.pop %v3859
  %3869 = vst [vmem:[%s11] sm:$0xff] %v3861
  %3870 = vst [vmem:[%s11 + $0x8] sm:$0xff] %v3862
  %3871 = vst [vmem:[%s11 + $0x10] sm:$0xff] %v3863
  %3872 = vst [vmem:[%s11 + $0x18] sm:$0xff] %v3864
  %3873 = vst [vmem:[%s11 + $0x20] sm:$0xff] %v3865
  %3874 = vst [vmem:[%s11 + $0x28] sm:$0xff] %v3866
  %3875 = vst [vmem:[%s11 + $0x30] sm:$0xff] %v3867
  %3876 = vst [vmem:[%s11 + $0x38] sm:$0xff] %v3868
  // Predicated region
  $region46: #{forward.1} parent=0 // pred_check
    _
  $region47: #{forward.1} parent=0 // pred_check_branch
    %3878 = sbr.rel (0) target = $region49
  $region48: #{forward.1} parent=0 // pred_region
    _
  $region49: #{forward.1} parent=0 // pred_fallthru
    _
  // Predicated region
  $region50: #{forward.1} parent=0 // pred_check
    _
  $region51: #{forward.1} parent=0 // pred_check_branch
    %3880 = sbr.rel (0) target = $region53
  $region52: #{forward.1} parent=0 // pred_region
    _
  $region53: #{forward.1} parent=0 // pred_fallthru
    _

</llo_original>
